<compile_context>
chip_gen: v5e
topology: v5e:2x2
jax: 0.10.0
libtpu: 0.0.40
codegen_flags: <defaults>
</compile_context>

<pallas_src>
import functools

import jax
import jax.numpy as jnp
from jax.experimental import pallas as pl
from jax.experimental.pallas import tpu as pltpu

EPS = 1e-5


# --------------------------------- kernel -----------------------------------

def _adabn_chain_kernel(x_ref, w1_ref, b1_ref, w2_ref, b2_ref, o_ref, *,
                        seg_len, num_blocks):
    """Fused chain of AdaBNBlocks (stride=1, no downsample) for one batch chunk.

    Layout: channels on sublanes, (batch-chunk x length) flattened on lanes.
      x_ref : (C, B*L)    activations in matmul dtype (bf16 default / f32)
      w*_ref: (NB, C, 3C) BN-folded, tap-packed conv weights (matmul dtype)
      b*_ref: (NB, C, 1)  BN-folded biases (f32)
      o_ref : (C, B*L)
    """
    c = x_ref.shape[0]
    t = x_ref.shape[-1]            # B*L lanes in this block
    l = seg_len
    mm_dtype = x_ref.dtype

    # Column j of the block belongs to sample j//L at position j%L.  Hoisted masks
    # (broadcast once; JAX does not CSE broadcast_in_dim inside the layer loop).
    lpos = jax.lax.broadcasted_iota(jnp.int32, (1, t), 1) % l
    is_first = jnp.broadcast_to(lpos == 0, (c, t))
    is_last = jnp.broadcast_to(lpos == (l - 1), (c, t))

    def circ_taps(h):
        # h: (C, T).  Build the three conv taps [x[l-1], x[l], x[l+1]], each circular
        # *within its own length-L segment* of the lane axis.  Bulk shift = whole-axis
        # roll by +/-1 (XLU lane rotation); the per-sample wrap columns are patched
        # with a vreg-aligned roll by -/+L (L % 128 == 0) and a VPU select.
        r_prev = pltpu.roll(h, 1, axis=1)                    # x[j-1]
        r_next = pltpu.roll(h, t - 1, axis=1)                # x[j+1]
        fix_prev = pltpu.roll(r_prev, (t - l) % t, axis=1)   # x[j+L-1]
        fix_next = pltpu.roll(r_next, l % t, axis=1)         # x[j-L+1]
        x_m1 = jnp.where(is_first, fix_prev, r_prev)
        x_p1 = jnp.where(is_last, fix_next, r_next)
        # Single packed K=3C contraction (see header note on why the concat stays).
        return jnp.concatenate([x_m1, h, x_p1], axis=0)      # (3C, T)

    h_mm = x_ref[...]
    h32 = h_mm.astype(jnp.float32)
    for j in range(num_blocks):                              # static unrolled chain
        identity = h32
        y1 = jnp.dot(w1_ref[j], circ_taps(h_mm),
                     preferred_element_type=jnp.float32)     # conv1 (f32 acc)
        h1 = jnp.maximum(y1 + b1_ref[j], 0.0)                # + bn1 + relu
        y2 = jnp.dot(w2_ref[j], circ_taps(h1.astype(mm_dtype)),
                     preferred_element_type=jnp.float32)     # conv2 (f32 acc)
        h32 = jnp.maximum(y2 + b2_ref[j] + identity, 0.0)    # + bn2 + residual + relu
        if j + 1 < num_blocks:
            h_mm = h32.astype(mm_dtype)
    o_ref[...] = h32.astype(o_ref.dtype)


# -------------------------------- wrapper ------------------------------------

def _fold_bn_into_conv(w, gamma, beta, mean, var):
    """Fold eval-mode AdaBN into the conv: (Wpacked (Cout,3Cin), bias (Cout,1)).

    w: (Cout, Cin, 3) PyTorch Conv1d weight.  Wpacked[o, k*Cin + i] = w[o,i,k]*scale[o]
    matches the kernel tap order [k=0 -> x[l-1], k=1 -> x[l], k=2 -> x[l+1]].
    """
    cout, cin, _ = w.shape
    scale = gamma * jax.lax.rsqrt(var + EPS)
    w_packed = jnp.transpose(w * scale[:, None, None], (0, 2, 1)).reshape(cout, 3 * cin)
    bias = (beta - mean * scale)[:, None]
    return w_packed, bias


def adabn_blocks_forward(x_ncl, blocks_params, class_id, *,
                         samples_per_step=16, use_bf16_matmul=True):
    """Fused forward of a chain of stride-1 / no-downsample AdaBNBlocks.

    x_ncl: (N, C, L) in PyTorch Conv1d layout.  Returns (N, C, L) float32.
    blocks_params: list of per-block dicts with conv1_w/conv2_w and bn{1,2}_* tables.
    """
    n, c, l = x_ncl.shape
    assert l % 128 == 0, "L must be a multiple of 128 (lane-dense circular rolls)"
    num_blocks = len(blocks_params)
    assert num_blocks >= 1

    mm_dtype = jnp.bfloat16 if use_bf16_matmul else jnp.float32

    # Fold AdaBN (class-conditional affine + running stats) into the conv weights/bias.
    w1s, b1s, w2s, b2s = [], [], [], []
    for p in blocks_params:
        w1 = p["conv1_w"].astype(jnp.float32)
        w2 = p["conv2_w"].astype(jnp.float32)
        assert w1.shape == (c, c, 3) and w2.shape == (c, c, 3), (
            "fused chain covers stride=1, downsample=None blocks (Cin == Cout)")

        def sel(name, p=p):
            return p[name][class_id].astype(jnp.float32)

        w1p, b1 = _fold_bn_into_conv(w1, sel("bn1_gamma"), sel("bn1_beta"),
                                     sel("bn1_mean"), sel("bn1_var"))
        w2p, b2 = _fold_bn_into_conv(w2, sel("bn2_gamma"), sel("bn2_beta"),
                                     sel("bn2_mean"), sel("bn2_var"))
        w1s.append(w1p); b1s.append(b1); w2s.append(w2p); b2s.append(b2)

    w1_all = jnp.stack(w1s).astype(mm_dtype)   # (NB, C, 3C)
    w2_all = jnp.stack(w2s).astype(mm_dtype)
    b1_all = jnp.stack(b1s)                    # (NB, C, 1) f32
    b2_all = jnp.stack(b2s)

    # Batch-chunking: B samples per grid step; pad N to a multiple of B (padded samples
    # are independent garbage and are sliced off below).
    b = max(1, min(samples_per_step, n))
    n_pad = -(-n // b) * b
    grid = n_pad // b

    # (N, C, L) -> (C, N_pad, L) -> (C, N_pad*L): sample-major, position-minor lanes.
    xt = jnp.transpose(x_ncl, (1, 0, 2))
    if n_pad != n:
        xt = jnp.pad(xt, ((0, 0), (0, n_pad - n), (0, 0)))
    x2 = xt.reshape(c, n_pad * l).astype(mm_dtype)

    kernel = functools.partial(_adabn_chain_kernel, seg_len=l, num_blocks=num_blocks)

    grid_spec = pltpu.PrefetchScalarGridSpec(
        num_scalar_prefetch=0,
        grid=(grid,),
        in_specs=[
            pl.BlockSpec((c, b * l), lambda i: (0, i)),                  # batch chunk
            pl.BlockSpec((num_blocks, c, 3 * c), lambda i: (0, 0, 0)),   # resident weights
            pl.BlockSpec((num_blocks, c, 1), lambda i: (0, 0, 0)),
            pl.BlockSpec((num_blocks, c, 3 * c), lambda i: (0, 0, 0)),
            pl.BlockSpec((num_blocks, c, 1), lambda i: (0, 0, 0)),
        ],
        out_specs=pl.BlockSpec((c, b * l), lambda i: (0, i)),
    )

    o2 = pl.pallas_call(
        kernel,
        out_shape=jax.ShapeDtypeStruct((c, n_pad * l), mm_dtype),
        grid_spec=grid_spec,
        compiler_params=pltpu.CompilerParams(
            # Batch-chunk grid steps are independent -> megacore sharding on v7x.
            # No vmem_limit_bytes: footprint is well under the default scoped limit
            # on every generation (incl. v7x's 64 MiB physical VMEM).
            dimension_semantics=("parallel",),
        ),
    )(x2, w1_all, b1_all, w2_all, b2_all)

    out = o2.reshape(c, n_pad, l)[:, :n, :]
    return jnp.transpose(out, (1, 0, 2)).astype(jnp.float32)


def adabn_block_forward(x_ncl, params, class_id, **kw):
    """Single AdaBNBlock (stride=1, downsample=None) — chain of length 1."""
    return adabn_blocks_forward(x_ncl, [params], class_id, **kw)


# ---------------- pure-JAX reference (for correctness check) ----------------

def _ref_circ_conv(x, w):
    xp = jnp.concatenate([x[:, :, -1:], x, x[:, :, :1]], axis=2)   # circular pad=1
    return jax.lax.conv_general_dilated(
        xp, w, window_strides=(1,), padding="VALID",
        dimension_numbers=("NCH", "OIH", "NCH"),
        precision=jax.lax.Precision.HIGHEST)


def adabn_block_reference(x, params, class_id):
    def bn(y, prefix):
        g = params[prefix + "_gamma"][class_id][None, :, None]
        b = params[prefix + "_beta"][class_id][None, :, None]
        m = params[prefix + "_mean"][class_id][None, :, None]
        v = params[prefix + "_var"][class_id][None, :, None]
        return (y - m) / jnp.sqrt(v + EPS) * g + b

    identity = x
    out = _ref_circ_conv(x, params["conv1_w"])
    out = bn(out, "bn1")
    out = jnp.maximum(out, 0.0)
    out = _ref_circ_conv(out, params["conv2_w"])
    out = bn(out, "bn2")
    return jnp.maximum(out + identity, 0.0)


def adabn_chain_reference(x, blocks_params, class_id):
    for p in blocks_params:
        x = adabn_block_reference(x, p, class_id)
    return x


# ---------------------------------- demo -------------------------------------

if __name__ == "__main__":
    # Shapes consistent with AdaBNResNet-18 layer1: two 64->64 stride-1 blocks.
    N, C, L = 8, 64, 128
    NUM_BLOCKS, STEPS = 2, 8
    CLASS_ID = 3

    key = jax.random.PRNGKey(0)
    keys = jax.random.split(key, NUM_BLOCKS + 1)

    def make_block_params(k):
        ks = jax.random.split(k, 10)
        return {
            "conv1_w": 0.05 * jax.random.normal(ks[0], (C, C, 3), jnp.float32),
            "conv2_w": 0.05 * jax.random.normal(ks[1], (C, C, 3), jnp.float32),
            "bn1_gamma": 1.0 + 0.1 * jax.random.normal(ks[2], (STEPS, C), jnp.float32),
            "bn1_beta": 0.1 * jax.random.normal(ks[3], (STEPS, C), jnp.float32),
            "bn1_mean": 0.1 * jax.random.normal(ks[4], (STEPS, C), jnp.float32),
            "bn1_var": jax.random.uniform(ks[5], (STEPS, C), jnp.float32, 0.5, 1.5),
            "bn2_gamma": 1.0 + 0.1 * jax.random.normal(ks[6], (STEPS, C), jnp.float32),
            "bn2_beta": 0.1 * jax.random.normal(ks[7], (STEPS, C), jnp.float32),
            "bn2_mean": 0.1 * jax.random.normal(ks[8], (STEPS, C), jnp.float32),
            "bn2_var": jax.random.uniform(ks[9], (STEPS, C), jnp.float32, 0.5, 1.5),
        }

    blocks_params = [make_block_params(k) for k in keys[:NUM_BLOCKS]]
    x = jax.random.normal(keys[-1], (N, C, L), jnp.float32)

    ref = jax.block_until_ready(adabn_chain_reference(x, blocks_params, CLASS_ID))

    # f32 MXU path — strict numerics check. 4 samples/step -> grid of 2 so both v7x
    # TensorCores take half the batch.
    out_f32 = jax.block_until_ready(adabn_blocks_forward(
        x, blocks_params, CLASS_ID, samples_per_step=4, use_bf16_matmul=False))
    assert out_f32.shape == (N, C, L), out_f32.shape
    err = float(jnp.max(jnp.abs(out_f32 - ref)))
    assert jnp.allclose(out_f32, ref, rtol=3e-3, atol=3e-3), f"f32 max abs err = {err}"

    # Default bf16 matmul/activation path (f32 accumulate + f32 bias/relu/residual),
    # checked against a bf16-appropriate rel-to-peak bound.
    out_bf16 = jax.block_until_ready(adabn_blocks_forward(
        x, blocks_params, CLASS_ID, samples_per_step=4))
    rel = float(jnp.max(jnp.abs(out_bf16 - ref)) / (jnp.max(jnp.abs(ref)) + 1e-6))
    assert rel < 5e-2, f"bf16 max rel-to-peak err = {rel}"

    print("KERNEL_OK")
</pallas_src>

<mosaic_0001>
module attributes {stable_mosaic.version = 11 : i64} {
  func.func @_adabn_chain_kernel(%arg0: i32, %arg1: memref<64x512xf32, #tpu.memory_space<vmem>>, %arg2: memref<2x64x192xf32, #tpu.memory_space<vmem>>, %arg3: memref<2x64x1xf32, #tpu.memory_space<vmem>>, %arg4: memref<2x64x192xf32, #tpu.memory_space<vmem>>, %arg5: memref<2x64x1xf32, #tpu.memory_space<vmem>>, %arg6: memref<64x512xf32, #tpu.memory_space<vmem>>) attributes {dimension_semantics = [#tpu.dimension_semantics<parallel>], iteration_bounds = array<i64: 2>, scalar_prefetch = 0 : i64, scratch_operands = 0 : i64, tpu.core_type = #tpu.core_type<tc>, window_params = [{transform_indices = @transform_0, window_bounds = array<i64: 64, 512>}, {pipeline_mode = #tpu.pipeline_mode<synchronous>, transform_indices = @transform_1, window_bounds = array<i64: 2, 64, 192>}, {pipeline_mode = #tpu.pipeline_mode<synchronous>, transform_indices = @transform_2, window_bounds = array<i64: 2, 64, 1>}, {pipeline_mode = #tpu.pipeline_mode<synchronous>, transform_indices = @transform_3, window_bounds = array<i64: 2, 64, 192>}, {pipeline_mode = #tpu.pipeline_mode<synchronous>, transform_indices = @transform_4, window_bounds = array<i64: 2, 64, 1>}, {transform_indices = @transform_5, window_bounds = array<i64: 64, 512>}]} {
    %0 = tpu.iota {dimensions = array<i32: 1>} : vector<1x512xi32>
    %c128_i32 = arith.constant 128 : i32
    %c0_i32 = arith.constant 0 : i32
    %1 = arith.cmpi eq, %c128_i32, %c0_i32 : i32
    %c1_i32 = arith.constant 1 : i32
    %2 = arith.select %1, %c1_i32, %c128_i32 : i32
    %3 = vector.broadcast %2 : i32 to vector<1x512xi32>
    %4 = arith.remsi %0, %3 : vector<1x512xi32>
    %c0_i32_0 = arith.constant 0 : i32
    %5 = vector.broadcast %c0_i32_0 : i32 to vector<1x512xi32>
    %6 = arith.cmpi ne, %4, %5 : vector<1x512xi32>
    %c0_i32_1 = arith.constant 0 : i32
    %7 = vector.broadcast %c0_i32_1 : i32 to vector<1x512xi32>
    %8 = arith.cmpi slt, %4, %7 : vector<1x512xi32>
    %c0_i32_2 = arith.constant 0 : i32
    %9 = arith.cmpi slt, %2, %c0_i32_2 : i32
    %10 = vector.broadcast %9 : i1 to vector<1x512xi1>
    %11 = vector.broadcast %10 : vector<1x512xi1> to vector<1x512xi1>
    %12 = arith.xori %8, %11 : vector<1x512xi1>
    %13 = arith.andi %12, %6 : vector<1x512xi1>
    %14 = vector.broadcast %2 : i32 to vector<1x512xi32>
    %15 = arith.addi %4, %14 : vector<1x512xi32>
    %16 = arith.select %13, %15, %4 : vector<1x512xi1>, vector<1x512xi32>
    %c0_i32_3 = arith.constant 0 : i32
    %17 = vector.broadcast %c0_i32_3 : i32 to vector<1x512xi32>
    %18 = arith.cmpi eq, %16, %17 : vector<1x512xi32>
    %19 = vector.shape_cast %18 : vector<1x512xi1> to vector<1x512xi1>
    %20 = vector.broadcast %19 : vector<1x512xi1> to vector<64x512xi1>
    %c127_i32 = arith.constant 127 : i32
    %21 = vector.broadcast %c127_i32 : i32 to vector<1x512xi32>
    %22 = arith.cmpi eq, %16, %21 : vector<1x512xi32>
    %23 = vector.shape_cast %22 : vector<1x512xi1> to vector<1x512xi1>
    %24 = vector.broadcast %23 : vector<1x512xi1> to vector<64x512xi1>
    %c0 = arith.constant 0 : index
    %c0_4 = arith.constant 0 : index
    %25 = vector.load %arg1[%c0, %c0_4] : memref<64x512xf32, #tpu.memory_space<vmem>>, vector<64x512xf32>
    %c0_5 = arith.constant 0 : index
    %c0_6 = arith.constant 0 : index
    %c0_7 = arith.constant 0 : index
    %26 = vector.load %arg2[%c0_5, %c0_6, %c0_7] : memref<2x64x192xf32, #tpu.memory_space<vmem>>, vector<1x64x192xf32>
    %27 = vector.shape_cast %26 : vector<1x64x192xf32> to vector<64x192xf32>
    %c1_i32_8 = arith.constant 1 : i32
    %28 = tpu.dynamic_rotate %25 by %c1_i32_8 dim 1 : vector<64x512xf32>, i32 -> vector<64x512xf32>
    %c511_i32 = arith.constant 511 : i32
    %29 = tpu.dynamic_rotate %25 by %c511_i32 dim 1 : vector<64x512xf32>, i32 -> vector<64x512xf32>
    %c384_i32 = arith.constant 384 : i32
    %30 = tpu.dynamic_rotate %28 by %c384_i32 dim 1 : vector<64x512xf32>, i32 -> vector<64x512xf32>
    %c128_i32_9 = arith.constant 128 : i32
    %31 = tpu.dynamic_rotate %29 by %c128_i32_9 dim 1 : vector<64x512xf32>, i32 -> vector<64x512xf32>
    %32 = arith.select %20, %30, %28 : vector<64x512xi1>, vector<64x512xf32>
    %33 = arith.select %24, %31, %29 : vector<64x512xi1>, vector<64x512xf32>
    %34 = tpu.concatenate %32, %25, %33 in 0 : vector<64x512xf32>, vector<64x512xf32>, vector<64x512xf32> -> vector<192x512xf32>
    %cst = arith.constant dense<0.000000e+00> : vector<64x512xf32>
    %35 = tpu.matmul %27, %34, %cst {dimension_numbers = #tpu.dot_dimension_numbers<[1], [0], [0], [1], [0, 0, 1, 1], [], []>} : vector<64x192xf32>, vector<192x512xf32>, vector<64x512xf32> -> vector<64x512xf32>
    %c0_10 = arith.constant 0 : index
    %c0_11 = arith.constant 0 : index
    %c0_12 = arith.constant 0 : index
    %36 = vector.load %arg3[%c0_10, %c0_11, %c0_12] : memref<2x64x1xf32, #tpu.memory_space<vmem>>, vector<1x64x1xf32>
    %37 = vector.shape_cast %36 : vector<1x64x1xf32> to vector<64x1xf32>
    %38 = vector.broadcast %37 : vector<64x1xf32> to vector<64x512xf32>
    %39 = arith.addf %35, %38 : vector<64x512xf32>
    %cst_13 = arith.constant 0.000000e+00 : f32
    %40 = vector.broadcast %cst_13 : f32 to vector<64x512xf32>
    %41 = arith.maximumf %39, %40 : vector<64x512xf32>
    %c0_14 = arith.constant 0 : index
    %c0_15 = arith.constant 0 : index
    %c0_16 = arith.constant 0 : index
    %42 = vector.load %arg4[%c0_14, %c0_15, %c0_16] : memref<2x64x192xf32, #tpu.memory_space<vmem>>, vector<1x64x192xf32>
    %43 = vector.shape_cast %42 : vector<1x64x192xf32> to vector<64x192xf32>
    %c1_i32_17 = arith.constant 1 : i32
    %44 = tpu.dynamic_rotate %41 by %c1_i32_17 dim 1 : vector<64x512xf32>, i32 -> vector<64x512xf32>
    %c511_i32_18 = arith.constant 511 : i32
    %45 = tpu.dynamic_rotate %41 by %c511_i32_18 dim 1 : vector<64x512xf32>, i32 -> vector<64x512xf32>
    %c384_i32_19 = arith.constant 384 : i32
    %46 = tpu.dynamic_rotate %44 by %c384_i32_19 dim 1 : vector<64x512xf32>, i32 -> vector<64x512xf32>
    %c128_i32_20 = arith.constant 128 : i32
    %47 = tpu.dynamic_rotate %45 by %c128_i32_20 dim 1 : vector<64x512xf32>, i32 -> vector<64x512xf32>
    %48 = arith.select %20, %46, %44 : vector<64x512xi1>, vector<64x512xf32>
    %49 = arith.select %24, %47, %45 : vector<64x512xi1>, vector<64x512xf32>
    %50 = tpu.concatenate %48, %41, %49 in 0 : vector<64x512xf32>, vector<64x512xf32>, vector<64x512xf32> -> vector<192x512xf32>
    %cst_21 = arith.constant dense<0.000000e+00> : vector<64x512xf32>
    %51 = tpu.matmul %43, %50, %cst_21 {dimension_numbers = #tpu.dot_dimension_numbers<[1], [0], [0], [1], [0, 0, 1, 1], [], []>} : vector<64x192xf32>, vector<192x512xf32>, vector<64x512xf32> -> vector<64x512xf32>
    %c0_22 = arith.constant 0 : index
    %c0_23 = arith.constant 0 : index
    %c0_24 = arith.constant 0 : index
    %52 = vector.load %arg5[%c0_22, %c0_23, %c0_24] : memref<2x64x1xf32, #tpu.memory_space<vmem>>, vector<1x64x1xf32>
    %53 = vector.shape_cast %52 : vector<1x64x1xf32> to vector<64x1xf32>
    %54 = vector.broadcast %53 : vector<64x1xf32> to vector<64x512xf32>
    %55 = arith.addf %51, %54 : vector<64x512xf32>
    %56 = arith.addf %55, %25 : vector<64x512xf32>
    %cst_25 = arith.constant 0.000000e+00 : f32
    %57 = vector.broadcast %cst_25 : f32 to vector<64x512xf32>
    %58 = arith.maximumf %56, %57 : vector<64x512xf32>
    %c1 = arith.constant 1 : index
    %c0_26 = arith.constant 0 : index
    %c0_27 = arith.constant 0 : index
    %59 = vector.load %arg2[%c1, %c0_26, %c0_27] : memref<2x64x192xf32, #tpu.memory_space<vmem>>, vector<1x64x192xf32>
    %60 = vector.shape_cast %59 : vector<1x64x192xf32> to vector<64x192xf32>
    %c1_i32_28 = arith.constant 1 : i32
    %61 = tpu.dynamic_rotate %58 by %c1_i32_28 dim 1 : vector<64x512xf32>, i32 -> vector<64x512xf32>
    %c511_i32_29 = arith.constant 511 : i32
    %62 = tpu.dynamic_rotate %58 by %c511_i32_29 dim 1 : vector<64x512xf32>, i32 -> vector<64x512xf32>
    %c384_i32_30 = arith.constant 384 : i32
    %63 = tpu.dynamic_rotate %61 by %c384_i32_30 dim 1 : vector<64x512xf32>, i32 -> vector<64x512xf32>
    %c128_i32_31 = arith.constant 128 : i32
    %64 = tpu.dynamic_rotate %62 by %c128_i32_31 dim 1 : vector<64x512xf32>, i32 -> vector<64x512xf32>
    %65 = arith.select %20, %63, %61 : vector<64x512xi1>, vector<64x512xf32>
    %66 = arith.select %24, %64, %62 : vector<64x512xi1>, vector<64x512xf32>
    %67 = tpu.concatenate %65, %58, %66 in 0 : vector<64x512xf32>, vector<64x512xf32>, vector<64x512xf32> -> vector<192x512xf32>
    %cst_32 = arith.constant dense<0.000000e+00> : vector<64x512xf32>
    %68 = tpu.matmul %60, %67, %cst_32 {dimension_numbers = #tpu.dot_dimension_numbers<[1], [0], [0], [1], [0, 0, 1, 1], [], []>} : vector<64x192xf32>, vector<192x512xf32>, vector<64x512xf32> -> vector<64x512xf32>
    %c1_33 = arith.constant 1 : index
    %c0_34 = arith.constant 0 : index
    %c0_35 = arith.constant 0 : index
    %69 = vector.load %arg3[%c1_33, %c0_34, %c0_35] : memref<2x64x1xf32, #tpu.memory_space<vmem>>, vector<1x64x1xf32>
    %70 = vector.shape_cast %69 : vector<1x64x1xf32> to vector<64x1xf32>
    %71 = vector.broadcast %70 : vector<64x1xf32> to vector<64x512xf32>
    %72 = arith.addf %68, %71 : vector<64x512xf32>
    %cst_36 = arith.constant 0.000000e+00 : f32
    %73 = vector.broadcast %cst_36 : f32 to vector<64x512xf32>
    %74 = arith.maximumf %72, %73 : vector<64x512xf32>
    %c1_37 = arith.constant 1 : index
    %c0_38 = arith.constant 0 : index
    %c0_39 = arith.constant 0 : index
    %75 = vector.load %arg4[%c1_37, %c0_38, %c0_39] : memref<2x64x192xf32, #tpu.memory_space<vmem>>, vector<1x64x192xf32>
    %76 = vector.shape_cast %75 : vector<1x64x192xf32> to vector<64x192xf32>
    %c1_i32_40 = arith.constant 1 : i32
    %77 = tpu.dynamic_rotate %74 by %c1_i32_40 dim 1 : vector<64x512xf32>, i32 -> vector<64x512xf32>
    %c511_i32_41 = arith.constant 511 : i32
    %78 = tpu.dynamic_rotate %74 by %c511_i32_41 dim 1 : vector<64x512xf32>, i32 -> vector<64x512xf32>
    %c384_i32_42 = arith.constant 384 : i32
    %79 = tpu.dynamic_rotate %77 by %c384_i32_42 dim 1 : vector<64x512xf32>, i32 -> vector<64x512xf32>
    %c128_i32_43 = arith.constant 128 : i32
    %80 = tpu.dynamic_rotate %78 by %c128_i32_43 dim 1 : vector<64x512xf32>, i32 -> vector<64x512xf32>
    %81 = arith.select %20, %79, %77 : vector<64x512xi1>, vector<64x512xf32>
    %82 = arith.select %24, %80, %78 : vector<64x512xi1>, vector<64x512xf32>
    %83 = tpu.concatenate %81, %74, %82 in 0 : vector<64x512xf32>, vector<64x512xf32>, vector<64x512xf32> -> vector<192x512xf32>
    %cst_44 = arith.constant dense<0.000000e+00> : vector<64x512xf32>
    %84 = tpu.matmul %76, %83, %cst_44 {dimension_numbers = #tpu.dot_dimension_numbers<[1], [0], [0], [1], [0, 0, 1, 1], [], []>} : vector<64x192xf32>, vector<192x512xf32>, vector<64x512xf32> -> vector<64x512xf32>
    %c1_45 = arith.constant 1 : index
    %c0_46 = arith.constant 0 : index
    %c0_47 = arith.constant 0 : index
    %85 = vector.load %arg5[%c1_45, %c0_46, %c0_47] : memref<2x64x1xf32, #tpu.memory_space<vmem>>, vector<1x64x1xf32>
    %86 = vector.shape_cast %85 : vector<1x64x1xf32> to vector<64x1xf32>
    %87 = vector.broadcast %86 : vector<64x1xf32> to vector<64x512xf32>
    %88 = arith.addf %84, %87 : vector<64x512xf32>
    %89 = arith.addf %88, %58 : vector<64x512xf32>
    %cst_48 = arith.constant 0.000000e+00 : f32
    %90 = vector.broadcast %cst_48 : f32 to vector<64x512xf32>
    %91 = arith.maximumf %89, %90 : vector<64x512xf32>
    %c0_49 = arith.constant 0 : index
    %c0_50 = arith.constant 0 : index
    %92 = vector.load %arg6[%c0_49, %c0_50] : memref<64x512xf32, #tpu.memory_space<vmem>>, vector<64x512xf32>
    tpu.vector_store %arg6[%c0_49, %c0_50], %91 {strides = array<i32>} : memref<64x512xf32, #tpu.memory_space<vmem>>, vector<64x512xf32>,
    return
  }
  func.func @transform_0(%arg0: i32) -> (i32, i32) {
    %c0_i32 = arith.constant 0 : i32
    %c0_i32_0 = arith.constant 0 : i32
    return %c0_i32, %arg0 : i32, i32
  }
  func.func @transform_1(%arg0: i32) -> (i32, i32, i32) {
    %c0_i32 = arith.constant 0 : i32
    %c0_i32_0 = arith.constant 0 : i32
    %c0_i32_1 = arith.constant 0 : i32
    %c0_i32_2 = arith.constant 0 : i32
    return %c0_i32, %c0_i32_0, %c0_i32_1 : i32, i32, i32
  }
  func.func @transform_2(%arg0: i32) -> (i32, i32, i32) {
    %c0_i32 = arith.constant 0 : i32
    %c0_i32_0 = arith.constant 0 : i32
    %c0_i32_1 = arith.constant 0 : i32
    %c0_i32_2 = arith.constant 0 : i32
    return %c0_i32, %c0_i32_0, %c0_i32_1 : i32, i32, i32
  }
  func.func @transform_3(%arg0: i32) -> (i32, i32, i32) {
    %c0_i32 = arith.constant 0 : i32
    %c0_i32_0 = arith.constant 0 : i32
    %c0_i32_1 = arith.constant 0 : i32
    %c0_i32_2 = arith.constant 0 : i32
    return %c0_i32, %c0_i32_0, %c0_i32_1 : i32, i32, i32
  }
  func.func @transform_4(%arg0: i32) -> (i32, i32, i32) {
    %c0_i32 = arith.constant 0 : i32
    %c0_i32_0 = arith.constant 0 : i32
    %c0_i32_1 = arith.constant 0 : i32
    %c0_i32_2 = arith.constant 0 : i32
    return %c0_i32, %c0_i32_0, %c0_i32_1 : i32, i32, i32
  }
  func.func @transform_5(%arg0: i32) -> (i32, i32) {
    %c0_i32 = arith.constant 0 : i32
    %c0_i32_0 = arith.constant 0 : i32
    return %c0_i32, %arg0 : i32, i32
  }
}

</mosaic_0001>

<llo_original>
// kernel: tpu_custom_call.1
$region0: #{tpu_custom_call.1}
  #allocation0 [shape = 'u32[]', space=smem, size = 0x4, offset = 0x4, fixed_abs, tag = 'smem constant byte address 0x4 - core index']
  #allocation1 [shape = 'u32[72,128]{1,0:T(1,128)}', space=vmem, size = 0x9000, scoped, tag = 'internal scratch']
  %s0 = inlined_call_operand.hbm [shape: f32[64,1024], index: 0, kind: input, shape index: {}]
  %s1 = inlined_call_operand.vmem [shape: f32[2,64,192], index: 1, kind: input, shape index: {}]
  %s2 = inlined_call_operand.vmem [shape: f32[2,64,1], index: 2, kind: input, shape index: {}]
  %s3 = inlined_call_operand.hbm [shape: f32[2,64,192], index: 3, kind: input, shape index: {}]
  %s4 = inlined_call_operand.vmem [shape: f32[2,64,1], index: 4, kind: input, shape index: {}]
  %s5 = inlined_call_operand.hbm [shape: f32[64,1024], index: 5, kind: output, shape index: {}]
  %s6 = sld [smem:[#allocation0]]
  $region61: #{tpu_custom_call.1} parent=0
    _
  %s8 = ssub.s32 1, %s6
  %s9 = scalar_select 0, %s8, %s6
  $region1: #{tpu_custom_call.1} parent=0
    #allocation2 [shape = 'u8[262144]{0}', space=vmem, size = 0x40000, scoped, tag = 'input window, operand 0']
    #allocation3 [shape = 's32[2]{0}', space=sflag, size = 0x8, scoped, tag = 'scoped memory for tpu_custom_call.1']
    #allocation4 [shape = 's32[2]{0}', space=sflag, size = 0x8, scoped, tag = 'scoped memory for tpu_custom_call.1']
    #allocation5 [shape = 'u8[131072]{0}', space=vmem, size = 0x20000, scoped, tag = 'input window, operand 3, single buffered']
    #allocation6 [shape = 's32[1]{0}', space=sflag, size = 0x4, scoped, tag = 'scoped memory for tpu_custom_call.1']
    #allocation7 [shape = 'u8[262144]{0}', space=vmem, size = 0x40000, scoped, tag = 'output window, operand 0']
    %10 = vsyncpa [#allocation3], 0
    %s11 = scalar_lea.sflag [#allocation3], 1
    %12 = vsyncpa %s11, 0
    %13 = vsyncpa [#allocation6], 0
    %14 = vsyncpa [#allocation4], 0
    %s15 = scalar_lea.sflag [#allocation4], 1
    %16 = vsyncpa %s15, 0
    loop: start=0, step=1, limit=4
    $region2: #{tpu_custom_call.1} parent=1 // loop_pre_header
      _
    $region3: #{tpu_custom_call.1} parent=1 // loop_header
      %s18 = sphi 0, %s22
      %p19 = scmp.ge.s32.totalorder %s18, 4
      %s28 = sphi 0, %s30
      %s31 = sphi 0, %s28
      %s32 = sphi 0, %s31
      %s48 = sphi 0, %s32
      %s52 = sphi 0, %s52
      %s54 = sphi 0, %s52
      %s55 = sphi 0, %s54
      %s69 = sphi 0, %s55
      %s73 = sphi 0, %s73
      %s75 = sphi 0, %s73
      %s76 = sphi 0, %s75
      %s90 = sphi 0, %s76
      %s94 = sphi 0, %s94
      %s96 = sphi 0, %s94
      %s97 = sphi 0, %s96
      %s111 = sphi 0, %s97
      %s115 = sphi 0, %s115
      %s117 = sphi 0, %s115
      %s118 = sphi 0, %s117
      %s132 = sphi 0, %s118
      %s138 = sphi 0, %s140
      %s141 = sphi 0, %s138
      %s142 = sphi 0, %s141
      %s158 = sphi 0, %s142
    $region4: #{tpu_custom_call.1} parent=1 // loop_header_branch
      %21 = sbr.rel (%p19) target = $region8
    $region5: #{tpu_custom_call.1} parent=1 // loop_body
      %s23 = ssub.s32 %s18, 1
      %s24 = ssub.s32 %s18, 2
      %s25 = sadd.s32 %s18, 1
      %s26 = ssub.s32 %s18, %s25
      %p27 = scmp.eq.s32.totalorder %s26, 0
      %s29 = sadd.s32 %s28, 1
      %s30 = scalar_select %p27, %s28, %s29
      %p33 = pneg %p27
      %p34 = scmp.eq.s32.totalorder %s18, 1
      %p35 = por %p33, %p34
      %p36 = scmp.ne.s32.totalorder %s28, %s31
      %p37 = scmp.eq.s32.totalorder %s18, 0
      %p38 = por %p36, %p37
      %p39 = scmp.ne.s32.totalorder %s28, %s31
      %p40 = scmp.eq.s32.totalorder %s23, 1
      %p41 = por %p39, %p40
      %p42 = scmp.ne.s32.totalorder %s31, %s32
      %p43 = scmp.eq.s32.totalorder %s23, 0
      %p44 = por %p42, %p43
      %p45 = scmp.ne.s32.totalorder %s31, %s32
      %p46 = scmp.eq.s32.totalorder %s24, 1
      %p47 = por %p45, %p46
      %p49 = scmp.ne.s32.totalorder %s32, %s48
      %p50 = scmp.eq.s32.totalorder %s24, 0
      %p51 = por %p49, %p50
      %s53 = sadd.s32 %s52, 1
      %p56 = scmp.eq.s32.totalorder %s18, 1
      %p57 = scmp.ne.s32.totalorder %s52, %s54
      %p58 = scmp.eq.s32.totalorder %s18, 0
      %p59 = por %p57, %p58
      %p60 = scmp.ne.s32.totalorder %s52, %s54
      %p61 = scmp.eq.s32.totalorder %s23, 1
      %p62 = por %p60, %p61
      %p63 = scmp.ne.s32.totalorder %s54, %s55
      %p64 = scmp.eq.s32.totalorder %s23, 0
      %p65 = por %p63, %p64
      %p66 = scmp.ne.s32.totalorder %s54, %s55
      %p67 = scmp.eq.s32.totalorder %s24, 1
      %p68 = por %p66, %p67
      %p70 = scmp.ne.s32.totalorder %s55, %s69
      %p71 = scmp.eq.s32.totalorder %s24, 0
      %p72 = por %p70, %p71
      %s74 = sadd.s32 %s73, 1
      %p77 = scmp.eq.s32.totalorder %s18, 1
      %p78 = scmp.ne.s32.totalorder %s73, %s75
      %p79 = scmp.eq.s32.totalorder %s18, 0
      %p80 = por %p78, %p79
      %p81 = scmp.ne.s32.totalorder %s73, %s75
      %p82 = scmp.eq.s32.totalorder %s23, 1
      %p83 = por %p81, %p82
      %p84 = scmp.ne.s32.totalorder %s75, %s76
      %p85 = scmp.eq.s32.totalorder %s23, 0
      %p86 = por %p84, %p85
      %p87 = scmp.ne.s32.totalorder %s75, %s76
      %p88 = scmp.eq.s32.totalorder %s24, 1
      %p89 = por %p87, %p88
      %p91 = scmp.ne.s32.totalorder %s76, %s90
      %p92 = scmp.eq.s32.totalorder %s24, 0
      %p93 = por %p91, %p92
      %s95 = sadd.s32 %s94, 1
      %p98 = scmp.eq.s32.totalorder %s18, 1
      %p99 = scmp.ne.s32.totalorder %s94, %s96
      %p100 = scmp.eq.s32.totalorder %s18, 0
      %p101 = por %p99, %p100
      %p102 = scmp.ne.s32.totalorder %s94, %s96
      %p103 = scmp.eq.s32.totalorder %s23, 1
      %p104 = por %p102, %p103
      %p105 = scmp.ne.s32.totalorder %s96, %s97
      %p106 = scmp.eq.s32.totalorder %s23, 0
      %p107 = por %p105, %p106
      %p108 = scmp.ne.s32.totalorder %s96, %s97
      %p109 = scmp.eq.s32.totalorder %s24, 1
      %p110 = por %p108, %p109
      %p112 = scmp.ne.s32.totalorder %s97, %s111
      %p113 = scmp.eq.s32.totalorder %s24, 0
      %p114 = por %p112, %p113
      %s116 = sadd.s32 %s115, 1
      %p119 = scmp.eq.s32.totalorder %s18, 1
      %p120 = scmp.ne.s32.totalorder %s115, %s117
      %p121 = scmp.eq.s32.totalorder %s18, 0
      %p122 = por %p120, %p121
      %p123 = scmp.ne.s32.totalorder %s115, %s117
      %p124 = scmp.eq.s32.totalorder %s23, 1
      %p125 = por %p123, %p124
      %p126 = scmp.ne.s32.totalorder %s117, %s118
      %p127 = scmp.eq.s32.totalorder %s23, 0
      %p128 = por %p126, %p127
      %p129 = scmp.ne.s32.totalorder %s117, %s118
      %p130 = scmp.eq.s32.totalorder %s24, 1
      %p131 = por %p129, %p130
      %p133 = scmp.ne.s32.totalorder %s118, %s132
      %p134 = scmp.eq.s32.totalorder %s24, 0
      %p135 = por %p133, %p134
      %s136 = ssub.s32 %s18, %s25
      %p137 = scmp.eq.s32.totalorder %s136, 0
      %s139 = sadd.s32 %s138, 1
      %s140 = scalar_select %p137, %s138, %s139
      %p143 = pneg %p137
      %p144 = scmp.eq.s32.totalorder %s18, 1
      %p145 = por %p143, %p144
      %p146 = scmp.ne.s32.totalorder %s138, %s141
      %p147 = scmp.eq.s32.totalorder %s18, 0
      %p148 = por %p146, %p147
      %p149 = scmp.ne.s32.totalorder %s138, %s141
      %p150 = scmp.eq.s32.totalorder %s23, 1
      %p151 = por %p149, %p150
      %p152 = scmp.ne.s32.totalorder %s141, %s142
      %p153 = scmp.eq.s32.totalorder %s23, 0
      %p154 = por %p152, %p153
      %p155 = scmp.ne.s32.totalorder %s141, %s142
      %p156 = scmp.eq.s32.totalorder %s24, 1
      %p157 = por %p155, %p156
      %p159 = scmp.ne.s32.totalorder %s142, %s158
      %p160 = scmp.eq.s32.totalorder %s24, 0
      %p161 = por %p159, %p160
      %p162 = scmp.le.s32.totalorder 1, %s18
      %p163 = scmp.lt.s32.totalorder %s18, 3
      %p164 = pnand %p162, %p163
      %p165 = pneg %p164
      // Predicated region
      $region9: #{tpu_custom_call.1} parent=5 // pred_check
        _
      $region10: #{tpu_custom_call.1} parent=5 // pred_check_branch
        %167 = sbr.rel (%p164) target = $region12
      $region11: #{tpu_custom_call.1} parent=5 // pred_region
        %s168 = ssub.s32 %s18, 1
        // Predicated region
        $region13: #{tpu_custom_call.1} parent=11 // pred_check
          %p169 = pneg %p65
        $region14: #{tpu_custom_call.1} parent=11 // pred_check_branch
          %171 = sbr.rel (%p169) target = $region16
        $region15: #{tpu_custom_call.1} parent=11 // pred_region
          _
        $region16: #{tpu_custom_call.1} parent=11 // pred_fallthru
          _
        // Predicated region
        $region17: #{tpu_custom_call.1} parent=11 // pred_check
          %p172 = pneg %p86
        $region18: #{tpu_custom_call.1} parent=11 // pred_check_branch
          %174 = sbr.rel (%p172) target = $region20
        $region19: #{tpu_custom_call.1} parent=11 // pred_region
          _
        $region20: #{tpu_custom_call.1} parent=11 // pred_fallthru
          _
        // Predicated region
        $region21: #{tpu_custom_call.1} parent=11 // pred_check
          %p175 = pneg %p107
        $region22: #{tpu_custom_call.1} parent=11 // pred_check_branch
          %177 = sbr.rel (%p175) target = $region24
        $region23: #{tpu_custom_call.1} parent=11 // pred_region
          %179 = vsyncadd [#allocation6], 0
          %s180 = sshll.u32 %s3, 4
          %s181 = int_to_ptr.hbm [resolvable:$true] %s180
          %s182 = sshll.u32 [#allocation5], 4
          %s183 = int_to_ptr.vmem [resolvable:$true] %s182
          %188 = dma.hbm_to_vmem [thread:$0]  %s181, 4096, %s183, [#allocation6], 256, 256, 16
        $region24: #{tpu_custom_call.1} parent=11 // pred_fallthru
          _
        // Predicated region
        $region25: #{tpu_custom_call.1} parent=11 // pred_check
          %p189 = pneg %p128
        $region26: #{tpu_custom_call.1} parent=11 // pred_check_branch
          %191 = sbr.rel (%p189) target = $region28
        $region27: #{tpu_custom_call.1} parent=11 // pred_region
          _
        $region28: #{tpu_custom_call.1} parent=11 // pred_fallthru
          _
      $region12: #{tpu_custom_call.1} parent=5 // pred_fallthru
        _
      %p192 = scmp.lt.s32.totalorder %s18, 2
      // Predicated region
      $region29: #{tpu_custom_call.1} parent=5 // pred_check
        %p193 = pneg %p192
      $region30: #{tpu_custom_call.1} parent=5 // pred_check_branch
        %195 = sbr.rel (%p193) target = $region32
      $region31: #{tpu_custom_call.1} parent=5 // pred_region
        // Predicated region
        $region33: #{tpu_custom_call.1} parent=31 // pred_check
          %p196 = pneg %p38
        $region34: #{tpu_custom_call.1} parent=31 // pred_check_branch
          %198 = sbr.rel (%p196) target = $region36
        $region35: #{tpu_custom_call.1} parent=31 // pred_region
          %s199 = sand.u32 %s28, 1
          %s200 = scalar_lea.sflag [#allocation3], %s199
          %s201 = sand.u32 %s28, 1
          %s202 = smul.addr %s201, 256
          %s203 = scalar_lea.vmem [#allocation2], %s202
          %s204 = smul.u32 4, %s18
          %206 = vsyncadd %s200, 0
          %s207 = smul.addr %s204, 8
          %s208 = scalar_lea.hbm %s0, %s207
          %s209 = sshll.u32 %s208, 4
          %s210 = int_to_ptr.hbm [resolvable:$true] %s209
          %s211 = sshll.u32 %s203, 4
          %s212 = int_to_ptr.vmem [resolvable:$true] %s211
          %217 = dma.hbm_to_vmem [thread:$0]  %s210, 4096, %s212, %s200, 1024, 512, 32
        $region36: #{tpu_custom_call.1} parent=31 // pred_fallthru
          _
      $region32: #{tpu_custom_call.1} parent=5 // pred_fallthru
        _
      %p218 = scmp.le.s32.totalorder 1, %s18
      %p219 = scmp.lt.s32.totalorder %s18, 3
      %p220 = pnand %p218, %p219
      %p221 = pneg %p220
      // Predicated region
      $region37: #{tpu_custom_call.1} parent=5 // pred_check
        _
      $region38: #{tpu_custom_call.1} parent=5 // pred_check_branch
        %223 = sbr.rel (%p220) target = $region40
      $region39: #{tpu_custom_call.1} parent=5 // pred_region
        %s224 = ssub.s32 %s18, 1
        %s225 = sand.u32 %s31, 1
        %s226 = scalar_lea.sflag [#allocation3], %s225
        %s227 = sand.u32 %s31, 1
        %s228 = smul.addr %s227, 256
        %s229 = scalar_lea.vmem [#allocation2], %s228
        // Predicated region
        $region41: #{tpu_custom_call.1} parent=39 // pred_check
          %p230 = pneg %p44
        $region42: #{tpu_custom_call.1} parent=39 // pred_check_branch
          %232 = sbr.rel (%p230) target = $region44
        $region43: #{tpu_custom_call.1} parent=39 // pred_region
          %234 = dma.done %s226, 4096
        $region44: #{tpu_custom_call.1} parent=39 // pred_fallthru
          _
        // Predicated region
        $region45: #{tpu_custom_call.1} parent=39 // pred_check
          %p235 = pneg %p107
        $region46: #{tpu_custom_call.1} parent=39 // pred_check_branch
          %237 = sbr.rel (%p235) target = $region48
        $region47: #{tpu_custom_call.1} parent=39 // pred_region
          %239 = dma.done [#allocation6], 4096
        $region48: #{tpu_custom_call.1} parent=39 // pred_fallthru
          _
        %s240 = sand.u32 %s31, 1
        %s241 = scalar_lea.sflag [#allocation3], %s240
        %s242 = sand.u32 %s31, 1
        %s243 = smul.addr %s242, 256
        %s244 = scalar_lea.vmem [#allocation2], %s243
        %p245 = pneg %p44
        %p246 = pneg %p41
        %p247 = pneg %p65
        %p248 = pneg %p62
        %p249 = pneg %p86
        %p250 = pneg %p83
        %p251 = pneg %p107
        %p252 = pneg %p104
        %p253 = pneg %p128
        %p254 = pneg %p125
        %p255 = pneg %p154
        %p256 = pneg %p151
        %s257 = sand.u32 %s141, 1
        %s258 = scalar_lea.sflag [#allocation4], %s257
        %s259 = sand.u32 %s141, 1
        %s260 = smul.addr %s259, 256
        %s261 = scalar_lea.vmem [#allocation7], %s260
        %s262 = smul.u32 4, %s23
        %s263 = smul.u32 4, %s23
        %v264 = vlaneseq
        %v265 = vand.u32 %v264, 127
        %v266 = vadd.s32 %v265, 128
        %v267 = vadd.s32 %v265, 256
        %v268 = vadd.s32 %v265, 384
        %vm269 = vcmp.lt.s32.totalorder %v265, 0
        %v270 = vsub.s32 0, %v265
        %v271 = vsel %vm269, %v270, %v265
        %v272 = vshrl.u32 %v271, 7
        %v273 = vand.u32 %v271, 127
        %v274 = vsub.s32 0, %v273
        %v275 = vsel %vm269, %v274, %v273
        %vm276 = vcmp.lt.s32.totalorder %v266, 0
        %v277 = vsub.s32 0, %v266
        %v278 = vsel %vm276, %v277, %v266
        %v279 = vshrl.u32 %v278, 7
        %v280 = vand.u32 %v278, 127
        %v281 = vsub.s32 0, %v280
        %v282 = vsel %vm276, %v281, %v280
        %vm283 = vcmp.lt.s32.totalorder %v267, 0
        %v284 = vsub.s32 0, %v267
        %v285 = vsel %vm283, %v284, %v267
        %v286 = vshrl.u32 %v285, 7
        %v287 = vand.u32 %v285, 127
        %v288 = vsub.s32 0, %v287
        %v289 = vsel %vm283, %v288, %v287
        %vm290 = vcmp.lt.s32.totalorder %v268, 0
        %v291 = vsub.s32 0, %v268
        %v292 = vsel %vm290, %v291, %v268
        %v293 = vshrl.u32 %v292, 7
        %v294 = vand.u32 %v292, 127
        %v295 = vsub.s32 0, %v294
        %v296 = vsel %vm290, %v295, %v294
        %vm297 = vcmp.ne.s32.totalorder %v275, 0
        %vm298 = vcmp.ne.s32.totalorder %v282, 0
        %vm299 = vcmp.ne.s32.totalorder %v289, 0
        %vm300 = vcmp.ne.s32.totalorder %v296, 0
        %vm301 = vcmp.lt.s32.totalorder %v275, 0
        %vm302 = vcmp.lt.s32.totalorder %v282, 0
        %vm303 = vcmp.lt.s32.totalorder %v289, 0
        %vm304 = vcmp.lt.s32.totalorder %v296, 0
        %vm305 = vmand %vm301, %vm297
        %vm306 = vmand %vm302, %vm298
        %vm307 = vmand %vm303, %vm299
        %vm308 = vmand %vm304, %vm300
        %v309 = vadd.s32 %v275, 128
        %v310 = vadd.s32 %v282, 128
        %v311 = vadd.s32 %v289, 128
        %v312 = vadd.s32 %v296, 128
        %v313 = vsel %vm305, %v309, %v275
        %v314 = vsel %vm306, %v310, %v282
        %v315 = vsel %vm307, %v311, %v289
        %v316 = vsel %vm308, %v312, %v296
        %vm317 = vcmp.eq.s32.totalorder %v313, 0
        %vm318 = vcmp.eq.s32.totalorder %v314, 0
        %vm319 = vcmp.eq.s32.totalorder %v315, 0
        %vm320 = vcmp.eq.s32.totalorder %v316, 0
        %v321 = vsel %vm317, 1, 0
        %v322 = vsel %vm318, 1, 0
        %v323 = vsel %vm319, 1, 0
        %v324 = vsel %vm320, 1, 0
        %vm325 = vcmp.eq.s32.totalorder %v321, 1
        %vm326 = vcmp.eq.s32.totalorder %v322, 1
        %vm327 = vcmp.eq.s32.totalorder %v323, 1
        %vm328 = vcmp.eq.s32.totalorder %v324, 1
        %vm329 = vcmp.eq.s32.totalorder %v313, 127
        %vm330 = vcmp.eq.s32.totalorder %v314, 127
        %vm331 = vcmp.eq.s32.totalorder %v315, 127
        %vm332 = vcmp.eq.s32.totalorder %v316, 127
        %v333 = vsel %vm329, 1, 0
        %v334 = vsel %vm330, 1, 0
        %v335 = vsel %vm331, 1, 0
        %v336 = vsel %vm332, 1, 0
        %vm337 = vcmp.eq.s32.totalorder %v333, 1
        %vm338 = vcmp.eq.s32.totalorder %v334, 1
        %vm339 = vcmp.eq.s32.totalorder %v335, 1
        %vm340 = vcmp.eq.s32.totalorder %v336, 1
        %v341 = vld [vmem:[%s229] sm:$0xff]
        %v342 = vld [vmem:[%s229 + $0x8] sm:$0xff]
        %v343 = vld [vmem:[%s229 + $0x10] sm:$0xff]
        %v344 = vld [vmem:[%s229 + $0x18] sm:$0xff]
        %v345 = vld [vmem:[%s229 + $0x20] sm:$0xff]
        %v346 = vld [vmem:[%s229 + $0x28] sm:$0xff]
        %v347 = vld [vmem:[%s229 + $0x30] sm:$0xff]
        %v348 = vld [vmem:[%s229 + $0x38] sm:$0xff]
        %v349 = vld [vmem:[%s229 + $0x40] sm:$0xff]
        %v350 = vld [vmem:[%s229 + $0x48] sm:$0xff]
        %v351 = vld [vmem:[%s229 + $0x50] sm:$0xff]
        %v352 = vld [vmem:[%s229 + $0x58] sm:$0xff]
        %v353 = vld [vmem:[%s229 + $0x60] sm:$0xff]
        %v354 = vld [vmem:[%s229 + $0x68] sm:$0xff]
        %v355 = vld [vmem:[%s229 + $0x70] sm:$0xff]
        %v356 = vld [vmem:[%s229 + $0x78] sm:$0xff]
        %v357 = vld [vmem:[%s229 + $0x80] sm:$0xff]
        %v358 = vld [vmem:[%s229 + $0x88] sm:$0xff]
        %v359 = vld [vmem:[%s229 + $0x90] sm:$0xff]
        %v360 = vld [vmem:[%s229 + $0x98] sm:$0xff]
        %v361 = vld [vmem:[%s229 + $0xa0] sm:$0xff]
        %v362 = vld [vmem:[%s229 + $0xa8] sm:$0xff]
        %v363 = vld [vmem:[%s229 + $0xb0] sm:$0xff]
        %v364 = vld [vmem:[%s229 + $0xb8] sm:$0xff]
        %v365 = vld [vmem:[%s229 + $0xc0] sm:$0xff]
        %v366 = vld [vmem:[%s229 + $0xc8] sm:$0xff]
        %v367 = vld [vmem:[%s229 + $0xd0] sm:$0xff]
        %v368 = vld [vmem:[%s229 + $0xd8] sm:$0xff]
        %v369 = vld [vmem:[%s229 + $0xe0] sm:$0xff]
        %v370 = vld [vmem:[%s229 + $0xe8] sm:$0xff]
        %v371 = vld [vmem:[%s229 + $0xf0] sm:$0xff]
        %v372 = vld [vmem:[%s229 + $0xf8] sm:$0xff]
        %v373 = vld [vmem:[%s1] sm:$0xff]
        %v374 = vld [vmem:[%s1 + $0x8] sm:$0xff]
        %v375 = vld [vmem:[%s1 + $0x10] sm:$0xff]
        %v376 = vld [vmem:[%s1 + $0x18] sm:$0xff]
        %v377 = vld [vmem:[%s1 + $0x20] sm:$0xff]
        %v378 = vld [vmem:[%s1 + $0x28] sm:$0xff]
        %v379 = vld [vmem:[%s1 + $0x30] sm:$0xff]
        %v380 = vld [vmem:[%s1 + $0x38] sm:$0xff]
        %v381 = vld [vmem:[%s1 + $0x40] sm:$0xff]
        %v382 = vld [vmem:[%s1 + $0x48] sm:$0xff]
        %v383 = vld [vmem:[%s1 + $0x50] sm:$0xff]
        %v384 = vld [vmem:[%s1 + $0x58] sm:$0xff]
        %v385 = vld [vmem:[%s1 + $0x60] sm:$0xff]
        %v386 = vld [vmem:[%s1 + $0x68] sm:$0xff]
        %v387 = vld [vmem:[%s1 + $0x70] sm:$0xff]
        %v388 = vld [vmem:[%s1 + $0x78] sm:$0xff]
        %389 = vrot.lane.b32.xlu0 %v341, 1
        %v390 = vpop.permute.xlu0 %389
        %391 = vrot.lane.b32.xlu0 %v345, 1
        %v392 = vpop.permute.xlu0 %391
        %393 = vrot.lane.b32.xlu0 %v349, 1
        %v394 = vpop.permute.xlu0 %393
        %395 = vrot.lane.b32.xlu0 %v353, 1
        %v396 = vpop.permute.xlu0 %395
        %397 = vrot.lane.b32.xlu0 %v357, 1
        %v398 = vpop.permute.xlu0 %397
        %399 = vrot.lane.b32.xlu0 %v361, 1
        %v400 = vpop.permute.xlu0 %399
        %401 = vrot.lane.b32.xlu0 %v365, 1
        %v402 = vpop.permute.xlu0 %401
        %403 = vrot.lane.b32.xlu0 %v369, 1
        %v404 = vpop.permute.xlu0 %403
        %405 = vrot.lane.b32.xlu0 %v342, 1
        %v406 = vpop.permute.xlu0 %405
        %407 = vrot.lane.b32.xlu0 %v346, 1
        %v408 = vpop.permute.xlu0 %407
        %409 = vrot.lane.b32.xlu0 %v350, 1
        %v410 = vpop.permute.xlu0 %409
        %411 = vrot.lane.b32.xlu0 %v354, 1
        %v412 = vpop.permute.xlu0 %411
        %413 = vrot.lane.b32.xlu0 %v358, 1
        %v414 = vpop.permute.xlu0 %413
        %415 = vrot.lane.b32.xlu0 %v362, 1
        %v416 = vpop.permute.xlu0 %415
        %417 = vrot.lane.b32.xlu0 %v366, 1
        %v418 = vpop.permute.xlu0 %417
        %419 = vrot.lane.b32.xlu0 %v370, 1
        %v420 = vpop.permute.xlu0 %419
        %421 = vrot.lane.b32.xlu0 %v343, 1
        %v422 = vpop.permute.xlu0 %421
        %423 = vrot.lane.b32.xlu0 %v347, 1
        %v424 = vpop.permute.xlu0 %423
        %425 = vrot.lane.b32.xlu0 %v351, 1
        %v426 = vpop.permute.xlu0 %425
        %427 = vrot.lane.b32.xlu0 %v355, 1
        %v428 = vpop.permute.xlu0 %427
        %429 = vrot.lane.b32.xlu0 %v359, 1
        %v430 = vpop.permute.xlu0 %429
        %431 = vrot.lane.b32.xlu0 %v363, 1
        %v432 = vpop.permute.xlu0 %431
        %433 = vrot.lane.b32.xlu0 %v367, 1
        %v434 = vpop.permute.xlu0 %433
        %435 = vrot.lane.b32.xlu0 %v371, 1
        %v436 = vpop.permute.xlu0 %435
        %437 = vrot.lane.b32.xlu0 %v344, 1
        %v438 = vpop.permute.xlu0 %437
        %439 = vrot.lane.b32.xlu0 %v348, 1
        %v440 = vpop.permute.xlu0 %439
        %441 = vrot.lane.b32.xlu0 %v352, 1
        %v442 = vpop.permute.xlu0 %441
        %443 = vrot.lane.b32.xlu0 %v356, 1
        %v444 = vpop.permute.xlu0 %443
        %445 = vrot.lane.b32.xlu0 %v360, 1
        %v446 = vpop.permute.xlu0 %445
        %447 = vrot.lane.b32.xlu0 %v364, 1
        %v448 = vpop.permute.xlu0 %447
        %449 = vrot.lane.b32.xlu0 %v368, 1
        %v450 = vpop.permute.xlu0 %449
        %451 = vrot.lane.b32.xlu0 %v372, 1
        %v452 = vpop.permute.xlu0 %451
        %vm453 = vcmp.lt.s32.totalorder %v265, 1
        %v454 = vsel %vm453, %v422, %v438
        %v455 = vsel %vm453, %v424, %v440
        %v456 = vsel %vm453, %v426, %v442
        %v457 = vsel %vm453, %v428, %v444
        %v458 = vsel %vm453, %v430, %v446
        %v459 = vsel %vm453, %v432, %v448
        %v460 = vsel %vm453, %v434, %v450
        %v461 = vsel %vm453, %v436, %v452
        %v462 = vsel %vm453, %v406, %v422
        %v463 = vsel %vm453, %v408, %v424
        %v464 = vsel %vm453, %v410, %v426
        %v465 = vsel %vm453, %v412, %v428
        %v466 = vsel %vm453, %v414, %v430
        %v467 = vsel %vm453, %v416, %v432
        %v468 = vsel %vm453, %v418, %v434
        %v469 = vsel %vm453, %v420, %v436
        %v470 = vsel %vm453, %v390, %v406
        %v471 = vsel %vm453, %v392, %v408
        %v472 = vsel %vm453, %v394, %v410
        %v473 = vsel %vm453, %v396, %v412
        %v474 = vsel %vm453, %v398, %v414
        %v475 = vsel %vm453, %v400, %v416
        %v476 = vsel %vm453, %v402, %v418
        %v477 = vsel %vm453, %v404, %v420
        %v478 = vsel %vm453, %v438, %v390
        %v479 = vsel %vm453, %v440, %v392
        %v480 = vsel %vm453, %v442, %v394
        %v481 = vsel %vm453, %v444, %v396
        %v482 = vsel %vm453, %v446, %v398
        %v483 = vsel %vm453, %v448, %v400
        %v484 = vsel %vm453, %v450, %v402
        %v485 = vsel %vm453, %v452, %v404
        %486 = vrot.lane.b32.xlu0 %v341, 127
        %v487 = vpop.permute.xlu0 %486
        %488 = vrot.lane.b32.xlu0 %v345, 127
        %v489 = vpop.permute.xlu0 %488
        %490 = vrot.lane.b32.xlu0 %v349, 127
        %v491 = vpop.permute.xlu0 %490
        %492 = vrot.lane.b32.xlu0 %v353, 127
        %v493 = vpop.permute.xlu0 %492
        %494 = vrot.lane.b32.xlu0 %v357, 127
        %v495 = vpop.permute.xlu0 %494
        %496 = vrot.lane.b32.xlu0 %v361, 127
        %v497 = vpop.permute.xlu0 %496
        %498 = vrot.lane.b32.xlu0 %v365, 127
        %v499 = vpop.permute.xlu0 %498
        %500 = vrot.lane.b32.xlu0 %v369, 127
        %v501 = vpop.permute.xlu0 %500
        %502 = vrot.lane.b32.xlu0 %v342, 127
        %v503 = vpop.permute.xlu0 %502
        %504 = vrot.lane.b32.xlu0 %v346, 127
        %v505 = vpop.permute.xlu0 %504
        %506 = vrot.lane.b32.xlu0 %v350, 127
        %v507 = vpop.permute.xlu0 %506
        %508 = vrot.lane.b32.xlu0 %v354, 127
        %v509 = vpop.permute.xlu0 %508
        %510 = vrot.lane.b32.xlu0 %v358, 127
        %v511 = vpop.permute.xlu0 %510
        %512 = vrot.lane.b32.xlu0 %v362, 127
        %v513 = vpop.permute.xlu0 %512
        %514 = vrot.lane.b32.xlu0 %v366, 127
        %v515 = vpop.permute.xlu0 %514
        %516 = vrot.lane.b32.xlu0 %v370, 127
        %v517 = vpop.permute.xlu0 %516
        %518 = vrot.lane.b32.xlu0 %v343, 127
        %v519 = vpop.permute.xlu0 %518
        %520 = vrot.lane.b32.xlu0 %v347, 127
        %v521 = vpop.permute.xlu0 %520
        %522 = vrot.lane.b32.xlu0 %v351, 127
        %v523 = vpop.permute.xlu0 %522
        %524 = vrot.lane.b32.xlu0 %v355, 127
        %v525 = vpop.permute.xlu0 %524
        %526 = vrot.lane.b32.xlu0 %v359, 127
        %v527 = vpop.permute.xlu0 %526
        %528 = vrot.lane.b32.xlu0 %v363, 127
        %v529 = vpop.permute.xlu0 %528
        %530 = vrot.lane.b32.xlu0 %v367, 127
        %v531 = vpop.permute.xlu0 %530
        %532 = vrot.lane.b32.xlu0 %v371, 127
        %v533 = vpop.permute.xlu0 %532
        %534 = vrot.lane.b32.xlu0 %v344, 127
        %v535 = vpop.permute.xlu0 %534
        %536 = vrot.lane.b32.xlu0 %v348, 127
        %v537 = vpop.permute.xlu0 %536
        %538 = vrot.lane.b32.xlu0 %v352, 127
        %v539 = vpop.permute.xlu0 %538
        %540 = vrot.lane.b32.xlu0 %v356, 127
        %v541 = vpop.permute.xlu0 %540
        %542 = vrot.lane.b32.xlu0 %v360, 127
        %v543 = vpop.permute.xlu0 %542
        %544 = vrot.lane.b32.xlu0 %v364, 127
        %v545 = vpop.permute.xlu0 %544
        %546 = vrot.lane.b32.xlu0 %v368, 127
        %v547 = vpop.permute.xlu0 %546
        %548 = vrot.lane.b32.xlu0 %v372, 127
        %v549 = vpop.permute.xlu0 %548
        %vm550 = vcmp.lt.s32.totalorder %v265, 127
        %v551 = vsel %vm550, %v519, %v535
        %v552 = vsel %vm550, %v521, %v537
        %v553 = vsel %vm550, %v523, %v539
        %v554 = vsel %vm550, %v525, %v541
        %v555 = vsel %vm550, %v527, %v543
        %v556 = vsel %vm550, %v529, %v545
        %v557 = vsel %vm550, %v531, %v547
        %v558 = vsel %vm550, %v533, %v549
        %v559 = vsel %vm550, %v503, %v519
        %v560 = vsel %vm550, %v505, %v521
        %v561 = vsel %vm550, %v507, %v523
        %v562 = vsel %vm550, %v509, %v525
        %v563 = vsel %vm550, %v511, %v527
        %v564 = vsel %vm550, %v513, %v529
        %v565 = vsel %vm550, %v515, %v531
        %v566 = vsel %vm550, %v517, %v533
        %v567 = vsel %vm550, %v487, %v503
        %v568 = vsel %vm550, %v489, %v505
        %v569 = vsel %vm550, %v491, %v507
        %v570 = vsel %vm550, %v493, %v509
        %v571 = vsel %vm550, %v495, %v511
        %v572 = vsel %vm550, %v497, %v513
        %v573 = vsel %vm550, %v499, %v515
        %v574 = vsel %vm550, %v501, %v517
        %v575 = vsel %vm550, %v535, %v487
        %v576 = vsel %vm550, %v537, %v489
        %v577 = vsel %vm550, %v539, %v491
        %v578 = vsel %vm550, %v541, %v493
        %v579 = vsel %vm550, %v543, %v495
        %v580 = vsel %vm550, %v545, %v497
        %v581 = vsel %vm550, %v547, %v499
        %v582 = vsel %vm550, %v549, %v501
        %v583 = vsel %vm325, %v470, %v478
        %v584 = vsel %vm326, %v462, %v470
        %v585 = vsel %vm327, %v454, %v462
        %v586 = vsel %vm328, %v478, %v454
        %v587 = vsel %vm325, %v471, %v479
        %v588 = vsel %vm326, %v463, %v471
        %v589 = vsel %vm327, %v455, %v463
        %v590 = vsel %vm328, %v479, %v455
        %v591 = vsel %vm325, %v472, %v480
        %v592 = vsel %vm326, %v464, %v472
        %v593 = vsel %vm327, %v456, %v464
        %v594 = vsel %vm328, %v480, %v456
        %v595 = vsel %vm325, %v473, %v481
        %v596 = vsel %vm326, %v465, %v473
        %v597 = vsel %vm327, %v457, %v465
        %v598 = vsel %vm328, %v481, %v457
        %v599 = vsel %vm325, %v474, %v482
        %v600 = vsel %vm326, %v466, %v474
        %v601 = vsel %vm327, %v458, %v466
        %v602 = vsel %vm328, %v482, %v458
        %v603 = vsel %vm325, %v475, %v483
        %v604 = vsel %vm326, %v467, %v475
        %v605 = vsel %vm327, %v459, %v467
        %v606 = vsel %vm328, %v483, %v459
        %v607 = vsel %vm325, %v476, %v484
        %v608 = vsel %vm326, %v468, %v476
        %v609 = vsel %vm327, %v460, %v468
        %v610 = vsel %vm328, %v484, %v460
        %v611 = vsel %vm325, %v477, %v485
        %v612 = vsel %vm326, %v469, %v477
        %v613 = vsel %vm327, %v461, %v469
        %v614 = vsel %vm328, %v485, %v461
        %v615 = vsel %vm337, %v575, %v567
        %v616 = vsel %vm338, %v567, %v559
        %v617 = vsel %vm339, %v559, %v551
        %v618 = vsel %vm340, %v551, %v575
        %v619 = vsel %vm337, %v576, %v568
        %v620 = vsel %vm338, %v568, %v560
        %v621 = vsel %vm339, %v560, %v552
        %v622 = vsel %vm340, %v552, %v576
        %v623 = vsel %vm337, %v577, %v569
        %v624 = vsel %vm338, %v569, %v561
        %v625 = vsel %vm339, %v561, %v553
        %v626 = vsel %vm340, %v553, %v577
        %v627 = vsel %vm337, %v578, %v570
        %v628 = vsel %vm338, %v570, %v562
        %v629 = vsel %vm339, %v562, %v554
        %v630 = vsel %vm340, %v554, %v578
        %v631 = vsel %vm337, %v579, %v571
        %v632 = vsel %vm338, %v571, %v563
        %v633 = vsel %vm339, %v563, %v555
        %v634 = vsel %vm340, %v555, %v579
        %v635 = vsel %vm337, %v580, %v572
        %v636 = vsel %vm338, %v572, %v564
        %v637 = vsel %vm339, %v564, %v556
        %v638 = vsel %vm340, %v556, %v580
        %v639 = vsel %vm337, %v581, %v573
        %v640 = vsel %vm338, %v573, %v565
        %v641 = vsel %vm339, %v565, %v557
        %v642 = vsel %vm340, %v557, %v581
        %v643 = vsel %vm337, %v582, %v574
        %v644 = vsel %vm338, %v574, %v566
        %v645 = vsel %vm339, %v566, %v558
        %v646 = vsel %vm340, %v558, %v582
        %v647 = vld [vmem:[%s2] sm:$0xff]
        %v648 = vld [vmem:[%s2 + $0x8] sm:$0xff]
        %v649 = vld [vmem:[%s2 + $0x10] sm:$0xff]
        %v650 = vld [vmem:[%s2 + $0x18] sm:$0xff]
        %v651 = vld [vmem:[%s2 + $0x20] sm:$0xff]
        %v652 = vld [vmem:[%s2 + $0x28] sm:$0xff]
        %v653 = vld [vmem:[%s2 + $0x30] sm:$0xff]
        %v654 = vld [vmem:[%s2 + $0x38] sm:$0xff]
        %656 = vset.pattern.permute.xlu0 0
        %657 = vperm.xlu0 %656, %v647
        %v658 = vpop.permute.xlu0 %657
        %661 = vset.pattern.permute.xlu0 0
        %662 = vperm.xlu0 %661, %v648
        %v663 = vpop.permute.xlu0 %662
        %666 = vset.pattern.permute.xlu0 0
        %667 = vperm.xlu0 %666, %v649
        %v668 = vpop.permute.xlu0 %667
        %671 = vset.pattern.permute.xlu0 0
        %672 = vperm.xlu0 %671, %v650
        %v673 = vpop.permute.xlu0 %672
        %676 = vset.pattern.permute.xlu0 0
        %677 = vperm.xlu0 %676, %v651
        %v678 = vpop.permute.xlu0 %677
        %681 = vset.pattern.permute.xlu0 0
        %682 = vperm.xlu0 %681, %v652
        %v683 = vpop.permute.xlu0 %682
        %686 = vset.pattern.permute.xlu0 0
        %687 = vperm.xlu0 %686, %v653
        %v688 = vpop.permute.xlu0 %687
        %691 = vset.pattern.permute.xlu0 0
        %692 = vperm.xlu0 %691, %v654
        %v693 = vpop.permute.xlu0 %692
        %vm695 = vcmask 523264
        %v697 = vsel %vm695, %v374, 0
        %v700 = vsel %vm695, %v376, 0
        %v703 = vsel %vm695, %v378, 0
        %v706 = vsel %vm695, %v380, 0
        %v709 = vsel %vm695, %v382, 0
        %v712 = vsel %vm695, %v384, 0
        %v715 = vsel %vm695, %v386, 0
        %v718 = vsel %vm695, %v388, 0
        %720 = vmatpush.msra.mxu0 %v369
        %721 = vmatpush.msra.mxu0 %v365
        %722 = vmatpush.msra.mxu0 %v361
        %723 = vmatpush.msra.mxu0 %v357
        %724 = vmatpush.msra.mxu0 %v353
        %725 = vmatpush.msra.mxu0 %v349
        %726 = vmatpush.msra.mxu0 %v345
        %727 = vmatpush.msra.mxu0 %v341
        %728 = vmatpush.msra.mxu0 %v611
        %729 = vmatpush.msra.mxu0 %v607
        %730 = vmatpush.msra.mxu0 %v603
        %731 = vmatpush.msra.mxu0 %v599
        %732 = vmatpush.msra.mxu0 %v595
        %733 = vmatpush.msra.mxu0 %v591
        %734 = vmatpush.msra.mxu0 %v587
        %735 = vmatpush.msra.mxu0 %v583
        %736 = vmatmul.f32.gmra.mxu0 %v373
        %v737 = vpop.f32.mrf.mxu0
        %v738 = vadd.f32 %v658, %v737
        %739 = vmatmul.f32.gmra.mxu0 %v375
        %v740 = vpop.f32.mrf.mxu0
        %v741 = vadd.f32 %v663, %v740
        %742 = vmatmul.f32.gmra.mxu0 %v377
        %v743 = vpop.f32.mrf.mxu0
        %v744 = vadd.f32 %v668, %v743
        %745 = vmatmul.f32.gmra.mxu0 %v379
        %v746 = vpop.f32.mrf.mxu0
        %v747 = vadd.f32 %v673, %v746
        %748 = vmatmul.f32.gmra.mxu0 %v381
        %v749 = vpop.f32.mrf.mxu0
        %v750 = vadd.f32 %v678, %v749
        %751 = vmatmul.f32.gmra.mxu0 %v383
        %v752 = vpop.f32.mrf.mxu0
        %v753 = vadd.f32 %v683, %v752
        %754 = vmatmul.f32.gmra.mxu0 %v385
        %v755 = vpop.f32.mrf.mxu0
        %v756 = vadd.f32 %v688, %v755
        %757 = vmatmul.f32.gmra.mxu0 %v387
        %v758 = vpop.f32.mrf.mxu0
        %v759 = vadd.f32 %v693, %v758
        %760 = vdwg.mxu0
        %761 = vmatpush.msra.mxu0 0.0
        %762 = vmatpush.msra.mxu0 0.0
        %763 = vmatpush.msra.mxu0 0.0
        %764 = vmatpush.msra.mxu0 0.0
        %765 = vmatpush.msra.mxu0 0.0
        %766 = vmatpush.msra.mxu0 0.0
        %767 = vmatpush.msra.mxu0 0.0
        %768 = vmatpush.msra.mxu0 0.0
        %769 = vmatpush.msra.mxu0 %v643
        %770 = vmatpush.msra.mxu0 %v639
        %771 = vmatpush.msra.mxu0 %v635
        %772 = vmatpush.msra.mxu0 %v631
        %773 = vmatpush.msra.mxu0 %v627
        %774 = vmatpush.msra.mxu0 %v623
        %775 = vmatpush.msra.mxu0 %v619
        %776 = vmatpush.msra.mxu0 %v615
        %777 = vmatmul.f32.gmra.mxu0 %v697
        %v778 = vpop.f32.mrf.mxu0
        %v779 = vadd.f32 %v738, %v778
        %780 = vmatmul.f32.gmra.mxu0 %v700
        %v781 = vpop.f32.mrf.mxu0
        %v782 = vadd.f32 %v741, %v781
        %783 = vmatmul.f32.gmra.mxu0 %v703
        %v784 = vpop.f32.mrf.mxu0
        %v785 = vadd.f32 %v744, %v784
        %786 = vmatmul.f32.gmra.mxu0 %v706
        %v787 = vpop.f32.mrf.mxu0
        %v788 = vadd.f32 %v747, %v787
        %789 = vmatmul.f32.gmra.mxu0 %v709
        %v790 = vpop.f32.mrf.mxu0
        %v791 = vadd.f32 %v750, %v790
        %792 = vmatmul.f32.gmra.mxu0 %v712
        %v793 = vpop.f32.mrf.mxu0
        %v794 = vadd.f32 %v753, %v793
        %795 = vmatmul.f32.gmra.mxu0 %v715
        %v796 = vpop.f32.mrf.mxu0
        %v797 = vadd.f32 %v756, %v796
        %798 = vmatmul.f32.gmra.mxu0 %v718
        %v799 = vpop.f32.mrf.mxu0
        %v800 = vadd.f32 %v759, %v799
        %801 = vdwg.mxu0
        %802 = vmatpush.msra.mxu0 %v370
        %803 = vmatpush.msra.mxu0 %v366
        %804 = vmatpush.msra.mxu0 %v362
        %805 = vmatpush.msra.mxu0 %v358
        %806 = vmatpush.msra.mxu0 %v354
        %807 = vmatpush.msra.mxu0 %v350
        %808 = vmatpush.msra.mxu0 %v346
        %809 = vmatpush.msra.mxu0 %v342
        %810 = vmatpush.msra.mxu0 %v612
        %811 = vmatpush.msra.mxu0 %v608
        %812 = vmatpush.msra.mxu0 %v604
        %813 = vmatpush.msra.mxu0 %v600
        %814 = vmatpush.msra.mxu0 %v596
        %815 = vmatpush.msra.mxu0 %v592
        %816 = vmatpush.msra.mxu0 %v588
        %817 = vmatpush.msra.mxu0 %v584
        %818 = vmatmul.f32.gmra.mxu0 %v373
        %v819 = vpop.f32.mrf.mxu0
        %v820 = vadd.f32 %v658, %v819
        %821 = vmatmul.f32.gmra.mxu0 %v375
        %v822 = vpop.f32.mrf.mxu0
        %v823 = vadd.f32 %v663, %v822
        %824 = vmatmul.f32.gmra.mxu0 %v377
        %v825 = vpop.f32.mrf.mxu0
        %v826 = vadd.f32 %v668, %v825
        %827 = vmatmul.f32.gmra.mxu0 %v379
        %v828 = vpop.f32.mrf.mxu0
        %v829 = vadd.f32 %v673, %v828
        %830 = vmatmul.f32.gmra.mxu0 %v381
        %v831 = vpop.f32.mrf.mxu0
        %v832 = vadd.f32 %v678, %v831
        %833 = vmatmul.f32.gmra.mxu0 %v383
        %v834 = vpop.f32.mrf.mxu0
        %v835 = vadd.f32 %v683, %v834
        %836 = vmatmul.f32.gmra.mxu0 %v385
        %v837 = vpop.f32.mrf.mxu0
        %v838 = vadd.f32 %v688, %v837
        %839 = vmatmul.f32.gmra.mxu0 %v387
        %v840 = vpop.f32.mrf.mxu0
        %v841 = vadd.f32 %v693, %v840
        %842 = vdwg.mxu0
        %843 = vmatpush.msra.mxu0 0.0
        %844 = vmatpush.msra.mxu0 0.0
        %845 = vmatpush.msra.mxu0 0.0
        %846 = vmatpush.msra.mxu0 0.0
        %847 = vmatpush.msra.mxu0 0.0
        %848 = vmatpush.msra.mxu0 0.0
        %849 = vmatpush.msra.mxu0 0.0
        %850 = vmatpush.msra.mxu0 0.0
        %851 = vmatpush.msra.mxu0 %v644
        %852 = vmatpush.msra.mxu0 %v640
        %853 = vmatpush.msra.mxu0 %v636
        %854 = vmatpush.msra.mxu0 %v632
        %855 = vmatpush.msra.mxu0 %v628
        %856 = vmatpush.msra.mxu0 %v624
        %857 = vmatpush.msra.mxu0 %v620
        %858 = vmatpush.msra.mxu0 %v616
        %859 = vmatmul.f32.gmra.mxu0 %v697
        %v860 = vpop.f32.mrf.mxu0
        %v861 = vadd.f32 %v820, %v860
        %862 = vmatmul.f32.gmra.mxu0 %v700
        %v863 = vpop.f32.mrf.mxu0
        %v864 = vadd.f32 %v823, %v863
        %865 = vmatmul.f32.gmra.mxu0 %v703
        %v866 = vpop.f32.mrf.mxu0
        %v867 = vadd.f32 %v826, %v866
        %868 = vmatmul.f32.gmra.mxu0 %v706
        %v869 = vpop.f32.mrf.mxu0
        %v870 = vadd.f32 %v829, %v869
        %871 = vmatmul.f32.gmra.mxu0 %v709
        %v872 = vpop.f32.mrf.mxu0
        %v873 = vadd.f32 %v832, %v872
        %874 = vmatmul.f32.gmra.mxu0 %v712
        %v875 = vpop.f32.mrf.mxu0
        %v876 = vadd.f32 %v835, %v875
        %877 = vmatmul.f32.gmra.mxu0 %v715
        %v878 = vpop.f32.mrf.mxu0
        %v879 = vadd.f32 %v838, %v878
        %880 = vmatmul.f32.gmra.mxu0 %v718
        %v881 = vpop.f32.mrf.mxu0
        %v882 = vadd.f32 %v841, %v881
        %883 = vdwg.mxu0
        %884 = vmatpush.msra.mxu0 %v371
        %885 = vmatpush.msra.mxu0 %v367
        %886 = vmatpush.msra.mxu0 %v363
        %887 = vmatpush.msra.mxu0 %v359
        %888 = vmatpush.msra.mxu0 %v355
        %889 = vmatpush.msra.mxu0 %v351
        %890 = vmatpush.msra.mxu0 %v347
        %891 = vmatpush.msra.mxu0 %v343
        %892 = vmatpush.msra.mxu0 %v613
        %893 = vmatpush.msra.mxu0 %v609
        %894 = vmatpush.msra.mxu0 %v605
        %895 = vmatpush.msra.mxu0 %v601
        %896 = vmatpush.msra.mxu0 %v597
        %897 = vmatpush.msra.mxu0 %v593
        %898 = vmatpush.msra.mxu0 %v589
        %899 = vmatpush.msra.mxu0 %v585
        %900 = vmatmul.f32.gmra.mxu0 %v373
        %v901 = vpop.f32.mrf.mxu0
        %v902 = vadd.f32 %v658, %v901
        %903 = vmatmul.f32.gmra.mxu0 %v375
        %v904 = vpop.f32.mrf.mxu0
        %v905 = vadd.f32 %v663, %v904
        %906 = vmatmul.f32.gmra.mxu0 %v377
        %v907 = vpop.f32.mrf.mxu0
        %v908 = vadd.f32 %v668, %v907
        %909 = vmatmul.f32.gmra.mxu0 %v379
        %v910 = vpop.f32.mrf.mxu0
        %v911 = vadd.f32 %v673, %v910
        %912 = vmatmul.f32.gmra.mxu0 %v381
        %v913 = vpop.f32.mrf.mxu0
        %v914 = vadd.f32 %v678, %v913
        %915 = vmatmul.f32.gmra.mxu0 %v383
        %v916 = vpop.f32.mrf.mxu0
        %v917 = vadd.f32 %v683, %v916
        %918 = vmatmul.f32.gmra.mxu0 %v385
        %v919 = vpop.f32.mrf.mxu0
        %v920 = vadd.f32 %v688, %v919
        %921 = vmatmul.f32.gmra.mxu0 %v387
        %v922 = vpop.f32.mrf.mxu0
        %v923 = vadd.f32 %v693, %v922
        %924 = vdwg.mxu0
        %925 = vmatpush.msra.mxu0 0.0
        %926 = vmatpush.msra.mxu0 0.0
        %927 = vmatpush.msra.mxu0 0.0
        %928 = vmatpush.msra.mxu0 0.0
        %929 = vmatpush.msra.mxu0 0.0
        %930 = vmatpush.msra.mxu0 0.0
        %931 = vmatpush.msra.mxu0 0.0
        %932 = vmatpush.msra.mxu0 0.0
        %933 = vmatpush.msra.mxu0 %v645
        %934 = vmatpush.msra.mxu0 %v641
        %935 = vmatpush.msra.mxu0 %v637
        %936 = vmatpush.msra.mxu0 %v633
        %937 = vmatpush.msra.mxu0 %v629
        %938 = vmatpush.msra.mxu0 %v625
        %939 = vmatpush.msra.mxu0 %v621
        %940 = vmatpush.msra.mxu0 %v617
        %941 = vmatmul.f32.gmra.mxu0 %v697
        %v942 = vpop.f32.mrf.mxu0
        %v943 = vadd.f32 %v902, %v942
        %944 = vmatmul.f32.gmra.mxu0 %v700
        %v945 = vpop.f32.mrf.mxu0
        %v946 = vadd.f32 %v905, %v945
        %947 = vmatmul.f32.gmra.mxu0 %v703
        %v948 = vpop.f32.mrf.mxu0
        %v949 = vadd.f32 %v908, %v948
        %950 = vmatmul.f32.gmra.mxu0 %v706
        %v951 = vpop.f32.mrf.mxu0
        %v952 = vadd.f32 %v911, %v951
        %953 = vmatmul.f32.gmra.mxu0 %v709
        %v954 = vpop.f32.mrf.mxu0
        %v955 = vadd.f32 %v914, %v954
        %956 = vmatmul.f32.gmra.mxu0 %v712
        %v957 = vpop.f32.mrf.mxu0
        %v958 = vadd.f32 %v917, %v957
        %959 = vmatmul.f32.gmra.mxu0 %v715
        %v960 = vpop.f32.mrf.mxu0
        %v961 = vadd.f32 %v920, %v960
        %962 = vmatmul.f32.gmra.mxu0 %v718
        %v963 = vpop.f32.mrf.mxu0
        %v964 = vadd.f32 %v923, %v963
        %965 = vdwg.mxu0
        %966 = vmatpush.msra.mxu0 %v372
        %967 = vmatpush.msra.mxu0 %v368
        %968 = vmatpush.msra.mxu0 %v364
        %969 = vmatpush.msra.mxu0 %v360
        %970 = vmatpush.msra.mxu0 %v356
        %971 = vmatpush.msra.mxu0 %v352
        %972 = vmatpush.msra.mxu0 %v348
        %973 = vmatpush.msra.mxu0 %v344
        %974 = vmatpush.msra.mxu0 %v614
        %975 = vmatpush.msra.mxu0 %v610
        %976 = vmatpush.msra.mxu0 %v606
        %977 = vmatpush.msra.mxu0 %v602
        %978 = vmatpush.msra.mxu0 %v598
        %979 = vmatpush.msra.mxu0 %v594
        %980 = vmatpush.msra.mxu0 %v590
        %981 = vmatpush.msra.mxu0 %v586
        %982 = vmatmul.f32.gmra.mxu0 %v373
        %v983 = vpop.f32.mrf.mxu0
        %v984 = vadd.f32 %v658, %v983
        %985 = vmatmul.f32.gmra.mxu0 %v375
        %v986 = vpop.f32.mrf.mxu0
        %v987 = vadd.f32 %v663, %v986
        %988 = vmatmul.f32.gmra.mxu0 %v377
        %v989 = vpop.f32.mrf.mxu0
        %v990 = vadd.f32 %v668, %v989
        %991 = vmatmul.f32.gmra.mxu0 %v379
        %v992 = vpop.f32.mrf.mxu0
        %v993 = vadd.f32 %v673, %v992
        %994 = vmatmul.f32.gmra.mxu0 %v381
        %v995 = vpop.f32.mrf.mxu0
        %v996 = vadd.f32 %v678, %v995
        %997 = vmatmul.f32.gmra.mxu0 %v383
        %v998 = vpop.f32.mrf.mxu0
        %v999 = vadd.f32 %v683, %v998
        %1000 = vmatmul.f32.gmra.mxu0 %v385
        %v1001 = vpop.f32.mrf.mxu0
        %v1002 = vadd.f32 %v688, %v1001
        %1003 = vmatmul.f32.gmra.mxu0 %v387
        %v1004 = vpop.f32.mrf.mxu0
        %v1005 = vadd.f32 %v693, %v1004
        %1006 = vdwg.mxu0
        %1007 = vmatpush.msra.mxu0 0.0
        %1008 = vmatpush.msra.mxu0 0.0
        %1009 = vmatpush.msra.mxu0 0.0
        %1010 = vmatpush.msra.mxu0 0.0
        %1011 = vmatpush.msra.mxu0 0.0
        %1012 = vmatpush.msra.mxu0 0.0
        %1013 = vmatpush.msra.mxu0 0.0
        %1014 = vmatpush.msra.mxu0 0.0
        %1015 = vmatpush.msra.mxu0 %v646
        %1016 = vmatpush.msra.mxu0 %v642
        %1017 = vmatpush.msra.mxu0 %v638
        %1018 = vmatpush.msra.mxu0 %v634
        %1019 = vmatpush.msra.mxu0 %v630
        %1020 = vmatpush.msra.mxu0 %v626
        %1021 = vmatpush.msra.mxu0 %v622
        %1022 = vmatpush.msra.mxu0 %v618
        %1023 = vmatmul.f32.gmra.mxu0 %v697
        %v1024 = vpop.f32.mrf.mxu0
        %v1025 = vadd.f32 %v984, %v1024
        %1026 = vmatmul.f32.gmra.mxu0 %v700
        %v1027 = vpop.f32.mrf.mxu0
        %v1028 = vadd.f32 %v987, %v1027
        %1029 = vmatmul.f32.gmra.mxu0 %v703
        %v1030 = vpop.f32.mrf.mxu0
        %v1031 = vadd.f32 %v990, %v1030
        %1032 = vmatmul.f32.gmra.mxu0 %v706
        %v1033 = vpop.f32.mrf.mxu0
        %v1034 = vadd.f32 %v993, %v1033
        %1035 = vmatmul.f32.gmra.mxu0 %v709
        %v1036 = vpop.f32.mrf.mxu0
        %v1037 = vadd.f32 %v996, %v1036
        %1038 = vmatmul.f32.gmra.mxu0 %v712
        %v1039 = vpop.f32.mrf.mxu0
        %v1040 = vadd.f32 %v999, %v1039
        %1041 = vmatmul.f32.gmra.mxu0 %v715
        %v1042 = vpop.f32.mrf.mxu0
        %v1043 = vadd.f32 %v1002, %v1042
        %1044 = vmatmul.f32.gmra.mxu0 %v718
        %v1045 = vpop.f32.mrf.mxu0
        %v1046 = vadd.f32 %v1005, %v1045
        %1047 = vdwg.mxu0
        %v1048 = vmax.f32 %v779, 0.0
        %v1049 = vmax.f32 %v861, 0.0
        %v1050 = vmax.f32 %v943, 0.0
        %v1051 = vmax.f32 %v1025, 0.0
        %v1052 = vmax.f32 %v782, 0.0
        %v1053 = vmax.f32 %v864, 0.0
        %v1054 = vmax.f32 %v946, 0.0
        %v1055 = vmax.f32 %v1028, 0.0
        %v1056 = vmax.f32 %v785, 0.0
        %v1057 = vmax.f32 %v867, 0.0
        %v1058 = vmax.f32 %v949, 0.0
        %v1059 = vmax.f32 %v1031, 0.0
        %v1060 = vmax.f32 %v788, 0.0
        %v1061 = vmax.f32 %v870, 0.0
        %v1062 = vmax.f32 %v952, 0.0
        %v1063 = vmax.f32 %v1034, 0.0
        %v1064 = vmax.f32 %v791, 0.0
        %v1065 = vmax.f32 %v873, 0.0
        %v1066 = vmax.f32 %v955, 0.0
        %v1067 = vmax.f32 %v1037, 0.0
        %v1068 = vmax.f32 %v794, 0.0
        %v1069 = vmax.f32 %v876, 0.0
        %v1070 = vmax.f32 %v958, 0.0
        %v1071 = vmax.f32 %v1040, 0.0
        %v1072 = vmax.f32 %v797, 0.0
        %v1073 = vmax.f32 %v879, 0.0
        %v1074 = vmax.f32 %v961, 0.0
        %v1075 = vmax.f32 %v1043, 0.0
        %v1076 = vmax.f32 %v800, 0.0
        %v1077 = vmax.f32 %v882, 0.0
        %v1078 = vmax.f32 %v964, 0.0
        %v1079 = vmax.f32 %v1046, 0.0
        %v1080 = vld [vmem:[#allocation5] sm:$0xff]
        %v1081 = vld [vmem:[#allocation5 + $0x8] sm:$0xff]
        %v1082 = vld [vmem:[#allocation5 + $0x10] sm:$0xff]
        %v1083 = vld [vmem:[#allocation5 + $0x18] sm:$0xff]
        %v1084 = vld [vmem:[#allocation5 + $0x20] sm:$0xff]
        %v1085 = vld [vmem:[#allocation5 + $0x28] sm:$0xff]
        %v1086 = vld [vmem:[#allocation5 + $0x30] sm:$0xff]
        %v1087 = vld [vmem:[#allocation5 + $0x38] sm:$0xff]
        %v1088 = vld [vmem:[#allocation5 + $0x40] sm:$0xff]
        %v1089 = vld [vmem:[#allocation5 + $0x48] sm:$0xff]
        %v1090 = vld [vmem:[#allocation5 + $0x50] sm:$0xff]
        %v1091 = vld [vmem:[#allocation5 + $0x58] sm:$0xff]
        %v1092 = vld [vmem:[#allocation5 + $0x60] sm:$0xff]
        %v1093 = vld [vmem:[#allocation5 + $0x68] sm:$0xff]
        %v1094 = vld [vmem:[#allocation5 + $0x70] sm:$0xff]
        %v1095 = vld [vmem:[#allocation5 + $0x78] sm:$0xff]
        %1096 = vrot.lane.b32.xlu0 %v1048, 1
        %v1097 = vpop.permute.xlu0 %1096
        %1098 = vrot.lane.b32.xlu0 %v1052, 1
        %v1099 = vpop.permute.xlu0 %1098
        %1100 = vrot.lane.b32.xlu0 %v1056, 1
        %v1101 = vpop.permute.xlu0 %1100
        %1102 = vrot.lane.b32.xlu0 %v1060, 1
        %v1103 = vpop.permute.xlu0 %1102
        %1104 = vrot.lane.b32.xlu0 %v1064, 1
        %v1105 = vpop.permute.xlu0 %1104
        %1106 = vrot.lane.b32.xlu0 %v1068, 1
        %v1107 = vpop.permute.xlu0 %1106
        %1108 = vrot.lane.b32.xlu0 %v1072, 1
        %v1109 = vpop.permute.xlu0 %1108
        %1110 = vrot.lane.b32.xlu0 %v1076, 1
        %v1111 = vpop.permute.xlu0 %1110
        %1112 = vrot.lane.b32.xlu0 %v1049, 1
        %v1113 = vpop.permute.xlu0 %1112
        %1114 = vrot.lane.b32.xlu0 %v1053, 1
        %v1115 = vpop.permute.xlu0 %1114
        %1116 = vrot.lane.b32.xlu0 %v1057, 1
        %v1117 = vpop.permute.xlu0 %1116
        %1118 = vrot.lane.b32.xlu0 %v1061, 1
        %v1119 = vpop.permute.xlu0 %1118
        %1120 = vrot.lane.b32.xlu0 %v1065, 1
        %v1121 = vpop.permute.xlu0 %1120
        %1122 = vrot.lane.b32.xlu0 %v1069, 1
        %v1123 = vpop.permute.xlu0 %1122
        %1124 = vrot.lane.b32.xlu0 %v1073, 1
        %v1125 = vpop.permute.xlu0 %1124
        %1126 = vrot.lane.b32.xlu0 %v1077, 1
        %v1127 = vpop.permute.xlu0 %1126
        %1128 = vrot.lane.b32.xlu0 %v1050, 1
        %v1129 = vpop.permute.xlu0 %1128
        %1130 = vrot.lane.b32.xlu0 %v1054, 1
        %v1131 = vpop.permute.xlu0 %1130
        %1132 = vrot.lane.b32.xlu0 %v1058, 1
        %v1133 = vpop.permute.xlu0 %1132
        %1134 = vrot.lane.b32.xlu0 %v1062, 1
        %v1135 = vpop.permute.xlu0 %1134
        %1136 = vrot.lane.b32.xlu0 %v1066, 1
        %v1137 = vpop.permute.xlu0 %1136
        %1138 = vrot.lane.b32.xlu0 %v1070, 1
        %v1139 = vpop.permute.xlu0 %1138
        %1140 = vrot.lane.b32.xlu0 %v1074, 1
        %v1141 = vpop.permute.xlu0 %1140
        %1142 = vrot.lane.b32.xlu0 %v1078, 1
        %v1143 = vpop.permute.xlu0 %1142
        %1144 = vrot.lane.b32.xlu0 %v1051, 1
        %v1145 = vpop.permute.xlu0 %1144
        %1146 = vrot.lane.b32.xlu0 %v1055, 1
        %v1147 = vpop.permute.xlu0 %1146
        %1148 = vrot.lane.b32.xlu0 %v1059, 1
        %v1149 = vpop.permute.xlu0 %1148
        %1150 = vrot.lane.b32.xlu0 %v1063, 1
        %v1151 = vpop.permute.xlu0 %1150
        %1152 = vrot.lane.b32.xlu0 %v1067, 1
        %v1153 = vpop.permute.xlu0 %1152
        %1154 = vrot.lane.b32.xlu0 %v1071, 1
        %v1155 = vpop.permute.xlu0 %1154
        %1156 = vrot.lane.b32.xlu0 %v1075, 1
        %v1157 = vpop.permute.xlu0 %1156
        %1158 = vrot.lane.b32.xlu0 %v1079, 1
        %v1159 = vpop.permute.xlu0 %1158
        %v1160 = vsel %vm453, %v1129, %v1145
        %v1161 = vsel %vm453, %v1131, %v1147
        %v1162 = vsel %vm453, %v1133, %v1149
        %v1163 = vsel %vm453, %v1135, %v1151
        %v1164 = vsel %vm453, %v1137, %v1153
        %v1165 = vsel %vm453, %v1139, %v1155
        %v1166 = vsel %vm453, %v1141, %v1157
        %v1167 = vsel %vm453, %v1143, %v1159
        %v1168 = vsel %vm453, %v1113, %v1129
        %v1169 = vsel %vm453, %v1115, %v1131
        %v1170 = vsel %vm453, %v1117, %v1133
        %v1171 = vsel %vm453, %v1119, %v1135
        %v1172 = vsel %vm453, %v1121, %v1137
        %v1173 = vsel %vm453, %v1123, %v1139
        %v1174 = vsel %vm453, %v1125, %v1141
        %v1175 = vsel %vm453, %v1127, %v1143
        %v1176 = vsel %vm453, %v1097, %v1113
        %v1177 = vsel %vm453, %v1099, %v1115
        %v1178 = vsel %vm453, %v1101, %v1117
        %v1179 = vsel %vm453, %v1103, %v1119
        %v1180 = vsel %vm453, %v1105, %v1121
        %v1181 = vsel %vm453, %v1107, %v1123
        %v1182 = vsel %vm453, %v1109, %v1125
        %v1183 = vsel %vm453, %v1111, %v1127
        %v1184 = vsel %vm453, %v1145, %v1097
        %v1185 = vsel %vm453, %v1147, %v1099
        %v1186 = vsel %vm453, %v1149, %v1101
        %v1187 = vsel %vm453, %v1151, %v1103
        %v1188 = vsel %vm453, %v1153, %v1105
        %v1189 = vsel %vm453, %v1155, %v1107
        %v1190 = vsel %vm453, %v1157, %v1109
        %v1191 = vsel %vm453, %v1159, %v1111
        %1192 = vrot.lane.b32.xlu0 %v1048, 127
        %v1193 = vpop.permute.xlu0 %1192
        %1194 = vrot.lane.b32.xlu0 %v1052, 127
        %v1195 = vpop.permute.xlu0 %1194
        %1196 = vrot.lane.b32.xlu0 %v1056, 127
        %v1197 = vpop.permute.xlu0 %1196
        %1198 = vrot.lane.b32.xlu0 %v1060, 127
        %v1199 = vpop.permute.xlu0 %1198
        %1200 = vrot.lane.b32.xlu0 %v1064, 127
        %v1201 = vpop.permute.xlu0 %1200
        %1202 = vrot.lane.b32.xlu0 %v1068, 127
        %v1203 = vpop.permute.xlu0 %1202
        %1204 = vrot.lane.b32.xlu0 %v1072, 127
        %v1205 = vpop.permute.xlu0 %1204
        %1206 = vrot.lane.b32.xlu0 %v1076, 127
        %v1207 = vpop.permute.xlu0 %1206
        %1208 = vrot.lane.b32.xlu0 %v1049, 127
        %v1209 = vpop.permute.xlu0 %1208
        %1210 = vrot.lane.b32.xlu0 %v1053, 127
        %v1211 = vpop.permute.xlu0 %1210
        %1212 = vrot.lane.b32.xlu0 %v1057, 127
        %v1213 = vpop.permute.xlu0 %1212
        %1214 = vrot.lane.b32.xlu0 %v1061, 127
        %v1215 = vpop.permute.xlu0 %1214
        %1216 = vrot.lane.b32.xlu0 %v1065, 127
        %v1217 = vpop.permute.xlu0 %1216
        %1218 = vrot.lane.b32.xlu0 %v1069, 127
        %v1219 = vpop.permute.xlu0 %1218
        %1220 = vrot.lane.b32.xlu0 %v1073, 127
        %v1221 = vpop.permute.xlu0 %1220
        %1222 = vrot.lane.b32.xlu0 %v1077, 127
        %v1223 = vpop.permute.xlu0 %1222
        %1224 = vrot.lane.b32.xlu0 %v1050, 127
        %v1225 = vpop.permute.xlu0 %1224
        %1226 = vrot.lane.b32.xlu0 %v1054, 127
        %v1227 = vpop.permute.xlu0 %1226
        %1228 = vrot.lane.b32.xlu0 %v1058, 127
        %v1229 = vpop.permute.xlu0 %1228
        %1230 = vrot.lane.b32.xlu0 %v1062, 127
        %v1231 = vpop.permute.xlu0 %1230
        %1232 = vrot.lane.b32.xlu0 %v1066, 127
        %v1233 = vpop.permute.xlu0 %1232
        %1234 = vrot.lane.b32.xlu0 %v1070, 127
        %v1235 = vpop.permute.xlu0 %1234
        %1236 = vrot.lane.b32.xlu0 %v1074, 127
        %v1237 = vpop.permute.xlu0 %1236
        %1238 = vrot.lane.b32.xlu0 %v1078, 127
        %v1239 = vpop.permute.xlu0 %1238
        %1240 = vrot.lane.b32.xlu0 %v1051, 127
        %v1241 = vpop.permute.xlu0 %1240
        %1242 = vrot.lane.b32.xlu0 %v1055, 127
        %v1243 = vpop.permute.xlu0 %1242
        %1244 = vrot.lane.b32.xlu0 %v1059, 127
        %v1245 = vpop.permute.xlu0 %1244
        %1246 = vrot.lane.b32.xlu0 %v1063, 127
        %v1247 = vpop.permute.xlu0 %1246
        %1248 = vrot.lane.b32.xlu0 %v1067, 127
        %v1249 = vpop.permute.xlu0 %1248
        %1250 = vrot.lane.b32.xlu0 %v1071, 127
        %v1251 = vpop.permute.xlu0 %1250
        %1252 = vrot.lane.b32.xlu0 %v1075, 127
        %v1253 = vpop.permute.xlu0 %1252
        %1254 = vrot.lane.b32.xlu0 %v1079, 127
        %v1255 = vpop.permute.xlu0 %1254
        %v1256 = vsel %vm550, %v1225, %v1241
        %v1257 = vsel %vm550, %v1227, %v1243
        %v1258 = vsel %vm550, %v1229, %v1245
        %v1259 = vsel %vm550, %v1231, %v1247
        %v1260 = vsel %vm550, %v1233, %v1249
        %v1261 = vsel %vm550, %v1235, %v1251
        %v1262 = vsel %vm550, %v1237, %v1253
        %v1263 = vsel %vm550, %v1239, %v1255
        %v1264 = vsel %vm550, %v1209, %v1225
        %v1265 = vsel %vm550, %v1211, %v1227
        %v1266 = vsel %vm550, %v1213, %v1229
        %v1267 = vsel %vm550, %v1215, %v1231
        %v1268 = vsel %vm550, %v1217, %v1233
        %v1269 = vsel %vm550, %v1219, %v1235
        %v1270 = vsel %vm550, %v1221, %v1237
        %v1271 = vsel %vm550, %v1223, %v1239
        %v1272 = vsel %vm550, %v1193, %v1209
        %v1273 = vsel %vm550, %v1195, %v1211
        %v1274 = vsel %vm550, %v1197, %v1213
        %v1275 = vsel %vm550, %v1199, %v1215
        %v1276 = vsel %vm550, %v1201, %v1217
        %v1277 = vsel %vm550, %v1203, %v1219
        %v1278 = vsel %vm550, %v1205, %v1221
        %v1279 = vsel %vm550, %v1207, %v1223
        %v1280 = vsel %vm550, %v1241, %v1193
        %v1281 = vsel %vm550, %v1243, %v1195
        %v1282 = vsel %vm550, %v1245, %v1197
        %v1283 = vsel %vm550, %v1247, %v1199
        %v1284 = vsel %vm550, %v1249, %v1201
        %v1285 = vsel %vm550, %v1251, %v1203
        %v1286 = vsel %vm550, %v1253, %v1205
        %v1287 = vsel %vm550, %v1255, %v1207
        %v1288 = vsel %vm325, %v1176, %v1184
        %v1289 = vsel %vm326, %v1168, %v1176
        %v1290 = vsel %vm327, %v1160, %v1168
        %v1291 = vsel %vm328, %v1184, %v1160
        %v1292 = vsel %vm325, %v1177, %v1185
        %v1293 = vsel %vm326, %v1169, %v1177
        %v1294 = vsel %vm327, %v1161, %v1169
        %v1295 = vsel %vm328, %v1185, %v1161
        %v1296 = vsel %vm325, %v1178, %v1186
        %v1297 = vsel %vm326, %v1170, %v1178
        %v1298 = vsel %vm327, %v1162, %v1170
        %v1299 = vsel %vm328, %v1186, %v1162
        %v1300 = vsel %vm325, %v1179, %v1187
        %v1301 = vsel %vm326, %v1171, %v1179
        %v1302 = vsel %vm327, %v1163, %v1171
        %v1303 = vsel %vm328, %v1187, %v1163
        %v1304 = vsel %vm325, %v1180, %v1188
        %v1305 = vsel %vm326, %v1172, %v1180
        %v1306 = vsel %vm327, %v1164, %v1172
        %v1307 = vsel %vm328, %v1188, %v1164
        %v1308 = vsel %vm325, %v1181, %v1189
        %v1309 = vsel %vm326, %v1173, %v1181
        %v1310 = vsel %vm327, %v1165, %v1173
        %v1311 = vsel %vm328, %v1189, %v1165
        %v1312 = vsel %vm325, %v1182, %v1190
        %v1313 = vsel %vm326, %v1174, %v1182
        %v1314 = vsel %vm327, %v1166, %v1174
        %v1315 = vsel %vm328, %v1190, %v1166
        %v1316 = vsel %vm325, %v1183, %v1191
        %v1317 = vsel %vm326, %v1175, %v1183
        %v1318 = vsel %vm327, %v1167, %v1175
        %v1319 = vsel %vm328, %v1191, %v1167
        %v1320 = vsel %vm337, %v1280, %v1272
        %v1321 = vsel %vm338, %v1272, %v1264
        %v1322 = vsel %vm339, %v1264, %v1256
        %v1323 = vsel %vm340, %v1256, %v1280
        %v1324 = vsel %vm337, %v1281, %v1273
        %v1325 = vsel %vm338, %v1273, %v1265
        %v1326 = vsel %vm339, %v1265, %v1257
        %v1327 = vsel %vm340, %v1257, %v1281
        %v1328 = vsel %vm337, %v1282, %v1274
        %v1329 = vsel %vm338, %v1274, %v1266
        %v1330 = vsel %vm339, %v1266, %v1258
        %v1331 = vsel %vm340, %v1258, %v1282
        %v1332 = vsel %vm337, %v1283, %v1275
        %v1333 = vsel %vm338, %v1275, %v1267
        %v1334 = vsel %vm339, %v1267, %v1259
        %v1335 = vsel %vm340, %v1259, %v1283
        %v1336 = vsel %vm337, %v1284, %v1276
        %v1337 = vsel %vm338, %v1276, %v1268
        %v1338 = vsel %vm339, %v1268, %v1260
        %v1339 = vsel %vm340, %v1260, %v1284
        %v1340 = vsel %vm337, %v1285, %v1277
        %v1341 = vsel %vm338, %v1277, %v1269
        %v1342 = vsel %vm339, %v1269, %v1261
        %v1343 = vsel %vm340, %v1261, %v1285
        %v1344 = vsel %vm337, %v1286, %v1278
        %v1345 = vsel %vm338, %v1278, %v1270
        %v1346 = vsel %vm339, %v1270, %v1262
        %v1347 = vsel %vm340, %v1262, %v1286
        %v1348 = vsel %vm337, %v1287, %v1279
        %v1349 = vsel %vm338, %v1279, %v1271
        %v1350 = vsel %vm339, %v1271, %v1263
        %v1351 = vsel %vm340, %v1263, %v1287
        %v1352 = vld [vmem:[%s4] sm:$0xff]
        %v1353 = vld [vmem:[%s4 + $0x8] sm:$0xff]
        %v1354 = vld [vmem:[%s4 + $0x10] sm:$0xff]
        %v1355 = vld [vmem:[%s4 + $0x18] sm:$0xff]
        %v1356 = vld [vmem:[%s4 + $0x20] sm:$0xff]
        %v1357 = vld [vmem:[%s4 + $0x28] sm:$0xff]
        %v1358 = vld [vmem:[%s4 + $0x30] sm:$0xff]
        %v1359 = vld [vmem:[%s4 + $0x38] sm:$0xff]
        %1361 = vset.pattern.permute.xlu0 0
        %1362 = vperm.xlu0 %1361, %v1352
        %v1363 = vpop.permute.xlu0 %1362
        %1366 = vset.pattern.permute.xlu0 0
        %1367 = vperm.xlu0 %1366, %v1353
        %v1368 = vpop.permute.xlu0 %1367
        %1371 = vset.pattern.permute.xlu0 0
        %1372 = vperm.xlu0 %1371, %v1354
        %v1373 = vpop.permute.xlu0 %1372
        %1376 = vset.pattern.permute.xlu0 0
        %1377 = vperm.xlu0 %1376, %v1355
        %v1378 = vpop.permute.xlu0 %1377
        %1381 = vset.pattern.permute.xlu0 0
        %1382 = vperm.xlu0 %1381, %v1356
        %v1383 = vpop.permute.xlu0 %1382
        %1386 = vset.pattern.permute.xlu0 0
        %1387 = vperm.xlu0 %1386, %v1357
        %v1388 = vpop.permute.xlu0 %1387
        %1391 = vset.pattern.permute.xlu0 0
        %1392 = vperm.xlu0 %1391, %v1358
        %v1393 = vpop.permute.xlu0 %1392
        %1396 = vset.pattern.permute.xlu0 0
        %1397 = vperm.xlu0 %1396, %v1359
        %v1398 = vpop.permute.xlu0 %1397
        %v1401 = vsel %vm695, %v1081, 0
        %v1404 = vsel %vm695, %v1083, 0
        %v1407 = vsel %vm695, %v1085, 0
        %v1410 = vsel %vm695, %v1087, 0
        %v1413 = vsel %vm695, %v1089, 0
        %v1416 = vsel %vm695, %v1091, 0
        %v1419 = vsel %vm695, %v1093, 0
        %v1422 = vsel %vm695, %v1095, 0
        %1424 = vmatpush.msra.mxu0 %v1076
        %1425 = vmatpush.msra.mxu0 %v1072
        %1426 = vmatpush.msra.mxu0 %v1068
        %1427 = vmatpush.msra.mxu0 %v1064
        %1428 = vmatpush.msra.mxu0 %v1060
        %1429 = vmatpush.msra.mxu0 %v1056
        %1430 = vmatpush.msra.mxu0 %v1052
        %1431 = vmatpush.msra.mxu0 %v1048
        %1432 = vmatpush.msra.mxu0 %v1316
        %1433 = vmatpush.msra.mxu0 %v1312
        %1434 = vmatpush.msra.mxu0 %v1308
        %1435 = vmatpush.msra.mxu0 %v1304
        %1436 = vmatpush.msra.mxu0 %v1300
        %1437 = vmatpush.msra.mxu0 %v1296
        %1438 = vmatpush.msra.mxu0 %v1292
        %1439 = vmatpush.msra.mxu0 %v1288
        %1440 = vmatmul.f32.gmra.mxu0 %v1080
        %v1441 = vpop.f32.mrf.mxu0
        %v1442 = vadd.f32 %v1363, %v1441
        %1443 = vmatmul.f32.gmra.mxu0 %v1082
        %v1444 = vpop.f32.mrf.mxu0
        %v1445 = vadd.f32 %v1368, %v1444
        %1446 = vmatmul.f32.gmra.mxu0 %v1084
        %v1447 = vpop.f32.mrf.mxu0
        %v1448 = vadd.f32 %v1373, %v1447
        %1449 = vmatmul.f32.gmra.mxu0 %v1086
        %v1450 = vpop.f32.mrf.mxu0
        %v1451 = vadd.f32 %v1378, %v1450
        %1452 = vmatmul.f32.gmra.mxu0 %v1088
        %v1453 = vpop.f32.mrf.mxu0
        %v1454 = vadd.f32 %v1383, %v1453
        %1455 = vmatmul.f32.gmra.mxu0 %v1090
        %v1456 = vpop.f32.mrf.mxu0
        %v1457 = vadd.f32 %v1388, %v1456
        %1458 = vmatmul.f32.gmra.mxu0 %v1092
        %v1459 = vpop.f32.mrf.mxu0
        %v1460 = vadd.f32 %v1393, %v1459
        %1461 = vmatmul.f32.gmra.mxu0 %v1094
        %v1462 = vpop.f32.mrf.mxu0
        %v1463 = vadd.f32 %v1398, %v1462
        %1464 = vdwg.mxu0
        %1465 = vmatpush.msra.mxu0 0.0
        %1466 = vmatpush.msra.mxu0 0.0
        %1467 = vmatpush.msra.mxu0 0.0
        %1468 = vmatpush.msra.mxu0 0.0
        %1469 = vmatpush.msra.mxu0 0.0
        %1470 = vmatpush.msra.mxu0 0.0
        %1471 = vmatpush.msra.mxu0 0.0
        %1472 = vmatpush.msra.mxu0 0.0
        %1473 = vmatpush.msra.mxu0 %v1348
        %1474 = vmatpush.msra.mxu0 %v1344
        %1475 = vmatpush.msra.mxu0 %v1340
        %1476 = vmatpush.msra.mxu0 %v1336
        %1477 = vmatpush.msra.mxu0 %v1332
        %1478 = vmatpush.msra.mxu0 %v1328
        %1479 = vmatpush.msra.mxu0 %v1324
        %1480 = vmatpush.msra.mxu0 %v1320
        %1481 = vmatmul.f32.gmra.mxu0 %v1401
        %v1482 = vpop.f32.mrf.mxu0
        %v1483 = vadd.f32 %v1442, %v1482
        %1484 = vmatmul.f32.gmra.mxu0 %v1404
        %v1485 = vpop.f32.mrf.mxu0
        %v1486 = vadd.f32 %v1445, %v1485
        %1487 = vmatmul.f32.gmra.mxu0 %v1407
        %v1488 = vpop.f32.mrf.mxu0
        %v1489 = vadd.f32 %v1448, %v1488
        %1490 = vmatmul.f32.gmra.mxu0 %v1410
        %v1491 = vpop.f32.mrf.mxu0
        %v1492 = vadd.f32 %v1451, %v1491
        %1493 = vmatmul.f32.gmra.mxu0 %v1413
        %v1494 = vpop.f32.mrf.mxu0
        %v1495 = vadd.f32 %v1454, %v1494
        %1496 = vmatmul.f32.gmra.mxu0 %v1416
        %v1497 = vpop.f32.mrf.mxu0
        %v1498 = vadd.f32 %v1457, %v1497
        %1499 = vmatmul.f32.gmra.mxu0 %v1419
        %v1500 = vpop.f32.mrf.mxu0
        %v1501 = vadd.f32 %v1460, %v1500
        %1502 = vmatmul.f32.gmra.mxu0 %v1422
        %v1503 = vpop.f32.mrf.mxu0
        %v1504 = vadd.f32 %v1463, %v1503
        %1505 = vdwg.mxu0
        %1506 = vmatpush.msra.mxu0 %v1077
        %1507 = vmatpush.msra.mxu0 %v1073
        %1508 = vmatpush.msra.mxu0 %v1069
        %1509 = vmatpush.msra.mxu0 %v1065
        %1510 = vmatpush.msra.mxu0 %v1061
        %1511 = vmatpush.msra.mxu0 %v1057
        %1512 = vmatpush.msra.mxu0 %v1053
        %1513 = vmatpush.msra.mxu0 %v1049
        %1514 = vmatpush.msra.mxu0 %v1317
        %1515 = vmatpush.msra.mxu0 %v1313
        %1516 = vmatpush.msra.mxu0 %v1309
        %1517 = vmatpush.msra.mxu0 %v1305
        %1518 = vmatpush.msra.mxu0 %v1301
        %1519 = vmatpush.msra.mxu0 %v1297
        %1520 = vmatpush.msra.mxu0 %v1293
        %1521 = vmatpush.msra.mxu0 %v1289
        %1522 = vmatmul.f32.gmra.mxu0 %v1080
        %v1523 = vpop.f32.mrf.mxu0
        %v1524 = vadd.f32 %v1363, %v1523
        %1525 = vmatmul.f32.gmra.mxu0 %v1082
        %v1526 = vpop.f32.mrf.mxu0
        %v1527 = vadd.f32 %v1368, %v1526
        %1528 = vmatmul.f32.gmra.mxu0 %v1084
        %v1529 = vpop.f32.mrf.mxu0
        %v1530 = vadd.f32 %v1373, %v1529
        %1531 = vmatmul.f32.gmra.mxu0 %v1086
        %v1532 = vpop.f32.mrf.mxu0
        %v1533 = vadd.f32 %v1378, %v1532
        %1534 = vmatmul.f32.gmra.mxu0 %v1088
        %v1535 = vpop.f32.mrf.mxu0
        %v1536 = vadd.f32 %v1383, %v1535
        %1537 = vmatmul.f32.gmra.mxu0 %v1090
        %v1538 = vpop.f32.mrf.mxu0
        %v1539 = vadd.f32 %v1388, %v1538
        %1540 = vmatmul.f32.gmra.mxu0 %v1092
        %v1541 = vpop.f32.mrf.mxu0
        %v1542 = vadd.f32 %v1393, %v1541
        %1543 = vmatmul.f32.gmra.mxu0 %v1094
        %v1544 = vpop.f32.mrf.mxu0
        %v1545 = vadd.f32 %v1398, %v1544
        %1546 = vdwg.mxu0
        %1547 = vmatpush.msra.mxu0 0.0
        %1548 = vmatpush.msra.mxu0 0.0
        %1549 = vmatpush.msra.mxu0 0.0
        %1550 = vmatpush.msra.mxu0 0.0
        %1551 = vmatpush.msra.mxu0 0.0
        %1552 = vmatpush.msra.mxu0 0.0
        %1553 = vmatpush.msra.mxu0 0.0
        %1554 = vmatpush.msra.mxu0 0.0
        %1555 = vmatpush.msra.mxu0 %v1349
        %1556 = vmatpush.msra.mxu0 %v1345
        %1557 = vmatpush.msra.mxu0 %v1341
        %1558 = vmatpush.msra.mxu0 %v1337
        %1559 = vmatpush.msra.mxu0 %v1333
        %1560 = vmatpush.msra.mxu0 %v1329
        %1561 = vmatpush.msra.mxu0 %v1325
        %1562 = vmatpush.msra.mxu0 %v1321
        %1563 = vmatmul.f32.gmra.mxu0 %v1401
        %v1564 = vpop.f32.mrf.mxu0
        %v1565 = vadd.f32 %v1524, %v1564
        %1566 = vmatmul.f32.gmra.mxu0 %v1404
        %v1567 = vpop.f32.mrf.mxu0
        %v1568 = vadd.f32 %v1527, %v1567
        %1569 = vmatmul.f32.gmra.mxu0 %v1407
        %v1570 = vpop.f32.mrf.mxu0
        %v1571 = vadd.f32 %v1530, %v1570
        %1572 = vmatmul.f32.gmra.mxu0 %v1410
        %v1573 = vpop.f32.mrf.mxu0
        %v1574 = vadd.f32 %v1533, %v1573
        %1575 = vmatmul.f32.gmra.mxu0 %v1413
        %v1576 = vpop.f32.mrf.mxu0
        %v1577 = vadd.f32 %v1536, %v1576
        %1578 = vmatmul.f32.gmra.mxu0 %v1416
        %v1579 = vpop.f32.mrf.mxu0
        %v1580 = vadd.f32 %v1539, %v1579
        %1581 = vmatmul.f32.gmra.mxu0 %v1419
        %v1582 = vpop.f32.mrf.mxu0
        %v1583 = vadd.f32 %v1542, %v1582
        %1584 = vmatmul.f32.gmra.mxu0 %v1422
        %v1585 = vpop.f32.mrf.mxu0
        %v1586 = vadd.f32 %v1545, %v1585
        %1587 = vdwg.mxu0
        %1588 = vmatpush.msra.mxu0 %v1078
        %1589 = vmatpush.msra.mxu0 %v1074
        %1590 = vmatpush.msra.mxu0 %v1070
        %1591 = vmatpush.msra.mxu0 %v1066
        %1592 = vmatpush.msra.mxu0 %v1062
        %1593 = vmatpush.msra.mxu0 %v1058
        %1594 = vmatpush.msra.mxu0 %v1054
        %1595 = vmatpush.msra.mxu0 %v1050
        %1596 = vmatpush.msra.mxu0 %v1318
        %1597 = vmatpush.msra.mxu0 %v1314
        %1598 = vmatpush.msra.mxu0 %v1310
        %1599 = vmatpush.msra.mxu0 %v1306
        %1600 = vmatpush.msra.mxu0 %v1302
        %1601 = vmatpush.msra.mxu0 %v1298
        %1602 = vmatpush.msra.mxu0 %v1294
        %1603 = vmatpush.msra.mxu0 %v1290
        %1604 = vmatmul.f32.gmra.mxu0 %v1080
        %v1605 = vpop.f32.mrf.mxu0
        %v1606 = vadd.f32 %v1363, %v1605
        %1607 = vmatmul.f32.gmra.mxu0 %v1082
        %v1608 = vpop.f32.mrf.mxu0
        %v1609 = vadd.f32 %v1368, %v1608
        %1610 = vmatmul.f32.gmra.mxu0 %v1084
        %v1611 = vpop.f32.mrf.mxu0
        %v1612 = vadd.f32 %v1373, %v1611
        %1613 = vmatmul.f32.gmra.mxu0 %v1086
        %v1614 = vpop.f32.mrf.mxu0
        %v1615 = vadd.f32 %v1378, %v1614
        %1616 = vmatmul.f32.gmra.mxu0 %v1088
        %v1617 = vpop.f32.mrf.mxu0
        %v1618 = vadd.f32 %v1383, %v1617
        %1619 = vmatmul.f32.gmra.mxu0 %v1090
        %v1620 = vpop.f32.mrf.mxu0
        %v1621 = vadd.f32 %v1388, %v1620
        %1622 = vmatmul.f32.gmra.mxu0 %v1092
        %v1623 = vpop.f32.mrf.mxu0
        %v1624 = vadd.f32 %v1393, %v1623
        %1625 = vmatmul.f32.gmra.mxu0 %v1094
        %v1626 = vpop.f32.mrf.mxu0
        %v1627 = vadd.f32 %v1398, %v1626
        %1628 = vdwg.mxu0
        %1629 = vmatpush.msra.mxu0 0.0
        %1630 = vmatpush.msra.mxu0 0.0
        %1631 = vmatpush.msra.mxu0 0.0
        %1632 = vmatpush.msra.mxu0 0.0
        %1633 = vmatpush.msra.mxu0 0.0
        %1634 = vmatpush.msra.mxu0 0.0
        %1635 = vmatpush.msra.mxu0 0.0
        %1636 = vmatpush.msra.mxu0 0.0
        %1637 = vmatpush.msra.mxu0 %v1350
        %1638 = vmatpush.msra.mxu0 %v1346
        %1639 = vmatpush.msra.mxu0 %v1342
        %1640 = vmatpush.msra.mxu0 %v1338
        %1641 = vmatpush.msra.mxu0 %v1334
        %1642 = vmatpush.msra.mxu0 %v1330
        %1643 = vmatpush.msra.mxu0 %v1326
        %1644 = vmatpush.msra.mxu0 %v1322
        %1645 = vmatmul.f32.gmra.mxu0 %v1401
        %v1646 = vpop.f32.mrf.mxu0
        %v1647 = vadd.f32 %v1606, %v1646
        %1648 = vmatmul.f32.gmra.mxu0 %v1404
        %v1649 = vpop.f32.mrf.mxu0
        %v1650 = vadd.f32 %v1609, %v1649
        %1651 = vmatmul.f32.gmra.mxu0 %v1407
        %v1652 = vpop.f32.mrf.mxu0
        %v1653 = vadd.f32 %v1612, %v1652
        %1654 = vmatmul.f32.gmra.mxu0 %v1410
        %v1655 = vpop.f32.mrf.mxu0
        %v1656 = vadd.f32 %v1615, %v1655
        %1657 = vmatmul.f32.gmra.mxu0 %v1413
        %v1658 = vpop.f32.mrf.mxu0
        %v1659 = vadd.f32 %v1618, %v1658
        %1660 = vmatmul.f32.gmra.mxu0 %v1416
        %v1661 = vpop.f32.mrf.mxu0
        %v1662 = vadd.f32 %v1621, %v1661
        %1663 = vmatmul.f32.gmra.mxu0 %v1419
        %v1664 = vpop.f32.mrf.mxu0
        %v1665 = vadd.f32 %v1624, %v1664
        %1666 = vmatmul.f32.gmra.mxu0 %v1422
        %v1667 = vpop.f32.mrf.mxu0
        %v1668 = vadd.f32 %v1627, %v1667
        %1669 = vdwg.mxu0
        %1670 = vmatpush.msra.mxu0 %v1079
        %1671 = vmatpush.msra.mxu0 %v1075
        %1672 = vmatpush.msra.mxu0 %v1071
        %1673 = vmatpush.msra.mxu0 %v1067
        %1674 = vmatpush.msra.mxu0 %v1063
        %1675 = vmatpush.msra.mxu0 %v1059
        %1676 = vmatpush.msra.mxu0 %v1055
        %1677 = vmatpush.msra.mxu0 %v1051
        %1678 = vmatpush.msra.mxu0 %v1319
        %1679 = vmatpush.msra.mxu0 %v1315
        %1680 = vmatpush.msra.mxu0 %v1311
        %1681 = vmatpush.msra.mxu0 %v1307
        %1682 = vmatpush.msra.mxu0 %v1303
        %1683 = vmatpush.msra.mxu0 %v1299
        %1684 = vmatpush.msra.mxu0 %v1295
        %1685 = vmatpush.msra.mxu0 %v1291
        %1686 = vmatmul.f32.gmra.mxu0 %v1080
        %v1687 = vpop.f32.mrf.mxu0
        %v1688 = vadd.f32 %v1363, %v1687
        %1689 = vmatmul.f32.gmra.mxu0 %v1082
        %v1690 = vpop.f32.mrf.mxu0
        %v1691 = vadd.f32 %v1368, %v1690
        %1692 = vmatmul.f32.gmra.mxu0 %v1084
        %v1693 = vpop.f32.mrf.mxu0
        %v1694 = vadd.f32 %v1373, %v1693
        %1695 = vmatmul.f32.gmra.mxu0 %v1086
        %v1696 = vpop.f32.mrf.mxu0
        %v1697 = vadd.f32 %v1378, %v1696
        %1698 = vmatmul.f32.gmra.mxu0 %v1088
        %v1699 = vpop.f32.mrf.mxu0
        %v1700 = vadd.f32 %v1383, %v1699
        %1701 = vmatmul.f32.gmra.mxu0 %v1090
        %v1702 = vpop.f32.mrf.mxu0
        %v1703 = vadd.f32 %v1388, %v1702
        %1704 = vmatmul.f32.gmra.mxu0 %v1092
        %v1705 = vpop.f32.mrf.mxu0
        %v1706 = vadd.f32 %v1393, %v1705
        %1707 = vmatmul.f32.gmra.mxu0 %v1094
        %v1708 = vpop.f32.mrf.mxu0
        %v1709 = vadd.f32 %v1398, %v1708
        %1710 = vdwg.mxu0
        %1711 = vmatpush.msra.mxu0 0.0
        %1712 = vmatpush.msra.mxu0 0.0
        %1713 = vmatpush.msra.mxu0 0.0
        %1714 = vmatpush.msra.mxu0 0.0
        %1715 = vmatpush.msra.mxu0 0.0
        %1716 = vmatpush.msra.mxu0 0.0
        %1717 = vmatpush.msra.mxu0 0.0
        %1718 = vmatpush.msra.mxu0 0.0
        %1719 = vmatpush.msra.mxu0 %v1351
        %1720 = vmatpush.msra.mxu0 %v1347
        %1721 = vmatpush.msra.mxu0 %v1343
        %1722 = vmatpush.msra.mxu0 %v1339
        %1723 = vmatpush.msra.mxu0 %v1335
        %1724 = vmatpush.msra.mxu0 %v1331
        %1725 = vmatpush.msra.mxu0 %v1327
        %1726 = vmatpush.msra.mxu0 %v1323
        %1727 = vmatmul.f32.gmra.mxu0 %v1401
        %v1728 = vpop.f32.mrf.mxu0
        %v1729 = vadd.f32 %v1688, %v1728
        %1730 = vmatmul.f32.gmra.mxu0 %v1404
        %v1731 = vpop.f32.mrf.mxu0
        %v1732 = vadd.f32 %v1691, %v1731
        %1733 = vmatmul.f32.gmra.mxu0 %v1407
        %v1734 = vpop.f32.mrf.mxu0
        %v1735 = vadd.f32 %v1694, %v1734
        %1736 = vmatmul.f32.gmra.mxu0 %v1410
        %v1737 = vpop.f32.mrf.mxu0
        %v1738 = vadd.f32 %v1697, %v1737
        %1739 = vmatmul.f32.gmra.mxu0 %v1413
        %v1740 = vpop.f32.mrf.mxu0
        %v1741 = vadd.f32 %v1700, %v1740
        %1742 = vmatmul.f32.gmra.mxu0 %v1416
        %v1743 = vpop.f32.mrf.mxu0
        %v1744 = vadd.f32 %v1703, %v1743
        %1745 = vmatmul.f32.gmra.mxu0 %v1419
        %v1746 = vpop.f32.mrf.mxu0
        %v1747 = vadd.f32 %v1706, %v1746
        %1748 = vmatmul.f32.gmra.mxu0 %v1422
        %v1749 = vpop.f32.mrf.mxu0
        %v1750 = vadd.f32 %v1709, %v1749
        %1751 = vdwg.mxu0
        %v1752 = vadd.f32 %v1483, %v341
        %v1753 = vadd.f32 %v1565, %v342
        %v1754 = vadd.f32 %v1647, %v343
        %v1755 = vadd.f32 %v1729, %v344
        %v1756 = vadd.f32 %v1486, %v345
        %v1757 = vadd.f32 %v1568, %v346
        %v1758 = vadd.f32 %v1650, %v347
        %v1759 = vadd.f32 %v1732, %v348
        %v1760 = vadd.f32 %v1489, %v349
        %v1761 = vadd.f32 %v1571, %v350
        %v1762 = vadd.f32 %v1653, %v351
        %v1763 = vadd.f32 %v1735, %v352
        %v1764 = vadd.f32 %v1492, %v353
        %v1765 = vadd.f32 %v1574, %v354
        %v1766 = vadd.f32 %v1656, %v355
        %v1767 = vadd.f32 %v1738, %v356
        %v1768 = vadd.f32 %v1495, %v357
        %v1769 = vadd.f32 %v1577, %v358
        %v1770 = vadd.f32 %v1659, %v359
        %v1771 = vadd.f32 %v1741, %v360
        %v1772 = vadd.f32 %v1498, %v361
        %v1773 = vadd.f32 %v1580, %v362
        %v1774 = vadd.f32 %v1662, %v363
        %v1775 = vadd.f32 %v1744, %v364
        %v1776 = vadd.f32 %v1501, %v365
        %v1777 = vadd.f32 %v1583, %v366
        %v1778 = vadd.f32 %v1665, %v367
        %v1779 = vadd.f32 %v1747, %v368
        %v1780 = vadd.f32 %v1504, %v369
        %v1781 = vadd.f32 %v1586, %v370
        %v1782 = vadd.f32 %v1668, %v371
        %v1783 = vadd.f32 %v1750, %v372
        %v1784 = vmax.f32 %v1752, 0.0
        %v1785 = vmax.f32 %v1753, 0.0
        %v1786 = vmax.f32 %v1754, 0.0
        %v1787 = vmax.f32 %v1755, 0.0
        %v1788 = vmax.f32 %v1756, 0.0
        %v1789 = vmax.f32 %v1757, 0.0
        %v1790 = vmax.f32 %v1758, 0.0
        %v1791 = vmax.f32 %v1759, 0.0
        %v1792 = vmax.f32 %v1760, 0.0
        %v1793 = vmax.f32 %v1761, 0.0
        %v1794 = vmax.f32 %v1762, 0.0
        %v1795 = vmax.f32 %v1763, 0.0
        %v1796 = vmax.f32 %v1764, 0.0
        %v1797 = vmax.f32 %v1765, 0.0
        %v1798 = vmax.f32 %v1766, 0.0
        %v1799 = vmax.f32 %v1767, 0.0
        %v1800 = vmax.f32 %v1768, 0.0
        %v1801 = vmax.f32 %v1769, 0.0
        %v1802 = vmax.f32 %v1770, 0.0
        %v1803 = vmax.f32 %v1771, 0.0
        %v1804 = vmax.f32 %v1772, 0.0
        %v1805 = vmax.f32 %v1773, 0.0
        %v1806 = vmax.f32 %v1774, 0.0
        %v1807 = vmax.f32 %v1775, 0.0
        %v1808 = vmax.f32 %v1776, 0.0
        %v1809 = vmax.f32 %v1777, 0.0
        %v1810 = vmax.f32 %v1778, 0.0
        %v1811 = vmax.f32 %v1779, 0.0
        %v1812 = vmax.f32 %v1780, 0.0
        %v1813 = vmax.f32 %v1781, 0.0
        %v1814 = vmax.f32 %v1782, 0.0
        %v1815 = vmax.f32 %v1783, 0.0
        %s1816 = scalar_lea.vmem %s1, 128
        %v1817 = vld [vmem:[%s1816] sm:$0xff]
        %v1818 = vld [vmem:[%s1816 + $0x8] sm:$0xff]
        %v1819 = vld [vmem:[%s1816 + $0x10] sm:$0xff]
        %v1820 = vld [vmem:[%s1816 + $0x18] sm:$0xff]
        %v1821 = vld [vmem:[%s1816 + $0x20] sm:$0xff]
        %v1822 = vld [vmem:[%s1816 + $0x28] sm:$0xff]
        %v1823 = vld [vmem:[%s1816 + $0x30] sm:$0xff]
        %v1824 = vld [vmem:[%s1816 + $0x38] sm:$0xff]
        %v1825 = vld [vmem:[%s1816 + $0x40] sm:$0xff]
        %v1826 = vld [vmem:[%s1816 + $0x48] sm:$0xff]
        %v1827 = vld [vmem:[%s1816 + $0x50] sm:$0xff]
        %v1828 = vld [vmem:[%s1816 + $0x58] sm:$0xff]
        %v1829 = vld [vmem:[%s1816 + $0x60] sm:$0xff]
        %v1830 = vld [vmem:[%s1816 + $0x68] sm:$0xff]
        %v1831 = vld [vmem:[%s1816 + $0x70] sm:$0xff]
        %v1832 = vld [vmem:[%s1816 + $0x78] sm:$0xff]
        %1833 = vrot.lane.b32.xlu0 %v1784, 1
        %v1834 = vpop.permute.xlu0 %1833
        %1835 = vrot.lane.b32.xlu0 %v1788, 1
        %v1836 = vpop.permute.xlu0 %1835
        %1837 = vrot.lane.b32.xlu0 %v1792, 1
        %v1838 = vpop.permute.xlu0 %1837
        %1839 = vrot.lane.b32.xlu0 %v1796, 1
        %v1840 = vpop.permute.xlu0 %1839
        %1841 = vrot.lane.b32.xlu0 %v1800, 1
        %v1842 = vpop.permute.xlu0 %1841
        %1843 = vrot.lane.b32.xlu0 %v1804, 1
        %v1844 = vpop.permute.xlu0 %1843
        %1845 = vrot.lane.b32.xlu0 %v1808, 1
        %v1846 = vpop.permute.xlu0 %1845
        %1847 = vrot.lane.b32.xlu0 %v1812, 1
        %v1848 = vpop.permute.xlu0 %1847
        %1849 = vrot.lane.b32.xlu0 %v1785, 1
        %v1850 = vpop.permute.xlu0 %1849
        %1851 = vrot.lane.b32.xlu0 %v1789, 1
        %v1852 = vpop.permute.xlu0 %1851
        %1853 = vrot.lane.b32.xlu0 %v1793, 1
        %v1854 = vpop.permute.xlu0 %1853
        %1855 = vrot.lane.b32.xlu0 %v1797, 1
        %v1856 = vpop.permute.xlu0 %1855
        %1857 = vrot.lane.b32.xlu0 %v1801, 1
        %v1858 = vpop.permute.xlu0 %1857
        %1859 = vrot.lane.b32.xlu0 %v1805, 1
        %v1860 = vpop.permute.xlu0 %1859
        %1861 = vrot.lane.b32.xlu0 %v1809, 1
        %v1862 = vpop.permute.xlu0 %1861
        %1863 = vrot.lane.b32.xlu0 %v1813, 1
        %v1864 = vpop.permute.xlu0 %1863
        %1865 = vrot.lane.b32.xlu0 %v1786, 1
        %v1866 = vpop.permute.xlu0 %1865
        %1867 = vrot.lane.b32.xlu0 %v1790, 1
        %v1868 = vpop.permute.xlu0 %1867
        %1869 = vrot.lane.b32.xlu0 %v1794, 1
        %v1870 = vpop.permute.xlu0 %1869
        %1871 = vrot.lane.b32.xlu0 %v1798, 1
        %v1872 = vpop.permute.xlu0 %1871
        %1873 = vrot.lane.b32.xlu0 %v1802, 1
        %v1874 = vpop.permute.xlu0 %1873
        %1875 = vrot.lane.b32.xlu0 %v1806, 1
        %v1876 = vpop.permute.xlu0 %1875
        %1877 = vrot.lane.b32.xlu0 %v1810, 1
        %v1878 = vpop.permute.xlu0 %1877
        %1879 = vrot.lane.b32.xlu0 %v1814, 1
        %v1880 = vpop.permute.xlu0 %1879
        %1881 = vrot.lane.b32.xlu0 %v1787, 1
        %v1882 = vpop.permute.xlu0 %1881
        %1883 = vrot.lane.b32.xlu0 %v1791, 1
        %v1884 = vpop.permute.xlu0 %1883
        %1885 = vrot.lane.b32.xlu0 %v1795, 1
        %v1886 = vpop.permute.xlu0 %1885
        %1887 = vrot.lane.b32.xlu0 %v1799, 1
        %v1888 = vpop.permute.xlu0 %1887
        %1889 = vrot.lane.b32.xlu0 %v1803, 1
        %v1890 = vpop.permute.xlu0 %1889
        %1891 = vrot.lane.b32.xlu0 %v1807, 1
        %v1892 = vpop.permute.xlu0 %1891
        %1893 = vrot.lane.b32.xlu0 %v1811, 1
        %v1894 = vpop.permute.xlu0 %1893
        %1895 = vrot.lane.b32.xlu0 %v1815, 1
        %v1896 = vpop.permute.xlu0 %1895
        %v1897 = vsel %vm453, %v1866, %v1882
        %v1898 = vsel %vm453, %v1868, %v1884
        %v1899 = vsel %vm453, %v1870, %v1886
        %v1900 = vsel %vm453, %v1872, %v1888
        %v1901 = vsel %vm453, %v1874, %v1890
        %v1902 = vsel %vm453, %v1876, %v1892
        %v1903 = vsel %vm453, %v1878, %v1894
        %v1904 = vsel %vm453, %v1880, %v1896
        %v1905 = vsel %vm453, %v1850, %v1866
        %v1906 = vsel %vm453, %v1852, %v1868
        %v1907 = vsel %vm453, %v1854, %v1870
        %v1908 = vsel %vm453, %v1856, %v1872
        %v1909 = vsel %vm453, %v1858, %v1874
        %v1910 = vsel %vm453, %v1860, %v1876
        %v1911 = vsel %vm453, %v1862, %v1878
        %v1912 = vsel %vm453, %v1864, %v1880
        %v1913 = vsel %vm453, %v1834, %v1850
        %v1914 = vsel %vm453, %v1836, %v1852
        %v1915 = vsel %vm453, %v1838, %v1854
        %v1916 = vsel %vm453, %v1840, %v1856
        %v1917 = vsel %vm453, %v1842, %v1858
        %v1918 = vsel %vm453, %v1844, %v1860
        %v1919 = vsel %vm453, %v1846, %v1862
        %v1920 = vsel %vm453, %v1848, %v1864
        %v1921 = vsel %vm453, %v1882, %v1834
        %v1922 = vsel %vm453, %v1884, %v1836
        %v1923 = vsel %vm453, %v1886, %v1838
        %v1924 = vsel %vm453, %v1888, %v1840
        %v1925 = vsel %vm453, %v1890, %v1842
        %v1926 = vsel %vm453, %v1892, %v1844
        %v1927 = vsel %vm453, %v1894, %v1846
        %v1928 = vsel %vm453, %v1896, %v1848
        %1929 = vrot.lane.b32.xlu0 %v1784, 127
        %v1930 = vpop.permute.xlu0 %1929
        %1931 = vrot.lane.b32.xlu0 %v1788, 127
        %v1932 = vpop.permute.xlu0 %1931
        %1933 = vrot.lane.b32.xlu0 %v1792, 127
        %v1934 = vpop.permute.xlu0 %1933
        %1935 = vrot.lane.b32.xlu0 %v1796, 127
        %v1936 = vpop.permute.xlu0 %1935
        %1937 = vrot.lane.b32.xlu0 %v1800, 127
        %v1938 = vpop.permute.xlu0 %1937
        %1939 = vrot.lane.b32.xlu0 %v1804, 127
        %v1940 = vpop.permute.xlu0 %1939
        %1941 = vrot.lane.b32.xlu0 %v1808, 127
        %v1942 = vpop.permute.xlu0 %1941
        %1943 = vrot.lane.b32.xlu0 %v1812, 127
        %v1944 = vpop.permute.xlu0 %1943
        %1945 = vrot.lane.b32.xlu0 %v1785, 127
        %v1946 = vpop.permute.xlu0 %1945
        %1947 = vrot.lane.b32.xlu0 %v1789, 127
        %v1948 = vpop.permute.xlu0 %1947
        %1949 = vrot.lane.b32.xlu0 %v1793, 127
        %v1950 = vpop.permute.xlu0 %1949
        %1951 = vrot.lane.b32.xlu0 %v1797, 127
        %v1952 = vpop.permute.xlu0 %1951
        %1953 = vrot.lane.b32.xlu0 %v1801, 127
        %v1954 = vpop.permute.xlu0 %1953
        %1955 = vrot.lane.b32.xlu0 %v1805, 127
        %v1956 = vpop.permute.xlu0 %1955
        %1957 = vrot.lane.b32.xlu0 %v1809, 127
        %v1958 = vpop.permute.xlu0 %1957
        %1959 = vrot.lane.b32.xlu0 %v1813, 127
        %v1960 = vpop.permute.xlu0 %1959
        %1961 = vrot.lane.b32.xlu0 %v1786, 127
        %v1962 = vpop.permute.xlu0 %1961
        %1963 = vrot.lane.b32.xlu0 %v1790, 127
        %v1964 = vpop.permute.xlu0 %1963
        %1965 = vrot.lane.b32.xlu0 %v1794, 127
        %v1966 = vpop.permute.xlu0 %1965
        %1967 = vrot.lane.b32.xlu0 %v1798, 127
        %v1968 = vpop.permute.xlu0 %1967
        %1969 = vrot.lane.b32.xlu0 %v1802, 127
        %v1970 = vpop.permute.xlu0 %1969
        %1971 = vrot.lane.b32.xlu0 %v1806, 127
        %v1972 = vpop.permute.xlu0 %1971
        %1973 = vrot.lane.b32.xlu0 %v1810, 127
        %v1974 = vpop.permute.xlu0 %1973
        %1975 = vrot.lane.b32.xlu0 %v1814, 127
        %v1976 = vpop.permute.xlu0 %1975
        %1977 = vrot.lane.b32.xlu0 %v1787, 127
        %v1978 = vpop.permute.xlu0 %1977
        %1979 = vrot.lane.b32.xlu0 %v1791, 127
        %v1980 = vpop.permute.xlu0 %1979
        %1981 = vrot.lane.b32.xlu0 %v1795, 127
        %v1982 = vpop.permute.xlu0 %1981
        %1983 = vrot.lane.b32.xlu0 %v1799, 127
        %v1984 = vpop.permute.xlu0 %1983
        %1985 = vrot.lane.b32.xlu0 %v1803, 127
        %v1986 = vpop.permute.xlu0 %1985
        %1987 = vrot.lane.b32.xlu0 %v1807, 127
        %v1988 = vpop.permute.xlu0 %1987
        %1989 = vrot.lane.b32.xlu0 %v1811, 127
        %v1990 = vpop.permute.xlu0 %1989
        %1991 = vrot.lane.b32.xlu0 %v1815, 127
        %v1992 = vpop.permute.xlu0 %1991
        %v1993 = vsel %vm550, %v1962, %v1978
        %v1994 = vsel %vm550, %v1964, %v1980
        %v1995 = vsel %vm550, %v1966, %v1982
        %v1996 = vsel %vm550, %v1968, %v1984
        %v1997 = vsel %vm550, %v1970, %v1986
        %v1998 = vsel %vm550, %v1972, %v1988
        %v1999 = vsel %vm550, %v1974, %v1990
        %v2000 = vsel %vm550, %v1976, %v1992
        %v2001 = vsel %vm550, %v1946, %v1962
        %v2002 = vsel %vm550, %v1948, %v1964
        %v2003 = vsel %vm550, %v1950, %v1966
        %v2004 = vsel %vm550, %v1952, %v1968
        %v2005 = vsel %vm550, %v1954, %v1970
        %v2006 = vsel %vm550, %v1956, %v1972
        %v2007 = vsel %vm550, %v1958, %v1974
        %v2008 = vsel %vm550, %v1960, %v1976
        %v2009 = vsel %vm550, %v1930, %v1946
        %v2010 = vsel %vm550, %v1932, %v1948
        %v2011 = vsel %vm550, %v1934, %v1950
        %v2012 = vsel %vm550, %v1936, %v1952
        %v2013 = vsel %vm550, %v1938, %v1954
        %v2014 = vsel %vm550, %v1940, %v1956
        %v2015 = vsel %vm550, %v1942, %v1958
        %v2016 = vsel %vm550, %v1944, %v1960
        %v2017 = vsel %vm550, %v1978, %v1930
        %v2018 = vsel %vm550, %v1980, %v1932
        %v2019 = vsel %vm550, %v1982, %v1934
        %v2020 = vsel %vm550, %v1984, %v1936
        %v2021 = vsel %vm550, %v1986, %v1938
        %v2022 = vsel %vm550, %v1988, %v1940
        %v2023 = vsel %vm550, %v1990, %v1942
        %v2024 = vsel %vm550, %v1992, %v1944
        %v2025 = vsel %vm325, %v1913, %v1921
        %v2026 = vsel %vm326, %v1905, %v1913
        %v2027 = vsel %vm327, %v1897, %v1905
        %v2028 = vsel %vm328, %v1921, %v1897
        %v2029 = vsel %vm325, %v1914, %v1922
        %v2030 = vsel %vm326, %v1906, %v1914
        %v2031 = vsel %vm327, %v1898, %v1906
        %v2032 = vsel %vm328, %v1922, %v1898
        %v2033 = vsel %vm325, %v1915, %v1923
        %v2034 = vsel %vm326, %v1907, %v1915
        %v2035 = vsel %vm327, %v1899, %v1907
        %v2036 = vsel %vm328, %v1923, %v1899
        %v2037 = vsel %vm325, %v1916, %v1924
        %v2038 = vsel %vm326, %v1908, %v1916
        %v2039 = vsel %vm327, %v1900, %v1908
        %v2040 = vsel %vm328, %v1924, %v1900
        %v2041 = vsel %vm325, %v1917, %v1925
        %v2042 = vsel %vm326, %v1909, %v1917
        %v2043 = vsel %vm327, %v1901, %v1909
        %v2044 = vsel %vm328, %v1925, %v1901
        %v2045 = vsel %vm325, %v1918, %v1926
        %v2046 = vsel %vm326, %v1910, %v1918
        %v2047 = vsel %vm327, %v1902, %v1910
        %v2048 = vsel %vm328, %v1926, %v1902
        %v2049 = vsel %vm325, %v1919, %v1927
        %v2050 = vsel %vm326, %v1911, %v1919
        %v2051 = vsel %vm327, %v1903, %v1911
        %v2052 = vsel %vm328, %v1927, %v1903
        %v2053 = vsel %vm325, %v1920, %v1928
        %v2054 = vsel %vm326, %v1912, %v1920
        %v2055 = vsel %vm327, %v1904, %v1912
        %v2056 = vsel %vm328, %v1928, %v1904
        %v2057 = vsel %vm337, %v2017, %v2009
        %v2058 = vsel %vm338, %v2009, %v2001
        %v2059 = vsel %vm339, %v2001, %v1993
        %v2060 = vsel %vm340, %v1993, %v2017
        %v2061 = vsel %vm337, %v2018, %v2010
        %v2062 = vsel %vm338, %v2010, %v2002
        %v2063 = vsel %vm339, %v2002, %v1994
        %v2064 = vsel %vm340, %v1994, %v2018
        %v2065 = vsel %vm337, %v2019, %v2011
        %v2066 = vsel %vm338, %v2011, %v2003
        %v2067 = vsel %vm339, %v2003, %v1995
        %v2068 = vsel %vm340, %v1995, %v2019
        %v2069 = vsel %vm337, %v2020, %v2012
        %v2070 = vsel %vm338, %v2012, %v2004
        %v2071 = vsel %vm339, %v2004, %v1996
        %v2072 = vsel %vm340, %v1996, %v2020
        %v2073 = vsel %vm337, %v2021, %v2013
        %v2074 = vsel %vm338, %v2013, %v2005
        %v2075 = vsel %vm339, %v2005, %v1997
        %v2076 = vsel %vm340, %v1997, %v2021
        %v2077 = vsel %vm337, %v2022, %v2014
        %v2078 = vsel %vm338, %v2014, %v2006
        %v2079 = vsel %vm339, %v2006, %v1998
        %v2080 = vsel %vm340, %v1998, %v2022
        %v2081 = vsel %vm337, %v2023, %v2015
        %v2082 = vsel %vm338, %v2015, %v2007
        %v2083 = vsel %vm339, %v2007, %v1999
        %v2084 = vsel %vm340, %v1999, %v2023
        %v2085 = vsel %vm337, %v2024, %v2016
        %v2086 = vsel %vm338, %v2016, %v2008
        %v2087 = vsel %vm339, %v2008, %v2000
        %v2088 = vsel %vm340, %v2000, %v2024
        %s2089 = scalar_lea.vmem %s2, 64
        %v2090 = vld [vmem:[%s2089] sm:$0xff]
        %v2091 = vld [vmem:[%s2089 + $0x8] sm:$0xff]
        %v2092 = vld [vmem:[%s2089 + $0x10] sm:$0xff]
        %v2093 = vld [vmem:[%s2089 + $0x18] sm:$0xff]
        %v2094 = vld [vmem:[%s2089 + $0x20] sm:$0xff]
        %v2095 = vld [vmem:[%s2089 + $0x28] sm:$0xff]
        %v2096 = vld [vmem:[%s2089 + $0x30] sm:$0xff]
        %v2097 = vld [vmem:[%s2089 + $0x38] sm:$0xff]
        %2099 = vset.pattern.permute.xlu0 0
        %2100 = vperm.xlu0 %2099, %v2090
        %v2101 = vpop.permute.xlu0 %2100
        %2104 = vset.pattern.permute.xlu0 0
        %2105 = vperm.xlu0 %2104, %v2091
        %v2106 = vpop.permute.xlu0 %2105
        %2109 = vset.pattern.permute.xlu0 0
        %2110 = vperm.xlu0 %2109, %v2092
        %v2111 = vpop.permute.xlu0 %2110
        %2114 = vset.pattern.permute.xlu0 0
        %2115 = vperm.xlu0 %2114, %v2093
        %v2116 = vpop.permute.xlu0 %2115
        %2119 = vset.pattern.permute.xlu0 0
        %2120 = vperm.xlu0 %2119, %v2094
        %v2121 = vpop.permute.xlu0 %2120
        %2124 = vset.pattern.permute.xlu0 0
        %2125 = vperm.xlu0 %2124, %v2095
        %v2126 = vpop.permute.xlu0 %2125
        %2129 = vset.pattern.permute.xlu0 0
        %2130 = vperm.xlu0 %2129, %v2096
        %v2131 = vpop.permute.xlu0 %2130
        %2134 = vset.pattern.permute.xlu0 0
        %2135 = vperm.xlu0 %2134, %v2097
        %v2136 = vpop.permute.xlu0 %2135
        %v2139 = vsel %vm695, %v1818, 0
        %v2142 = vsel %vm695, %v1820, 0
        %v2145 = vsel %vm695, %v1822, 0
        %v2148 = vsel %vm695, %v1824, 0
        %v2151 = vsel %vm695, %v1826, 0
        %v2154 = vsel %vm695, %v1828, 0
        %v2157 = vsel %vm695, %v1830, 0
        %v2160 = vsel %vm695, %v1832, 0
        %2162 = vmatpush.msra.mxu0 %v1812
        %2163 = vmatpush.msra.mxu0 %v1808
        %2164 = vmatpush.msra.mxu0 %v1804
        %2165 = vmatpush.msra.mxu0 %v1800
        %2166 = vmatpush.msra.mxu0 %v1796
        %2167 = vmatpush.msra.mxu0 %v1792
        %2168 = vmatpush.msra.mxu0 %v1788
        %2169 = vmatpush.msra.mxu0 %v1784
        %2170 = vmatpush.msra.mxu0 %v2053
        %2171 = vmatpush.msra.mxu0 %v2049
        %2172 = vmatpush.msra.mxu0 %v2045
        %2173 = vmatpush.msra.mxu0 %v2041
        %2174 = vmatpush.msra.mxu0 %v2037
        %2175 = vmatpush.msra.mxu0 %v2033
        %2176 = vmatpush.msra.mxu0 %v2029
        %2177 = vmatpush.msra.mxu0 %v2025
        %2178 = vmatmul.f32.gmra.mxu0 %v1817
        %v2179 = vpop.f32.mrf.mxu0
        %v2180 = vadd.f32 %v2101, %v2179
        %2181 = vmatmul.f32.gmra.mxu0 %v1819
        %v2182 = vpop.f32.mrf.mxu0
        %v2183 = vadd.f32 %v2106, %v2182
        %2184 = vmatmul.f32.gmra.mxu0 %v1821
        %v2185 = vpop.f32.mrf.mxu0
        %v2186 = vadd.f32 %v2111, %v2185
        %2187 = vmatmul.f32.gmra.mxu0 %v1823
        %v2188 = vpop.f32.mrf.mxu0
        %v2189 = vadd.f32 %v2116, %v2188
        %2190 = vmatmul.f32.gmra.mxu0 %v1825
        %v2191 = vpop.f32.mrf.mxu0
        %v2192 = vadd.f32 %v2121, %v2191
        %2193 = vmatmul.f32.gmra.mxu0 %v1827
        %v2194 = vpop.f32.mrf.mxu0
        %v2195 = vadd.f32 %v2126, %v2194
        %2196 = vmatmul.f32.gmra.mxu0 %v1829
        %v2197 = vpop.f32.mrf.mxu0
        %v2198 = vadd.f32 %v2131, %v2197
        %2199 = vmatmul.f32.gmra.mxu0 %v1831
        %v2200 = vpop.f32.mrf.mxu0
        %v2201 = vadd.f32 %v2136, %v2200
        %2202 = vdwg.mxu0
        %2203 = vmatpush.msra.mxu0 0.0
        %2204 = vmatpush.msra.mxu0 0.0
        %2205 = vmatpush.msra.mxu0 0.0
        %2206 = vmatpush.msra.mxu0 0.0
        %2207 = vmatpush.msra.mxu0 0.0
        %2208 = vmatpush.msra.mxu0 0.0
        %2209 = vmatpush.msra.mxu0 0.0
        %2210 = vmatpush.msra.mxu0 0.0
        %2211 = vmatpush.msra.mxu0 %v2085
        %2212 = vmatpush.msra.mxu0 %v2081
        %2213 = vmatpush.msra.mxu0 %v2077
        %2214 = vmatpush.msra.mxu0 %v2073
        %2215 = vmatpush.msra.mxu0 %v2069
        %2216 = vmatpush.msra.mxu0 %v2065
        %2217 = vmatpush.msra.mxu0 %v2061
        %2218 = vmatpush.msra.mxu0 %v2057
        %2219 = vmatmul.f32.gmra.mxu0 %v2139
        %v2220 = vpop.f32.mrf.mxu0
        %v2221 = vadd.f32 %v2180, %v2220
        %2222 = vmatmul.f32.gmra.mxu0 %v2142
        %v2223 = vpop.f32.mrf.mxu0
        %v2224 = vadd.f32 %v2183, %v2223
        %2225 = vmatmul.f32.gmra.mxu0 %v2145
        %v2226 = vpop.f32.mrf.mxu0
        %v2227 = vadd.f32 %v2186, %v2226
        %2228 = vmatmul.f32.gmra.mxu0 %v2148
        %v2229 = vpop.f32.mrf.mxu0
        %v2230 = vadd.f32 %v2189, %v2229
        %2231 = vmatmul.f32.gmra.mxu0 %v2151
        %v2232 = vpop.f32.mrf.mxu0
        %v2233 = vadd.f32 %v2192, %v2232
        %2234 = vmatmul.f32.gmra.mxu0 %v2154
        %v2235 = vpop.f32.mrf.mxu0
        %v2236 = vadd.f32 %v2195, %v2235
        %2237 = vmatmul.f32.gmra.mxu0 %v2157
        %v2238 = vpop.f32.mrf.mxu0
        %v2239 = vadd.f32 %v2198, %v2238
        %2240 = vmatmul.f32.gmra.mxu0 %v2160
        %v2241 = vpop.f32.mrf.mxu0
        %v2242 = vadd.f32 %v2201, %v2241
        %2243 = vdwg.mxu0
        %2244 = vmatpush.msra.mxu0 %v1813
        %2245 = vmatpush.msra.mxu0 %v1809
        %2246 = vmatpush.msra.mxu0 %v1805
        %2247 = vmatpush.msra.mxu0 %v1801
        %2248 = vmatpush.msra.mxu0 %v1797
        %2249 = vmatpush.msra.mxu0 %v1793
        %2250 = vmatpush.msra.mxu0 %v1789
        %2251 = vmatpush.msra.mxu0 %v1785
        %2252 = vmatpush.msra.mxu0 %v2054
        %2253 = vmatpush.msra.mxu0 %v2050
        %2254 = vmatpush.msra.mxu0 %v2046
        %2255 = vmatpush.msra.mxu0 %v2042
        %2256 = vmatpush.msra.mxu0 %v2038
        %2257 = vmatpush.msra.mxu0 %v2034
        %2258 = vmatpush.msra.mxu0 %v2030
        %2259 = vmatpush.msra.mxu0 %v2026
        %2260 = vmatmul.f32.gmra.mxu0 %v1817
        %v2261 = vpop.f32.mrf.mxu0
        %v2262 = vadd.f32 %v2101, %v2261
        %2263 = vmatmul.f32.gmra.mxu0 %v1819
        %v2264 = vpop.f32.mrf.mxu0
        %v2265 = vadd.f32 %v2106, %v2264
        %2266 = vmatmul.f32.gmra.mxu0 %v1821
        %v2267 = vpop.f32.mrf.mxu0
        %v2268 = vadd.f32 %v2111, %v2267
        %2269 = vmatmul.f32.gmra.mxu0 %v1823
        %v2270 = vpop.f32.mrf.mxu0
        %v2271 = vadd.f32 %v2116, %v2270
        %2272 = vmatmul.f32.gmra.mxu0 %v1825
        %v2273 = vpop.f32.mrf.mxu0
        %v2274 = vadd.f32 %v2121, %v2273
        %2275 = vmatmul.f32.gmra.mxu0 %v1827
        %v2276 = vpop.f32.mrf.mxu0
        %v2277 = vadd.f32 %v2126, %v2276
        %2278 = vmatmul.f32.gmra.mxu0 %v1829
        %v2279 = vpop.f32.mrf.mxu0
        %v2280 = vadd.f32 %v2131, %v2279
        %2281 = vmatmul.f32.gmra.mxu0 %v1831
        %v2282 = vpop.f32.mrf.mxu0
        %v2283 = vadd.f32 %v2136, %v2282
        %2284 = vdwg.mxu0
        %2285 = vmatpush.msra.mxu0 0.0
        %2286 = vmatpush.msra.mxu0 0.0
        %2287 = vmatpush.msra.mxu0 0.0
        %2288 = vmatpush.msra.mxu0 0.0
        %2289 = vmatpush.msra.mxu0 0.0
        %2290 = vmatpush.msra.mxu0 0.0
        %2291 = vmatpush.msra.mxu0 0.0
        %2292 = vmatpush.msra.mxu0 0.0
        %2293 = vmatpush.msra.mxu0 %v2086
        %2294 = vmatpush.msra.mxu0 %v2082
        %2295 = vmatpush.msra.mxu0 %v2078
        %2296 = vmatpush.msra.mxu0 %v2074
        %2297 = vmatpush.msra.mxu0 %v2070
        %2298 = vmatpush.msra.mxu0 %v2066
        %2299 = vmatpush.msra.mxu0 %v2062
        %2300 = vmatpush.msra.mxu0 %v2058
        %2301 = vmatmul.f32.gmra.mxu0 %v2139
        %v2302 = vpop.f32.mrf.mxu0
        %v2303 = vadd.f32 %v2262, %v2302
        %2304 = vmatmul.f32.gmra.mxu0 %v2142
        %v2305 = vpop.f32.mrf.mxu0
        %v2306 = vadd.f32 %v2265, %v2305
        %2307 = vmatmul.f32.gmra.mxu0 %v2145
        %v2308 = vpop.f32.mrf.mxu0
        %v2309 = vadd.f32 %v2268, %v2308
        %2310 = vmatmul.f32.gmra.mxu0 %v2148
        %v2311 = vpop.f32.mrf.mxu0
        %v2312 = vadd.f32 %v2271, %v2311
        %2313 = vmatmul.f32.gmra.mxu0 %v2151
        %v2314 = vpop.f32.mrf.mxu0
        %v2315 = vadd.f32 %v2274, %v2314
        %2316 = vmatmul.f32.gmra.mxu0 %v2154
        %v2317 = vpop.f32.mrf.mxu0
        %v2318 = vadd.f32 %v2277, %v2317
        %2319 = vmatmul.f32.gmra.mxu0 %v2157
        %v2320 = vpop.f32.mrf.mxu0
        %v2321 = vadd.f32 %v2280, %v2320
        %2322 = vmatmul.f32.gmra.mxu0 %v2160
        %v2323 = vpop.f32.mrf.mxu0
        %v2324 = vadd.f32 %v2283, %v2323
        %2325 = vdwg.mxu0
        %2326 = vmatpush.msra.mxu0 %v1814
        %2327 = vmatpush.msra.mxu0 %v1810
        %2328 = vmatpush.msra.mxu0 %v1806
        %2329 = vmatpush.msra.mxu0 %v1802
        %2330 = vmatpush.msra.mxu0 %v1798
        %2331 = vmatpush.msra.mxu0 %v1794
        %2332 = vmatpush.msra.mxu0 %v1790
        %2333 = vmatpush.msra.mxu0 %v1786
        %2334 = vmatpush.msra.mxu0 %v2055
        %2335 = vmatpush.msra.mxu0 %v2051
        %2336 = vmatpush.msra.mxu0 %v2047
        %2337 = vmatpush.msra.mxu0 %v2043
        %2338 = vmatpush.msra.mxu0 %v2039
        %2339 = vmatpush.msra.mxu0 %v2035
        %2340 = vmatpush.msra.mxu0 %v2031
        %2341 = vmatpush.msra.mxu0 %v2027
        %2342 = vmatmul.f32.gmra.mxu0 %v1817
        %v2343 = vpop.f32.mrf.mxu0
        %v2344 = vadd.f32 %v2101, %v2343
        %2345 = vmatmul.f32.gmra.mxu0 %v1819
        %v2346 = vpop.f32.mrf.mxu0
        %v2347 = vadd.f32 %v2106, %v2346
        %2348 = vmatmul.f32.gmra.mxu0 %v1821
        %v2349 = vpop.f32.mrf.mxu0
        %v2350 = vadd.f32 %v2111, %v2349
        %2351 = vmatmul.f32.gmra.mxu0 %v1823
        %v2352 = vpop.f32.mrf.mxu0
        %v2353 = vadd.f32 %v2116, %v2352
        %2354 = vmatmul.f32.gmra.mxu0 %v1825
        %v2355 = vpop.f32.mrf.mxu0
        %v2356 = vadd.f32 %v2121, %v2355
        %2357 = vmatmul.f32.gmra.mxu0 %v1827
        %v2358 = vpop.f32.mrf.mxu0
        %v2359 = vadd.f32 %v2126, %v2358
        %2360 = vmatmul.f32.gmra.mxu0 %v1829
        %v2361 = vpop.f32.mrf.mxu0
        %v2362 = vadd.f32 %v2131, %v2361
        %2363 = vmatmul.f32.gmra.mxu0 %v1831
        %v2364 = vpop.f32.mrf.mxu0
        %v2365 = vadd.f32 %v2136, %v2364
        %2366 = vdwg.mxu0
        %2367 = vmatpush.msra.mxu0 0.0
        %2368 = vmatpush.msra.mxu0 0.0
        %2369 = vmatpush.msra.mxu0 0.0
        %2370 = vmatpush.msra.mxu0 0.0
        %2371 = vmatpush.msra.mxu0 0.0
        %2372 = vmatpush.msra.mxu0 0.0
        %2373 = vmatpush.msra.mxu0 0.0
        %2374 = vmatpush.msra.mxu0 0.0
        %2375 = vmatpush.msra.mxu0 %v2087
        %2376 = vmatpush.msra.mxu0 %v2083
        %2377 = vmatpush.msra.mxu0 %v2079
        %2378 = vmatpush.msra.mxu0 %v2075
        %2379 = vmatpush.msra.mxu0 %v2071
        %2380 = vmatpush.msra.mxu0 %v2067
        %2381 = vmatpush.msra.mxu0 %v2063
        %2382 = vmatpush.msra.mxu0 %v2059
        %2383 = vmatmul.f32.gmra.mxu0 %v2139
        %v2384 = vpop.f32.mrf.mxu0
        %v2385 = vadd.f32 %v2344, %v2384
        %2386 = vmatmul.f32.gmra.mxu0 %v2142
        %v2387 = vpop.f32.mrf.mxu0
        %v2388 = vadd.f32 %v2347, %v2387
        %2389 = vmatmul.f32.gmra.mxu0 %v2145
        %v2390 = vpop.f32.mrf.mxu0
        %v2391 = vadd.f32 %v2350, %v2390
        %2392 = vmatmul.f32.gmra.mxu0 %v2148
        %v2393 = vpop.f32.mrf.mxu0
        %v2394 = vadd.f32 %v2353, %v2393
        %2395 = vmatmul.f32.gmra.mxu0 %v2151
        %v2396 = vpop.f32.mrf.mxu0
        %v2397 = vadd.f32 %v2356, %v2396
        %2398 = vmatmul.f32.gmra.mxu0 %v2154
        %v2399 = vpop.f32.mrf.mxu0
        %v2400 = vadd.f32 %v2359, %v2399
        %2401 = vmatmul.f32.gmra.mxu0 %v2157
        %v2402 = vpop.f32.mrf.mxu0
        %v2403 = vadd.f32 %v2362, %v2402
        %2404 = vmatmul.f32.gmra.mxu0 %v2160
        %v2405 = vpop.f32.mrf.mxu0
        %v2406 = vadd.f32 %v2365, %v2405
        %2407 = vdwg.mxu0
        %2408 = vmatpush.msra.mxu0 %v1815
        %2409 = vmatpush.msra.mxu0 %v1811
        %2410 = vmatpush.msra.mxu0 %v1807
        %2411 = vmatpush.msra.mxu0 %v1803
        %2412 = vmatpush.msra.mxu0 %v1799
        %2413 = vmatpush.msra.mxu0 %v1795
        %2414 = vmatpush.msra.mxu0 %v1791
        %2415 = vmatpush.msra.mxu0 %v1787
        %2416 = vmatpush.msra.mxu0 %v2056
        %2417 = vmatpush.msra.mxu0 %v2052
        %2418 = vmatpush.msra.mxu0 %v2048
        %2419 = vmatpush.msra.mxu0 %v2044
        %2420 = vmatpush.msra.mxu0 %v2040
        %2421 = vmatpush.msra.mxu0 %v2036
        %2422 = vmatpush.msra.mxu0 %v2032
        %2423 = vmatpush.msra.mxu0 %v2028
        %2424 = vmatmul.f32.gmra.mxu0 %v1817
        %v2425 = vpop.f32.mrf.mxu0
        %v2426 = vadd.f32 %v2101, %v2425
        %2427 = vmatmul.f32.gmra.mxu0 %v1819
        %v2428 = vpop.f32.mrf.mxu0
        %v2429 = vadd.f32 %v2106, %v2428
        %2430 = vmatmul.f32.gmra.mxu0 %v1821
        %v2431 = vpop.f32.mrf.mxu0
        %v2432 = vadd.f32 %v2111, %v2431
        %2433 = vmatmul.f32.gmra.mxu0 %v1823
        %v2434 = vpop.f32.mrf.mxu0
        %v2435 = vadd.f32 %v2116, %v2434
        %2436 = vmatmul.f32.gmra.mxu0 %v1825
        %v2437 = vpop.f32.mrf.mxu0
        %v2438 = vadd.f32 %v2121, %v2437
        %2439 = vmatmul.f32.gmra.mxu0 %v1827
        %v2440 = vpop.f32.mrf.mxu0
        %v2441 = vadd.f32 %v2126, %v2440
        %2442 = vmatmul.f32.gmra.mxu0 %v1829
        %v2443 = vpop.f32.mrf.mxu0
        %v2444 = vadd.f32 %v2131, %v2443
        %2445 = vmatmul.f32.gmra.mxu0 %v1831
        %v2446 = vpop.f32.mrf.mxu0
        %v2447 = vadd.f32 %v2136, %v2446
        %2448 = vdwg.mxu0
        %2449 = vmatpush.msra.mxu0 0.0
        %2450 = vmatpush.msra.mxu0 0.0
        %2451 = vmatpush.msra.mxu0 0.0
        %2452 = vmatpush.msra.mxu0 0.0
        %2453 = vmatpush.msra.mxu0 0.0
        %2454 = vmatpush.msra.mxu0 0.0
        %2455 = vmatpush.msra.mxu0 0.0
        %2456 = vmatpush.msra.mxu0 0.0
        %2457 = vmatpush.msra.mxu0 %v2088
        %2458 = vmatpush.msra.mxu0 %v2084
        %2459 = vmatpush.msra.mxu0 %v2080
        %2460 = vmatpush.msra.mxu0 %v2076
        %2461 = vmatpush.msra.mxu0 %v2072
        %2462 = vmatpush.msra.mxu0 %v2068
        %2463 = vmatpush.msra.mxu0 %v2064
        %2464 = vmatpush.msra.mxu0 %v2060
        %2465 = vmatmul.f32.gmra.mxu0 %v2139
        %v2466 = vpop.f32.mrf.mxu0
        %v2467 = vadd.f32 %v2426, %v2466
        %2468 = vmatmul.f32.gmra.mxu0 %v2142
        %v2469 = vpop.f32.mrf.mxu0
        %v2470 = vadd.f32 %v2429, %v2469
        %2471 = vmatmul.f32.gmra.mxu0 %v2145
        %v2472 = vpop.f32.mrf.mxu0
        %v2473 = vadd.f32 %v2432, %v2472
        %2474 = vmatmul.f32.gmra.mxu0 %v2148
        %v2475 = vpop.f32.mrf.mxu0
        %v2476 = vadd.f32 %v2435, %v2475
        %2477 = vmatmul.f32.gmra.mxu0 %v2151
        %v2478 = vpop.f32.mrf.mxu0
        %v2479 = vadd.f32 %v2438, %v2478
        %2480 = vmatmul.f32.gmra.mxu0 %v2154
        %v2481 = vpop.f32.mrf.mxu0
        %v2482 = vadd.f32 %v2441, %v2481
        %2483 = vmatmul.f32.gmra.mxu0 %v2157
        %v2484 = vpop.f32.mrf.mxu0
        %v2485 = vadd.f32 %v2444, %v2484
        %2486 = vmatmul.f32.gmra.mxu0 %v2160
        %v2487 = vpop.f32.mrf.mxu0
        %v2488 = vadd.f32 %v2447, %v2487
        %2489 = vdwg.mxu0
        %v2490 = vmax.f32 %v2221, 0.0
        %v2491 = vmax.f32 %v2303, 0.0
        %v2492 = vmax.f32 %v2385, 0.0
        %v2493 = vmax.f32 %v2467, 0.0
        %v2494 = vmax.f32 %v2224, 0.0
        %v2495 = vmax.f32 %v2306, 0.0
        %v2496 = vmax.f32 %v2388, 0.0
        %v2497 = vmax.f32 %v2470, 0.0
        %v2498 = vmax.f32 %v2227, 0.0
        %v2499 = vmax.f32 %v2309, 0.0
        %v2500 = vmax.f32 %v2391, 0.0
        %v2501 = vmax.f32 %v2473, 0.0
        %v2502 = vmax.f32 %v2230, 0.0
        %v2503 = vmax.f32 %v2312, 0.0
        %v2504 = vmax.f32 %v2394, 0.0
        %v2505 = vmax.f32 %v2476, 0.0
        %v2506 = vmax.f32 %v2233, 0.0
        %v2507 = vmax.f32 %v2315, 0.0
        %v2508 = vmax.f32 %v2397, 0.0
        %v2509 = vmax.f32 %v2479, 0.0
        %v2510 = vmax.f32 %v2236, 0.0
        %v2511 = vmax.f32 %v2318, 0.0
        %v2512 = vmax.f32 %v2400, 0.0
        %v2513 = vmax.f32 %v2482, 0.0
        %v2514 = vmax.f32 %v2239, 0.0
        %v2515 = vmax.f32 %v2321, 0.0
        %v2516 = vmax.f32 %v2403, 0.0
        %v2517 = vmax.f32 %v2485, 0.0
        %v2518 = vmax.f32 %v2242, 0.0
        %v2519 = vmax.f32 %v2324, 0.0
        %v2520 = vmax.f32 %v2406, 0.0
        %v2521 = vmax.f32 %v2488, 0.0
        %s2522 = scalar_lea.vmem [#allocation5], 128
        %v2523 = vld [vmem:[%s2522] sm:$0xff]
        %v2524 = vld [vmem:[%s2522 + $0x8] sm:$0xff]
        %v2525 = vld [vmem:[%s2522 + $0x10] sm:$0xff]
        %v2526 = vld [vmem:[%s2522 + $0x18] sm:$0xff]
        %v2527 = vld [vmem:[%s2522 + $0x20] sm:$0xff]
        %v2528 = vld [vmem:[%s2522 + $0x28] sm:$0xff]
        %v2529 = vld [vmem:[%s2522 + $0x30] sm:$0xff]
        %v2530 = vld [vmem:[%s2522 + $0x38] sm:$0xff]
        %v2531 = vld [vmem:[%s2522 + $0x40] sm:$0xff]
        %v2532 = vld [vmem:[%s2522 + $0x48] sm:$0xff]
        %v2533 = vld [vmem:[%s2522 + $0x50] sm:$0xff]
        %v2534 = vld [vmem:[%s2522 + $0x58] sm:$0xff]
        %v2535 = vld [vmem:[%s2522 + $0x60] sm:$0xff]
        %v2536 = vld [vmem:[%s2522 + $0x68] sm:$0xff]
        %v2537 = vld [vmem:[%s2522 + $0x70] sm:$0xff]
        %v2538 = vld [vmem:[%s2522 + $0x78] sm:$0xff]
        %2539 = vrot.lane.b32.xlu0 %v2490, 1
        %v2540 = vpop.permute.xlu0 %2539
        %2541 = vrot.lane.b32.xlu0 %v2494, 1
        %v2542 = vpop.permute.xlu0 %2541
        %2543 = vrot.lane.b32.xlu0 %v2498, 1
        %v2544 = vpop.permute.xlu0 %2543
        %2545 = vrot.lane.b32.xlu0 %v2502, 1
        %v2546 = vpop.permute.xlu0 %2545
        %2547 = vrot.lane.b32.xlu0 %v2506, 1
        %v2548 = vpop.permute.xlu0 %2547
        %2549 = vrot.lane.b32.xlu0 %v2510, 1
        %v2550 = vpop.permute.xlu0 %2549
        %2551 = vrot.lane.b32.xlu0 %v2514, 1
        %v2552 = vpop.permute.xlu0 %2551
        %2553 = vrot.lane.b32.xlu0 %v2518, 1
        %v2554 = vpop.permute.xlu0 %2553
        %2555 = vrot.lane.b32.xlu0 %v2491, 1
        %v2556 = vpop.permute.xlu0 %2555
        %2557 = vrot.lane.b32.xlu0 %v2495, 1
        %v2558 = vpop.permute.xlu0 %2557
        %2559 = vrot.lane.b32.xlu0 %v2499, 1
        %v2560 = vpop.permute.xlu0 %2559
        %2561 = vrot.lane.b32.xlu0 %v2503, 1
        %v2562 = vpop.permute.xlu0 %2561
        %2563 = vrot.lane.b32.xlu0 %v2507, 1
        %v2564 = vpop.permute.xlu0 %2563
        %2565 = vrot.lane.b32.xlu0 %v2511, 1
        %v2566 = vpop.permute.xlu0 %2565
        %2567 = vrot.lane.b32.xlu0 %v2515, 1
        %v2568 = vpop.permute.xlu0 %2567
        %2569 = vrot.lane.b32.xlu0 %v2519, 1
        %v2570 = vpop.permute.xlu0 %2569
        %2571 = vrot.lane.b32.xlu0 %v2492, 1
        %v2572 = vpop.permute.xlu0 %2571
        %2573 = vrot.lane.b32.xlu0 %v2496, 1
        %v2574 = vpop.permute.xlu0 %2573
        %2575 = vrot.lane.b32.xlu0 %v2500, 1
        %v2576 = vpop.permute.xlu0 %2575
        %2577 = vrot.lane.b32.xlu0 %v2504, 1
        %v2578 = vpop.permute.xlu0 %2577
        %2579 = vrot.lane.b32.xlu0 %v2508, 1
        %v2580 = vpop.permute.xlu0 %2579
        %2581 = vrot.lane.b32.xlu0 %v2512, 1
        %v2582 = vpop.permute.xlu0 %2581
        %2583 = vrot.lane.b32.xlu0 %v2516, 1
        %v2584 = vpop.permute.xlu0 %2583
        %2585 = vrot.lane.b32.xlu0 %v2520, 1
        %v2586 = vpop.permute.xlu0 %2585
        %2587 = vrot.lane.b32.xlu0 %v2493, 1
        %v2588 = vpop.permute.xlu0 %2587
        %2589 = vrot.lane.b32.xlu0 %v2497, 1
        %v2590 = vpop.permute.xlu0 %2589
        %2591 = vrot.lane.b32.xlu0 %v2501, 1
        %v2592 = vpop.permute.xlu0 %2591
        %2593 = vrot.lane.b32.xlu0 %v2505, 1
        %v2594 = vpop.permute.xlu0 %2593
        %2595 = vrot.lane.b32.xlu0 %v2509, 1
        %v2596 = vpop.permute.xlu0 %2595
        %2597 = vrot.lane.b32.xlu0 %v2513, 1
        %v2598 = vpop.permute.xlu0 %2597
        %2599 = vrot.lane.b32.xlu0 %v2517, 1
        %v2600 = vpop.permute.xlu0 %2599
        %2601 = vrot.lane.b32.xlu0 %v2521, 1
        %v2602 = vpop.permute.xlu0 %2601
        %v2603 = vsel %vm453, %v2572, %v2588
        %v2604 = vsel %vm453, %v2574, %v2590
        %v2605 = vsel %vm453, %v2576, %v2592
        %v2606 = vsel %vm453, %v2578, %v2594
        %v2607 = vsel %vm453, %v2580, %v2596
        %v2608 = vsel %vm453, %v2582, %v2598
        %v2609 = vsel %vm453, %v2584, %v2600
        %v2610 = vsel %vm453, %v2586, %v2602
        %v2611 = vsel %vm453, %v2556, %v2572
        %v2612 = vsel %vm453, %v2558, %v2574
        %v2613 = vsel %vm453, %v2560, %v2576
        %v2614 = vsel %vm453, %v2562, %v2578
        %v2615 = vsel %vm453, %v2564, %v2580
        %v2616 = vsel %vm453, %v2566, %v2582
        %v2617 = vsel %vm453, %v2568, %v2584
        %v2618 = vsel %vm453, %v2570, %v2586
        %v2619 = vsel %vm453, %v2540, %v2556
        %v2620 = vsel %vm453, %v2542, %v2558
        %v2621 = vsel %vm453, %v2544, %v2560
        %v2622 = vsel %vm453, %v2546, %v2562
        %v2623 = vsel %vm453, %v2548, %v2564
        %v2624 = vsel %vm453, %v2550, %v2566
        %v2625 = vsel %vm453, %v2552, %v2568
        %v2626 = vsel %vm453, %v2554, %v2570
        %v2627 = vsel %vm453, %v2588, %v2540
        %v2628 = vsel %vm453, %v2590, %v2542
        %v2629 = vsel %vm453, %v2592, %v2544
        %v2630 = vsel %vm453, %v2594, %v2546
        %v2631 = vsel %vm453, %v2596, %v2548
        %v2632 = vsel %vm453, %v2598, %v2550
        %v2633 = vsel %vm453, %v2600, %v2552
        %v2634 = vsel %vm453, %v2602, %v2554
        %2635 = vrot.lane.b32.xlu0 %v2490, 127
        %v2636 = vpop.permute.xlu0 %2635
        %2637 = vrot.lane.b32.xlu0 %v2494, 127
        %v2638 = vpop.permute.xlu0 %2637
        %2639 = vrot.lane.b32.xlu0 %v2498, 127
        %v2640 = vpop.permute.xlu0 %2639
        %2641 = vrot.lane.b32.xlu0 %v2502, 127
        %v2642 = vpop.permute.xlu0 %2641
        %2643 = vrot.lane.b32.xlu0 %v2506, 127
        %v2644 = vpop.permute.xlu0 %2643
        %2645 = vrot.lane.b32.xlu0 %v2510, 127
        %v2646 = vpop.permute.xlu0 %2645
        %2647 = vrot.lane.b32.xlu0 %v2514, 127
        %v2648 = vpop.permute.xlu0 %2647
        %2649 = vrot.lane.b32.xlu0 %v2518, 127
        %v2650 = vpop.permute.xlu0 %2649
        %2651 = vrot.lane.b32.xlu0 %v2491, 127
        %v2652 = vpop.permute.xlu0 %2651
        %2653 = vrot.lane.b32.xlu0 %v2495, 127
        %v2654 = vpop.permute.xlu0 %2653
        %2655 = vrot.lane.b32.xlu0 %v2499, 127
        %v2656 = vpop.permute.xlu0 %2655
        %2657 = vrot.lane.b32.xlu0 %v2503, 127
        %v2658 = vpop.permute.xlu0 %2657
        %2659 = vrot.lane.b32.xlu0 %v2507, 127
        %v2660 = vpop.permute.xlu0 %2659
        %2661 = vrot.lane.b32.xlu0 %v2511, 127
        %v2662 = vpop.permute.xlu0 %2661
        %2663 = vrot.lane.b32.xlu0 %v2515, 127
        %v2664 = vpop.permute.xlu0 %2663
        %2665 = vrot.lane.b32.xlu0 %v2519, 127
        %v2666 = vpop.permute.xlu0 %2665
        %2667 = vrot.lane.b32.xlu0 %v2492, 127
        %v2668 = vpop.permute.xlu0 %2667
        %2669 = vrot.lane.b32.xlu0 %v2496, 127
        %v2670 = vpop.permute.xlu0 %2669
        %2671 = vrot.lane.b32.xlu0 %v2500, 127
        %v2672 = vpop.permute.xlu0 %2671
        %2673 = vrot.lane.b32.xlu0 %v2504, 127
        %v2674 = vpop.permute.xlu0 %2673
        %2675 = vrot.lane.b32.xlu0 %v2508, 127
        %v2676 = vpop.permute.xlu0 %2675
        %2677 = vrot.lane.b32.xlu0 %v2512, 127
        %v2678 = vpop.permute.xlu0 %2677
        %2679 = vrot.lane.b32.xlu0 %v2516, 127
        %v2680 = vpop.permute.xlu0 %2679
        %2681 = vrot.lane.b32.xlu0 %v2520, 127
        %v2682 = vpop.permute.xlu0 %2681
        %2683 = vrot.lane.b32.xlu0 %v2493, 127
        %v2684 = vpop.permute.xlu0 %2683
        %2685 = vrot.lane.b32.xlu0 %v2497, 127
        %v2686 = vpop.permute.xlu0 %2685
        %2687 = vrot.lane.b32.xlu0 %v2501, 127
        %v2688 = vpop.permute.xlu0 %2687
        %2689 = vrot.lane.b32.xlu0 %v2505, 127
        %v2690 = vpop.permute.xlu0 %2689
        %2691 = vrot.lane.b32.xlu0 %v2509, 127
        %v2692 = vpop.permute.xlu0 %2691
        %2693 = vrot.lane.b32.xlu0 %v2513, 127
        %v2694 = vpop.permute.xlu0 %2693
        %2695 = vrot.lane.b32.xlu0 %v2517, 127
        %v2696 = vpop.permute.xlu0 %2695
        %2697 = vrot.lane.b32.xlu0 %v2521, 127
        %v2698 = vpop.permute.xlu0 %2697
        %v2699 = vsel %vm550, %v2668, %v2684
        %v2700 = vsel %vm550, %v2670, %v2686
        %v2701 = vsel %vm550, %v2672, %v2688
        %v2702 = vsel %vm550, %v2674, %v2690
        %v2703 = vsel %vm550, %v2676, %v2692
        %v2704 = vsel %vm550, %v2678, %v2694
        %v2705 = vsel %vm550, %v2680, %v2696
        %v2706 = vsel %vm550, %v2682, %v2698
        %v2707 = vsel %vm550, %v2652, %v2668
        %v2708 = vsel %vm550, %v2654, %v2670
        %v2709 = vsel %vm550, %v2656, %v2672
        %v2710 = vsel %vm550, %v2658, %v2674
        %v2711 = vsel %vm550, %v2660, %v2676
        %v2712 = vsel %vm550, %v2662, %v2678
        %v2713 = vsel %vm550, %v2664, %v2680
        %v2714 = vsel %vm550, %v2666, %v2682
        %v2715 = vsel %vm550, %v2636, %v2652
        %v2716 = vsel %vm550, %v2638, %v2654
        %v2717 = vsel %vm550, %v2640, %v2656
        %v2718 = vsel %vm550, %v2642, %v2658
        %v2719 = vsel %vm550, %v2644, %v2660
        %v2720 = vsel %vm550, %v2646, %v2662
        %v2721 = vsel %vm550, %v2648, %v2664
        %v2722 = vsel %vm550, %v2650, %v2666
        %v2723 = vsel %vm550, %v2684, %v2636
        %v2724 = vsel %vm550, %v2686, %v2638
        %v2725 = vsel %vm550, %v2688, %v2640
        %v2726 = vsel %vm550, %v2690, %v2642
        %v2727 = vsel %vm550, %v2692, %v2644
        %v2728 = vsel %vm550, %v2694, %v2646
        %v2729 = vsel %vm550, %v2696, %v2648
        %v2730 = vsel %vm550, %v2698, %v2650
        %v2731 = vsel %vm325, %v2619, %v2627
        %v2732 = vsel %vm326, %v2611, %v2619
        %v2733 = vsel %vm327, %v2603, %v2611
        %v2734 = vsel %vm328, %v2627, %v2603
        %v2735 = vsel %vm325, %v2620, %v2628
        %v2736 = vsel %vm326, %v2612, %v2620
        %v2737 = vsel %vm327, %v2604, %v2612
        %v2738 = vsel %vm328, %v2628, %v2604
        %v2739 = vsel %vm325, %v2621, %v2629
        %v2740 = vsel %vm326, %v2613, %v2621
        %v2741 = vsel %vm327, %v2605, %v2613
        %v2742 = vsel %vm328, %v2629, %v2605
        %v2743 = vsel %vm325, %v2622, %v2630
        %v2744 = vsel %vm326, %v2614, %v2622
        %v2745 = vsel %vm327, %v2606, %v2614
        %v2746 = vsel %vm328, %v2630, %v2606
        %v2747 = vsel %vm325, %v2623, %v2631
        %v2748 = vsel %vm326, %v2615, %v2623
        %v2749 = vsel %vm327, %v2607, %v2615
        %v2750 = vsel %vm328, %v2631, %v2607
        %v2751 = vsel %vm325, %v2624, %v2632
        %v2752 = vsel %vm326, %v2616, %v2624
        %v2753 = vsel %vm327, %v2608, %v2616
        %v2754 = vsel %vm328, %v2632, %v2608
        %v2755 = vsel %vm325, %v2625, %v2633
        %v2756 = vsel %vm326, %v2617, %v2625
        %v2757 = vsel %vm327, %v2609, %v2617
        %v2758 = vsel %vm328, %v2633, %v2609
        %v2759 = vsel %vm325, %v2626, %v2634
        %v2760 = vsel %vm326, %v2618, %v2626
        %v2761 = vsel %vm327, %v2610, %v2618
        %v2762 = vsel %vm328, %v2634, %v2610
        %v2763 = vsel %vm337, %v2723, %v2715
        %v2764 = vsel %vm338, %v2715, %v2707
        %v2765 = vsel %vm339, %v2707, %v2699
        %v2766 = vsel %vm340, %v2699, %v2723
        %v2767 = vsel %vm337, %v2724, %v2716
        %v2768 = vsel %vm338, %v2716, %v2708
        %v2769 = vsel %vm339, %v2708, %v2700
        %v2770 = vsel %vm340, %v2700, %v2724
        %v2771 = vsel %vm337, %v2725, %v2717
        %v2772 = vsel %vm338, %v2717, %v2709
        %v2773 = vsel %vm339, %v2709, %v2701
        %v2774 = vsel %vm340, %v2701, %v2725
        %v2775 = vsel %vm337, %v2726, %v2718
        %v2776 = vsel %vm338, %v2718, %v2710
        %v2777 = vsel %vm339, %v2710, %v2702
        %v2778 = vsel %vm340, %v2702, %v2726
        %v2779 = vsel %vm337, %v2727, %v2719
        %v2780 = vsel %vm338, %v2719, %v2711
        %v2781 = vsel %vm339, %v2711, %v2703
        %v2782 = vsel %vm340, %v2703, %v2727
        %v2783 = vsel %vm337, %v2728, %v2720
        %v2784 = vsel %vm338, %v2720, %v2712
        %v2785 = vsel %vm339, %v2712, %v2704
        %v2786 = vsel %vm340, %v2704, %v2728
        %v2787 = vsel %vm337, %v2729, %v2721
        %v2788 = vsel %vm338, %v2721, %v2713
        %v2789 = vsel %vm339, %v2713, %v2705
        %v2790 = vsel %vm340, %v2705, %v2729
        %v2791 = vsel %vm337, %v2730, %v2722
        %v2792 = vsel %vm338, %v2722, %v2714
        %v2793 = vsel %vm339, %v2714, %v2706
        %v2794 = vsel %vm340, %v2706, %v2730
        %s2795 = scalar_lea.vmem %s4, 64
        %v2796 = vld [vmem:[%s2795] sm:$0xff]
        %v2797 = vld [vmem:[%s2795 + $0x8] sm:$0xff]
        %v2798 = vld [vmem:[%s2795 + $0x10] sm:$0xff]
        %v2799 = vld [vmem:[%s2795 + $0x18] sm:$0xff]
        %v2800 = vld [vmem:[%s2795 + $0x20] sm:$0xff]
        %v2801 = vld [vmem:[%s2795 + $0x28] sm:$0xff]
        %v2802 = vld [vmem:[%s2795 + $0x30] sm:$0xff]
        %v2803 = vld [vmem:[%s2795 + $0x38] sm:$0xff]
        %2805 = vset.pattern.permute.xlu0 0
        %2806 = vperm.xlu0 %2805, %v2796
        %v2807 = vpop.permute.xlu0 %2806
        %2810 = vset.pattern.permute.xlu0 0
        %2811 = vperm.xlu0 %2810, %v2797
        %v2812 = vpop.permute.xlu0 %2811
        %2815 = vset.pattern.permute.xlu0 0
        %2816 = vperm.xlu0 %2815, %v2798
        %v2817 = vpop.permute.xlu0 %2816
        %2820 = vset.pattern.permute.xlu0 0
        %2821 = vperm.xlu0 %2820, %v2799
        %v2822 = vpop.permute.xlu0 %2821
        %2825 = vset.pattern.permute.xlu0 0
        %2826 = vperm.xlu0 %2825, %v2800
        %v2827 = vpop.permute.xlu0 %2826
        %2830 = vset.pattern.permute.xlu0 0
        %2831 = vperm.xlu0 %2830, %v2801
        %v2832 = vpop.permute.xlu0 %2831
        %2835 = vset.pattern.permute.xlu0 0
        %2836 = vperm.xlu0 %2835, %v2802
        %v2837 = vpop.permute.xlu0 %2836
        %2840 = vset.pattern.permute.xlu0 0
        %2841 = vperm.xlu0 %2840, %v2803
        %v2842 = vpop.permute.xlu0 %2841
        %v2845 = vsel %vm695, %v2524, 0
        %v2848 = vsel %vm695, %v2526, 0
        %v2851 = vsel %vm695, %v2528, 0
        %v2854 = vsel %vm695, %v2530, 0
        %v2857 = vsel %vm695, %v2532, 0
        %v2860 = vsel %vm695, %v2534, 0
        %v2863 = vsel %vm695, %v2536, 0
        %v2866 = vsel %vm695, %v2538, 0
        %2868 = vmatpush.msra.mxu0 %v2518
        %2869 = vmatpush.msra.mxu0 %v2514
        %2870 = vmatpush.msra.mxu0 %v2510
        %2871 = vmatpush.msra.mxu0 %v2506
        %2872 = vmatpush.msra.mxu0 %v2502
        %2873 = vmatpush.msra.mxu0 %v2498
        %2874 = vmatpush.msra.mxu0 %v2494
        %2875 = vmatpush.msra.mxu0 %v2490
        %2876 = vmatpush.msra.mxu0 %v2759
        %2877 = vmatpush.msra.mxu0 %v2755
        %2878 = vmatpush.msra.mxu0 %v2751
        %2879 = vmatpush.msra.mxu0 %v2747
        %2880 = vmatpush.msra.mxu0 %v2743
        %2881 = vmatpush.msra.mxu0 %v2739
        %2882 = vmatpush.msra.mxu0 %v2735
        %2883 = vmatpush.msra.mxu0 %v2731
        %2884 = vmatmul.f32.gmra.mxu0 %v2523
        %v2885 = vpop.f32.mrf.mxu0
        %v2886 = vadd.f32 %v2807, %v2885
        %2887 = vmatmul.f32.gmra.mxu0 %v2525
        %v2888 = vpop.f32.mrf.mxu0
        %v2889 = vadd.f32 %v2812, %v2888
        %2890 = vmatmul.f32.gmra.mxu0 %v2527
        %v2891 = vpop.f32.mrf.mxu0
        %v2892 = vadd.f32 %v2817, %v2891
        %2893 = vmatmul.f32.gmra.mxu0 %v2529
        %v2894 = vpop.f32.mrf.mxu0
        %v2895 = vadd.f32 %v2822, %v2894
        %2896 = vmatmul.f32.gmra.mxu0 %v2531
        %v2897 = vpop.f32.mrf.mxu0
        %v2898 = vadd.f32 %v2827, %v2897
        %2899 = vmatmul.f32.gmra.mxu0 %v2533
        %v2900 = vpop.f32.mrf.mxu0
        %v2901 = vadd.f32 %v2832, %v2900
        %2902 = vmatmul.f32.gmra.mxu0 %v2535
        %v2903 = vpop.f32.mrf.mxu0
        %v2904 = vadd.f32 %v2837, %v2903
        %2905 = vmatmul.f32.gmra.mxu0 %v2537
        %v2906 = vpop.f32.mrf.mxu0
        %v2907 = vadd.f32 %v2842, %v2906
        %2908 = vdwg.mxu0
        %2909 = vmatpush.msra.mxu0 0.0
        %2910 = vmatpush.msra.mxu0 0.0
        %2911 = vmatpush.msra.mxu0 0.0
        %2912 = vmatpush.msra.mxu0 0.0
        %2913 = vmatpush.msra.mxu0 0.0
        %2914 = vmatpush.msra.mxu0 0.0
        %2915 = vmatpush.msra.mxu0 0.0
        %2916 = vmatpush.msra.mxu0 0.0
        %2917 = vmatpush.msra.mxu0 %v2791
        %2918 = vmatpush.msra.mxu0 %v2787
        %2919 = vmatpush.msra.mxu0 %v2783
        %2920 = vmatpush.msra.mxu0 %v2779
        %2921 = vmatpush.msra.mxu0 %v2775
        %2922 = vmatpush.msra.mxu0 %v2771
        %2923 = vmatpush.msra.mxu0 %v2767
        %2924 = vmatpush.msra.mxu0 %v2763
        %2925 = vmatmul.f32.gmra.mxu0 %v2845
        %v2926 = vpop.f32.mrf.mxu0
        %v2927 = vadd.f32 %v2886, %v2926
        %2928 = vmatmul.f32.gmra.mxu0 %v2848
        %v2929 = vpop.f32.mrf.mxu0
        %v2930 = vadd.f32 %v2889, %v2929
        %2931 = vmatmul.f32.gmra.mxu0 %v2851
        %v2932 = vpop.f32.mrf.mxu0
        %v2933 = vadd.f32 %v2892, %v2932
        %2934 = vmatmul.f32.gmra.mxu0 %v2854
        %v2935 = vpop.f32.mrf.mxu0
        %v2936 = vadd.f32 %v2895, %v2935
        %2937 = vmatmul.f32.gmra.mxu0 %v2857
        %v2938 = vpop.f32.mrf.mxu0
        %v2939 = vadd.f32 %v2898, %v2938
        %2940 = vmatmul.f32.gmra.mxu0 %v2860
        %v2941 = vpop.f32.mrf.mxu0
        %v2942 = vadd.f32 %v2901, %v2941
        %2943 = vmatmul.f32.gmra.mxu0 %v2863
        %v2944 = vpop.f32.mrf.mxu0
        %v2945 = vadd.f32 %v2904, %v2944
        %2946 = vmatmul.f32.gmra.mxu0 %v2866
        %v2947 = vpop.f32.mrf.mxu0
        %v2948 = vadd.f32 %v2907, %v2947
        %2949 = vdwg.mxu0
        %2950 = vmatpush.msra.mxu0 %v2519
        %2951 = vmatpush.msra.mxu0 %v2515
        %2952 = vmatpush.msra.mxu0 %v2511
        %2953 = vmatpush.msra.mxu0 %v2507
        %2954 = vmatpush.msra.mxu0 %v2503
        %2955 = vmatpush.msra.mxu0 %v2499
        %2956 = vmatpush.msra.mxu0 %v2495
        %2957 = vmatpush.msra.mxu0 %v2491
        %2958 = vmatpush.msra.mxu0 %v2760
        %2959 = vmatpush.msra.mxu0 %v2756
        %2960 = vmatpush.msra.mxu0 %v2752
        %2961 = vmatpush.msra.mxu0 %v2748
        %2962 = vmatpush.msra.mxu0 %v2744
        %2963 = vmatpush.msra.mxu0 %v2740
        %2964 = vmatpush.msra.mxu0 %v2736
        %2965 = vmatpush.msra.mxu0 %v2732
        %2966 = vmatmul.f32.gmra.mxu0 %v2523
        %v2967 = vpop.f32.mrf.mxu0
        %v2968 = vadd.f32 %v2807, %v2967
        %2969 = vmatmul.f32.gmra.mxu0 %v2525
        %v2970 = vpop.f32.mrf.mxu0
        %v2971 = vadd.f32 %v2812, %v2970
        %2972 = vmatmul.f32.gmra.mxu0 %v2527
        %v2973 = vpop.f32.mrf.mxu0
        %v2974 = vadd.f32 %v2817, %v2973
        %2975 = vmatmul.f32.gmra.mxu0 %v2529
        %v2976 = vpop.f32.mrf.mxu0
        %v2977 = vadd.f32 %v2822, %v2976
        %2978 = vmatmul.f32.gmra.mxu0 %v2531
        %v2979 = vpop.f32.mrf.mxu0
        %v2980 = vadd.f32 %v2827, %v2979
        %2981 = vmatmul.f32.gmra.mxu0 %v2533
        %v2982 = vpop.f32.mrf.mxu0
        %v2983 = vadd.f32 %v2832, %v2982
        %2984 = vmatmul.f32.gmra.mxu0 %v2535
        %v2985 = vpop.f32.mrf.mxu0
        %v2986 = vadd.f32 %v2837, %v2985
        %2987 = vmatmul.f32.gmra.mxu0 %v2537
        %v2988 = vpop.f32.mrf.mxu0
        %v2989 = vadd.f32 %v2842, %v2988
        %2990 = vdwg.mxu0
        %2991 = vmatpush.msra.mxu0 0.0
        %2992 = vmatpush.msra.mxu0 0.0
        %2993 = vmatpush.msra.mxu0 0.0
        %2994 = vmatpush.msra.mxu0 0.0
        %2995 = vmatpush.msra.mxu0 0.0
        %2996 = vmatpush.msra.mxu0 0.0
        %2997 = vmatpush.msra.mxu0 0.0
        %2998 = vmatpush.msra.mxu0 0.0
        %2999 = vmatpush.msra.mxu0 %v2792
        %3000 = vmatpush.msra.mxu0 %v2788
        %3001 = vmatpush.msra.mxu0 %v2784
        %3002 = vmatpush.msra.mxu0 %v2780
        %3003 = vmatpush.msra.mxu0 %v2776
        %3004 = vmatpush.msra.mxu0 %v2772
        %3005 = vmatpush.msra.mxu0 %v2768
        %3006 = vmatpush.msra.mxu0 %v2764
        %3007 = vmatmul.f32.gmra.mxu0 %v2845
        %v3008 = vpop.f32.mrf.mxu0
        %v3009 = vadd.f32 %v2968, %v3008
        %3010 = vmatmul.f32.gmra.mxu0 %v2848
        %v3011 = vpop.f32.mrf.mxu0
        %v3012 = vadd.f32 %v2971, %v3011
        %3013 = vmatmul.f32.gmra.mxu0 %v2851
        %v3014 = vpop.f32.mrf.mxu0
        %v3015 = vadd.f32 %v2974, %v3014
        %3016 = vmatmul.f32.gmra.mxu0 %v2854
        %v3017 = vpop.f32.mrf.mxu0
        %v3018 = vadd.f32 %v2977, %v3017
        %3019 = vmatmul.f32.gmra.mxu0 %v2857
        %v3020 = vpop.f32.mrf.mxu0
        %v3021 = vadd.f32 %v2980, %v3020
        %3022 = vmatmul.f32.gmra.mxu0 %v2860
        %v3023 = vpop.f32.mrf.mxu0
        %v3024 = vadd.f32 %v2983, %v3023
        %3025 = vmatmul.f32.gmra.mxu0 %v2863
        %v3026 = vpop.f32.mrf.mxu0
        %v3027 = vadd.f32 %v2986, %v3026
        %3028 = vmatmul.f32.gmra.mxu0 %v2866
        %v3029 = vpop.f32.mrf.mxu0
        %v3030 = vadd.f32 %v2989, %v3029
        %3031 = vdwg.mxu0
        %3032 = vmatpush.msra.mxu0 %v2520
        %3033 = vmatpush.msra.mxu0 %v2516
        %3034 = vmatpush.msra.mxu0 %v2512
        %3035 = vmatpush.msra.mxu0 %v2508
        %3036 = vmatpush.msra.mxu0 %v2504
        %3037 = vmatpush.msra.mxu0 %v2500
        %3038 = vmatpush.msra.mxu0 %v2496
        %3039 = vmatpush.msra.mxu0 %v2492
        %3040 = vmatpush.msra.mxu0 %v2761
        %3041 = vmatpush.msra.mxu0 %v2757
        %3042 = vmatpush.msra.mxu0 %v2753
        %3043 = vmatpush.msra.mxu0 %v2749
        %3044 = vmatpush.msra.mxu0 %v2745
        %3045 = vmatpush.msra.mxu0 %v2741
        %3046 = vmatpush.msra.mxu0 %v2737
        %3047 = vmatpush.msra.mxu0 %v2733
        %3048 = vmatmul.f32.gmra.mxu0 %v2523
        %v3049 = vpop.f32.mrf.mxu0
        %v3050 = vadd.f32 %v2807, %v3049
        %3051 = vmatmul.f32.gmra.mxu0 %v2525
        %v3052 = vpop.f32.mrf.mxu0
        %v3053 = vadd.f32 %v2812, %v3052
        %3054 = vmatmul.f32.gmra.mxu0 %v2527
        %v3055 = vpop.f32.mrf.mxu0
        %v3056 = vadd.f32 %v2817, %v3055
        %3057 = vmatmul.f32.gmra.mxu0 %v2529
        %v3058 = vpop.f32.mrf.mxu0
        %v3059 = vadd.f32 %v2822, %v3058
        %3060 = vmatmul.f32.gmra.mxu0 %v2531
        %v3061 = vpop.f32.mrf.mxu0
        %v3062 = vadd.f32 %v2827, %v3061
        %3063 = vmatmul.f32.gmra.mxu0 %v2533
        %v3064 = vpop.f32.mrf.mxu0
        %v3065 = vadd.f32 %v2832, %v3064
        %3066 = vmatmul.f32.gmra.mxu0 %v2535
        %v3067 = vpop.f32.mrf.mxu0
        %v3068 = vadd.f32 %v2837, %v3067
        %3069 = vmatmul.f32.gmra.mxu0 %v2537
        %v3070 = vpop.f32.mrf.mxu0
        %v3071 = vadd.f32 %v2842, %v3070
        %3072 = vdwg.mxu0
        %3073 = vmatpush.msra.mxu0 0.0
        %3074 = vmatpush.msra.mxu0 0.0
        %3075 = vmatpush.msra.mxu0 0.0
        %3076 = vmatpush.msra.mxu0 0.0
        %3077 = vmatpush.msra.mxu0 0.0
        %3078 = vmatpush.msra.mxu0 0.0
        %3079 = vmatpush.msra.mxu0 0.0
        %3080 = vmatpush.msra.mxu0 0.0
        %3081 = vmatpush.msra.mxu0 %v2793
        %3082 = vmatpush.msra.mxu0 %v2789
        %3083 = vmatpush.msra.mxu0 %v2785
        %3084 = vmatpush.msra.mxu0 %v2781
        %3085 = vmatpush.msra.mxu0 %v2777
        %3086 = vmatpush.msra.mxu0 %v2773
        %3087 = vmatpush.msra.mxu0 %v2769
        %3088 = vmatpush.msra.mxu0 %v2765
        %3089 = vmatmul.f32.gmra.mxu0 %v2845
        %v3090 = vpop.f32.mrf.mxu0
        %v3091 = vadd.f32 %v3050, %v3090
        %3092 = vmatmul.f32.gmra.mxu0 %v2848
        %v3093 = vpop.f32.mrf.mxu0
        %v3094 = vadd.f32 %v3053, %v3093
        %3095 = vmatmul.f32.gmra.mxu0 %v2851
        %v3096 = vpop.f32.mrf.mxu0
        %v3097 = vadd.f32 %v3056, %v3096
        %3098 = vmatmul.f32.gmra.mxu0 %v2854
        %v3099 = vpop.f32.mrf.mxu0
        %v3100 = vadd.f32 %v3059, %v3099
        %3101 = vmatmul.f32.gmra.mxu0 %v2857
        %v3102 = vpop.f32.mrf.mxu0
        %v3103 = vadd.f32 %v3062, %v3102
        %3104 = vmatmul.f32.gmra.mxu0 %v2860
        %v3105 = vpop.f32.mrf.mxu0
        %v3106 = vadd.f32 %v3065, %v3105
        %3107 = vmatmul.f32.gmra.mxu0 %v2863
        %v3108 = vpop.f32.mrf.mxu0
        %v3109 = vadd.f32 %v3068, %v3108
        %3110 = vmatmul.f32.gmra.mxu0 %v2866
        %v3111 = vpop.f32.mrf.mxu0
        %v3112 = vadd.f32 %v3071, %v3111
        %3113 = vdwg.mxu0
        %3114 = vmatpush.msra.mxu0 %v2521
        %3115 = vmatpush.msra.mxu0 %v2517
        %3116 = vmatpush.msra.mxu0 %v2513
        %3117 = vmatpush.msra.mxu0 %v2509
        %3118 = vmatpush.msra.mxu0 %v2505
        %3119 = vmatpush.msra.mxu0 %v2501
        %3120 = vmatpush.msra.mxu0 %v2497
        %3121 = vmatpush.msra.mxu0 %v2493
        %3122 = vmatpush.msra.mxu0 %v2762
        %3123 = vmatpush.msra.mxu0 %v2758
        %3124 = vmatpush.msra.mxu0 %v2754
        %3125 = vmatpush.msra.mxu0 %v2750
        %3126 = vmatpush.msra.mxu0 %v2746
        %3127 = vmatpush.msra.mxu0 %v2742
        %3128 = vmatpush.msra.mxu0 %v2738
        %3129 = vmatpush.msra.mxu0 %v2734
        %3130 = vmatmul.f32.gmra.mxu0 %v2523
        %v3131 = vpop.f32.mrf.mxu0
        %v3132 = vadd.f32 %v2807, %v3131
        %3133 = vmatmul.f32.gmra.mxu0 %v2525
        %v3134 = vpop.f32.mrf.mxu0
        %v3135 = vadd.f32 %v2812, %v3134
        %3136 = vmatmul.f32.gmra.mxu0 %v2527
        %v3137 = vpop.f32.mrf.mxu0
        %v3138 = vadd.f32 %v2817, %v3137
        %3139 = vmatmul.f32.gmra.mxu0 %v2529
        %v3140 = vpop.f32.mrf.mxu0
        %v3141 = vadd.f32 %v2822, %v3140
        %3142 = vmatmul.f32.gmra.mxu0 %v2531
        %v3143 = vpop.f32.mrf.mxu0
        %v3144 = vadd.f32 %v2827, %v3143
        %3145 = vmatmul.f32.gmra.mxu0 %v2533
        %v3146 = vpop.f32.mrf.mxu0
        %v3147 = vadd.f32 %v2832, %v3146
        %3148 = vmatmul.f32.gmra.mxu0 %v2535
        %v3149 = vpop.f32.mrf.mxu0
        %v3150 = vadd.f32 %v2837, %v3149
        %3151 = vmatmul.f32.gmra.mxu0 %v2537
        %v3152 = vpop.f32.mrf.mxu0
        %v3153 = vadd.f32 %v2842, %v3152
        %3154 = vdwg.mxu0
        %3155 = vmatpush.msra.mxu0 0.0
        %3156 = vmatpush.msra.mxu0 0.0
        %3157 = vmatpush.msra.mxu0 0.0
        %3158 = vmatpush.msra.mxu0 0.0
        %3159 = vmatpush.msra.mxu0 0.0
        %3160 = vmatpush.msra.mxu0 0.0
        %3161 = vmatpush.msra.mxu0 0.0
        %3162 = vmatpush.msra.mxu0 0.0
        %3163 = vmatpush.msra.mxu0 %v2794
        %3164 = vmatpush.msra.mxu0 %v2790
        %3165 = vmatpush.msra.mxu0 %v2786
        %3166 = vmatpush.msra.mxu0 %v2782
        %3167 = vmatpush.msra.mxu0 %v2778
        %3168 = vmatpush.msra.mxu0 %v2774
        %3169 = vmatpush.msra.mxu0 %v2770
        %3170 = vmatpush.msra.mxu0 %v2766
        %3171 = vmatmul.f32.gmra.mxu0 %v2845
        %v3172 = vpop.f32.mrf.mxu0
        %v3173 = vadd.f32 %v3132, %v3172
        %3174 = vmatmul.f32.gmra.mxu0 %v2848
        %v3175 = vpop.f32.mrf.mxu0
        %v3176 = vadd.f32 %v3135, %v3175
        %3177 = vmatmul.f32.gmra.mxu0 %v2851
        %v3178 = vpop.f32.mrf.mxu0
        %v3179 = vadd.f32 %v3138, %v3178
        %3180 = vmatmul.f32.gmra.mxu0 %v2854
        %v3181 = vpop.f32.mrf.mxu0
        %v3182 = vadd.f32 %v3141, %v3181
        %3183 = vmatmul.f32.gmra.mxu0 %v2857
        %v3184 = vpop.f32.mrf.mxu0
        %v3185 = vadd.f32 %v3144, %v3184
        %3186 = vmatmul.f32.gmra.mxu0 %v2860
        %v3187 = vpop.f32.mrf.mxu0
        %v3188 = vadd.f32 %v3147, %v3187
        %3189 = vmatmul.f32.gmra.mxu0 %v2863
        %v3190 = vpop.f32.mrf.mxu0
        %v3191 = vadd.f32 %v3150, %v3190
        %3192 = vmatmul.f32.gmra.mxu0 %v2866
        %v3193 = vpop.f32.mrf.mxu0
        %v3194 = vadd.f32 %v3153, %v3193
        %3195 = vdwg.mxu0
        %v3196 = vadd.f32 %v2927, %v1784
        %v3197 = vadd.f32 %v3009, %v1785
        %v3198 = vadd.f32 %v3091, %v1786
        %v3199 = vadd.f32 %v3173, %v1787
        %v3200 = vadd.f32 %v2930, %v1788
        %v3201 = vadd.f32 %v3012, %v1789
        %v3202 = vadd.f32 %v3094, %v1790
        %v3203 = vadd.f32 %v3176, %v1791
        %v3204 = vadd.f32 %v2933, %v1792
        %v3205 = vadd.f32 %v3015, %v1793
        %v3206 = vadd.f32 %v3097, %v1794
        %v3207 = vadd.f32 %v3179, %v1795
        %v3208 = vadd.f32 %v2936, %v1796
        %v3209 = vadd.f32 %v3018, %v1797
        %v3210 = vadd.f32 %v3100, %v1798
        %v3211 = vadd.f32 %v3182, %v1799
        %v3212 = vadd.f32 %v2939, %v1800
        %v3213 = vadd.f32 %v3021, %v1801
        %v3214 = vadd.f32 %v3103, %v1802
        %v3215 = vadd.f32 %v3185, %v1803
        %v3216 = vadd.f32 %v2942, %v1804
        %v3217 = vadd.f32 %v3024, %v1805
        %v3218 = vadd.f32 %v3106, %v1806
        %v3219 = vadd.f32 %v3188, %v1807
        %v3220 = vadd.f32 %v2945, %v1808
        %v3221 = vadd.f32 %v3027, %v1809
        %v3222 = vadd.f32 %v3109, %v1810
        %v3223 = vadd.f32 %v3191, %v1811
        %v3224 = vadd.f32 %v2948, %v1812
        %v3225 = vadd.f32 %v3030, %v1813
        %v3226 = vadd.f32 %v3112, %v1814
        %v3227 = vadd.f32 %v3194, %v1815
        %v3228 = vmax.f32 %v3196, 0.0
        %v3229 = vmax.f32 %v3197, 0.0
        %v3230 = vmax.f32 %v3198, 0.0
        %v3231 = vmax.f32 %v3199, 0.0
        %v3232 = vmax.f32 %v3200, 0.0
        %v3233 = vmax.f32 %v3201, 0.0
        %v3234 = vmax.f32 %v3202, 0.0
        %v3235 = vmax.f32 %v3203, 0.0
        %v3236 = vmax.f32 %v3204, 0.0
        %v3237 = vmax.f32 %v3205, 0.0
        %v3238 = vmax.f32 %v3206, 0.0
        %v3239 = vmax.f32 %v3207, 0.0
        %v3240 = vmax.f32 %v3208, 0.0
        %v3241 = vmax.f32 %v3209, 0.0
        %v3242 = vmax.f32 %v3210, 0.0
        %v3243 = vmax.f32 %v3211, 0.0
        %v3244 = vmax.f32 %v3212, 0.0
        %v3245 = vmax.f32 %v3213, 0.0
        %v3246 = vmax.f32 %v3214, 0.0
        %v3247 = vmax.f32 %v3215, 0.0
        %v3248 = vmax.f32 %v3216, 0.0
        %v3249 = vmax.f32 %v3217, 0.0
        %v3250 = vmax.f32 %v3218, 0.0
        %v3251 = vmax.f32 %v3219, 0.0
        %v3252 = vmax.f32 %v3220, 0.0
        %v3253 = vmax.f32 %v3221, 0.0
        %v3254 = vmax.f32 %v3222, 0.0
        %v3255 = vmax.f32 %v3223, 0.0
        %v3256 = vmax.f32 %v3224, 0.0
        %v3257 = vmax.f32 %v3225, 0.0
        %v3258 = vmax.f32 %v3226, 0.0
        %v3259 = vmax.f32 %v3227, 0.0
        %3260 = vst [vmem:[%s261] sm:$0xff] %v3228
        %3261 = vst [vmem:[%s261 + $0x8] sm:$0xff] %v3229
        %3262 = vst [vmem:[%s261 + $0x10] sm:$0xff] %v3230
        %3263 = vst [vmem:[%s261 + $0x18] sm:$0xff] %v3231
        %3264 = vst [vmem:[%s261 + $0x20] sm:$0xff] %v3232
        %3265 = vst [vmem:[%s261 + $0x28] sm:$0xff] %v3233
        %3266 = vst [vmem:[%s261 + $0x30] sm:$0xff] %v3234
        %3267 = vst [vmem:[%s261 + $0x38] sm:$0xff] %v3235
        %3268 = vst [vmem:[%s261 + $0x40] sm:$0xff] %v3236
        %3269 = vst [vmem:[%s261 + $0x48] sm:$0xff] %v3237
        %3270 = vst [vmem:[%s261 + $0x50] sm:$0xff] %v3238
        %3271 = vst [vmem:[%s261 + $0x58] sm:$0xff] %v3239
        %3272 = vst [vmem:[%s261 + $0x60] sm:$0xff] %v3240
        %3273 = vst [vmem:[%s261 + $0x68] sm:$0xff] %v3241
        %3274 = vst [vmem:[%s261 + $0x70] sm:$0xff] %v3242
        %3275 = vst [vmem:[%s261 + $0x78] sm:$0xff] %v3243
        %3276 = vst [vmem:[%s261 + $0x80] sm:$0xff] %v3244
        %3277 = vst [vmem:[%s261 + $0x88] sm:$0xff] %v3245
        %3278 = vst [vmem:[%s261 + $0x90] sm:$0xff] %v3246
        %3279 = vst [vmem:[%s261 + $0x98] sm:$0xff] %v3247
        %3280 = vst [vmem:[%s261 + $0xa0] sm:$0xff] %v3248
        %3281 = vst [vmem:[%s261 + $0xa8] sm:$0xff] %v3249
        %3282 = vst [vmem:[%s261 + $0xb0] sm:$0xff] %v3250
        %3283 = vst [vmem:[%s261 + $0xb8] sm:$0xff] %v3251
        %3284 = vst [vmem:[%s261 + $0xc0] sm:$0xff] %v3252
        %3285 = vst [vmem:[%s261 + $0xc8] sm:$0xff] %v3253
        %3286 = vst [vmem:[%s261 + $0xd0] sm:$0xff] %v3254
        %3287 = vst [vmem:[%s261 + $0xd8] sm:$0xff] %v3255
        %3288 = vst [vmem:[%s261 + $0xe0] sm:$0xff] %v3256
        %3289 = vst [vmem:[%s261 + $0xe8] sm:$0xff] %v3257
        %3290 = vst [vmem:[%s261 + $0xf0] sm:$0xff] %v3258
        %3291 = vst [vmem:[%s261 + $0xf8] sm:$0xff] %v3259
        %s3292 = sand.u32 %s141, 1
        %s3293 = scalar_lea.sflag [#allocation4], %s3292
        %s3294 = sand.u32 %s141, 1
        %s3295 = smul.addr %s3294, 256
        %s3296 = scalar_lea.vmem [#allocation7], %s3295
        // Predicated region
        $region49: #{tpu_custom_call.1} parent=39 // pred_check
          %p3297 = pneg %p151
        $region50: #{tpu_custom_call.1} parent=39 // pred_check_branch
          %3299 = sbr.rel (%p3297) target = $region52
        $region51: #{tpu_custom_call.1} parent=39 // pred_region
          %s3300 = smul.u32 4, %s23
          %3302 = vsyncadd %s3293, 0
          %s3303 = smul.addr %s3300, 8
          %s3304 = scalar_lea.hbm %s5, %s3303
          %s3305 = sshll.u32 %s3296, 4
          %s3306 = int_to_ptr.vmem [resolvable:$true] %s3305
          %s3307 = sshll.u32 %s3304, 4
          %s3308 = int_to_ptr.hbm [resolvable:$true] %s3307
          %3313 = dma.vmem_to_hbm [thread:$0]  %s3306, 4096, %s3308, %s3293, 512, 1024, 32
        $region52: #{tpu_custom_call.1} parent=39 // pred_fallthru
          _
      $region40: #{tpu_custom_call.1} parent=5 // pred_fallthru
        _
      %p3314 = scmp.le.s32.totalorder 2, %s18
      // Predicated region
      $region53: #{tpu_custom_call.1} parent=5 // pred_check
        %p3315 = pneg %p3314
      $region54: #{tpu_custom_call.1} parent=5 // pred_check_branch
        %3317 = sbr.rel (%p3315) target = $region56
      $region55: #{tpu_custom_call.1} parent=5 // pred_region
        %s3318 = ssub.s32 %s18, 2
        // Predicated region
        $region57: #{tpu_custom_call.1} parent=55 // pred_check
          %p3319 = pneg %p157
        $region58: #{tpu_custom_call.1} parent=55 // pred_check_branch
          %3321 = sbr.rel (%p3319) target = $region60
        $region59: #{tpu_custom_call.1} parent=55 // pred_region
          %s3322 = sand.u32 %s142, 1
          %s3323 = scalar_lea.sflag [#allocation4], %s3322
          %s3324 = sand.u32 %s142, 1
          %s3325 = smul.addr %s3324, 256
          %s3326 = scalar_lea.vmem [#allocation7], %s3325
          %3328 = dma.done %s3323, 4096
        $region60: #{tpu_custom_call.1} parent=55 // pred_fallthru
          _
      $region56: #{tpu_custom_call.1} parent=5 // pred_fallthru
        _
    $region6: #{tpu_custom_call.1} parent=1 // loop_footer
      %s22 = sadd.s32 1, %s18
    $region7: #{tpu_custom_call.1} parent=1 // loop_footer_branch
      %17 = sbr.rel target = $region3
    $region8: #{tpu_custom_call.1} parent=1 // loop_exit
      _
    %3329 = vsyncpa [#allocation3], 1
    %s3330 = scalar_lea.sflag [#allocation3], 1
    %3331 = vsyncpa %s3330, 1
    %3332 = vsyncpa [#allocation6], 1
    %3333 = vsyncpa [#allocation4], 1
    %s3334 = scalar_lea.sflag [#allocation4], 1
    %3335 = vsyncpa %s3334, 1

</llo_original>
